<compile_context>
chip_gen: v7x
topology: tpu7x:2x2x1
jax: 0.10.0
libtpu: 0.0.40
codegen_flags: <defaults>
</compile_context>

<pallas_src>
import functools

import jax
import jax.numpy as jnp
from jax.experimental import pallas as pl
from jax.experimental.pallas import tpu as pltpu


# ---------------------------------------------------------------------------
# Kernel
# ---------------------------------------------------------------------------

def _gelu_tanh_f32(x):
    # TODO(synk): PyTorch nn.GELU() default is the exact erf-based GELU; erf has no
    # guaranteed Mosaic lowering, so the tanh approximation is fused (<~1e-3 deviation).
    c = jnp.float32(0.7978845608028654)  # sqrt(2/pi)
    return 0.5 * x * (1.0 + jnp.tanh(c * (x + jnp.float32(0.044715) * x * x * x)))


def _mlp_fused_kernel(x_ref, w1_ref, b1_ref, w2_ref, b2_ref, o_ref, acc_ref, *,
                      matmul_dtype):
    h_idx = pl.program_id(1)

    @pl.when(h_idx == 0)
    def _():
        acc_ref[...] = jnp.zeros_like(acc_ref)

    # fc1 slice: (tm, K) @ (K, tH) on the MXU, f32 accumulation.
    h = jnp.dot(x_ref[...], w1_ref[...], preferred_element_type=jnp.float32)
    h = _gelu_tanh_f32(h + b1_ref[...])          # bias + GELU in f32 (VPU/EUP)
    # TODO(synk): nn.Dropout(p=0.0) is an identity at inference; no dropout emitted.
    # fc2 slice: accumulate (tm, tH) @ (tH, N) into the resident f32 accumulator.
    acc_ref[...] += jnp.dot(h.astype(matmul_dtype), w2_ref[...],
                            preferred_element_type=jnp.float32)

    @pl.when(h_idx == pl.num_programs(1) - 1)
    def _():
        o_ref[...] = (acc_ref[...] + b2_ref[...]).astype(o_ref.dtype)


# ---------------------------------------------------------------------------
# Tiling / VMEM budgeting
# ---------------------------------------------------------------------------

def _round_up(x, m):
    return (x + m - 1) // m * m


def _vmem_budget_and_limit():
    """(tile-picker budget, vmem_limit_bytes) derived from the chip's VMEM capacity."""
    cap = 64 * 1024 * 1024  # conservative fallback (v7x per-TC size; safe everywhere)
    try:
        cap = int(pltpu.get_tpu_info().vmem_capacity_bytes)
    except Exception:
        pass
    limit = max(16 * 1024 * 1024, (cap * 3) // 4)   # ~96 MiB v5e/v6e, ~48 MiB v7x per TC
    budget = limit - 2 * 1024 * 1024                # Mosaic internal-scratch headroom
    return budget, limit


def _pick_tiles(M, K, H, N, op_bytes, out_bytes, budget):
    """Pick (block_m, block_h, h_tiled). Raises if nothing fits the VMEM budget."""

    def est(tm, th, h_tiled):
        wb = 2 if h_tiled else 1  # weights double-buffered only when their index changes
        return (2 * tm * K * op_bytes                 # x tile (double-buffered)
                + 2 * tm * N * out_bytes              # output tile (double-buffered)
                + wb * (K * th + th * N) * op_bytes   # w1 + w2 slices
                + wb * 8 * th * 4 + 8 * N * 4         # biases (sublane-padded)
                + tm * N * 4                          # f32 accumulator scratch
                + tm * th * (4 + op_bytes))           # f32 hidden + bf16 copy temporaries

    tm_cap = min(1024, _round_up(M, 16))
    if M >= 512:
        # Keep grid_m >= 2: shards rows across both v7x TensorCores without dropping
        # the tile below 256 rows.
        tm_cap = min(tm_cap, _round_up(-(-M // 2), 16))
    tm_cands = sorted({c for c in (1024, 512, 256, 128, 64, 32, 16) if c <= tm_cap}
                      | {tm_cap}, reverse=True)

    # 1) Full-H residency: weights stay in VMEM across the whole row grid.
    for tm in tm_cands:
        if est(tm, H, False) <= budget:
            if M % tm:
                # Prefer an equally-fitting tile that divides M (avoids padding x) as
                # long as it stays >= max(256, tm // 2).
                for alt in tm_cands:
                    if (alt <= tm and alt >= max(256, tm // 2) and M % alt == 0
                            and est(alt, H, False) <= budget):
                        return alt, H, False
            return tm, H, False

    # 2) Fall back to streaming the hidden dimension (last, "arbitrary" grid axis).
    th_cands = [t for t in (8192, 4096, 2048, 1024, 512, 256, 128)
                if t < H and H % t == 0]
    for tm in tm_cands:
        for th in th_cands:
            if est(tm, th, True) <= budget:
                return tm, th, True

    raise ValueError(
        f"Mlp kernel: no (block_m, block_h) tiling of (M={M}, K={K}, H={H}, N={N}) "
        f"fits the {budget // (1 << 20)} MiB VMEM budget.")


# ---------------------------------------------------------------------------
# Wrapper
# ---------------------------------------------------------------------------

def mlp_forward(x, w1, b1, w2, b2, *, block_m=None, block_h=None,
                matmul_dtype=jnp.bfloat16):
    """Fused Mlp forward: GELU(x @ w1 + b1) @ w2 + b2, tiled over rows (and H if needed).

    x: (..., in_features); w1: (in_features, hidden); w2: (hidden, out_features).
    """
    orig_shape = x.shape
    K, H = w1.shape
    N = w2.shape[1]
    out_dtype = x.dtype

    x2 = x.reshape(-1, K)
    M = x2.shape[0]

    op_bytes = jnp.dtype(matmul_dtype).itemsize
    out_bytes = jnp.dtype(out_dtype).itemsize
    budget, vmem_limit = _vmem_budget_and_limit()

    tm, th, h_tiled = _pick_tiles(M, K, H, N, op_bytes, out_bytes, budget)
    if block_m is not None:
        tm = int(block_m)
    if block_h is not None:
        th = int(block_h)
        h_tiled = th < H
    assert H % th == 0, "block_h must divide the hidden dimension"
    tm = max(8, min(tm, _round_up(M, 8)))

    Mp = _round_up(M, tm)
    if Mp != M:
        x2 = jnp.pad(x2, ((0, Mp - M), (0, 0)))

    # bf16 matmul operands (f32 MXU accumulation); biases stay f32.
    x2 = x2.astype(matmul_dtype)
    w1c = w1.astype(matmul_dtype)
    w2c = w2.astype(matmul_dtype)
    b1f = b1.astype(jnp.float32).reshape(1, H)
    b2f = b2.astype(jnp.float32).reshape(1, N)

    grid_m = Mp // tm
    grid_h = H // th

    resident = pl.Buffered(1)                  # constant-index blocks: single-buffered
    w_mode = None if h_tiled else resident     # double-buffer weights only when streamed

    flops = int(2 * Mp * K * H + 2 * Mp * H * N)
    bytes_accessed = int(Mp * K * op_bytes + (K * H + H * N) * op_bytes
                         + (H + N) * 4 + Mp * N * out_bytes)

    out = pl.pallas_call(
        functools.partial(_mlp_fused_kernel, matmul_dtype=matmul_dtype),
        out_shape=jax.ShapeDtypeStruct((Mp, N), out_dtype),
        grid=(grid_m, grid_h),
        in_specs=[
            pl.BlockSpec((tm, K), lambda i, h: (i, 0)),                          # x rows
            pl.BlockSpec((K, th), lambda i, h: (0, h), pipeline_mode=w_mode),    # fc1 w
            pl.BlockSpec((1, th), lambda i, h: (0, h), pipeline_mode=w_mode),    # fc1 b
            pl.BlockSpec((th, N), lambda i, h: (h, 0), pipeline_mode=w_mode),    # fc2 w
            pl.BlockSpec((1, N), lambda i, h: (0, 0), pipeline_mode=resident),   # fc2 b
        ],
        out_specs=pl.BlockSpec((tm, N), lambda i, h: (i, 0)),
        scratch_shapes=[pltpu.VMEM((tm, N), jnp.float32)],
        compiler_params=pltpu.CompilerParams(
            dimension_semantics=("parallel", "arbitrary"),
            vmem_limit_bytes=int(vmem_limit),
        ),
        cost_estimate=pl.CostEstimate(
            flops=flops, transcendentals=int(Mp * H), bytes_accessed=bytes_accessed),
    )(x2, w1c, b1f, w2c, b2f)

    if Mp != M:
        out = out[:M]
    return out.reshape(*orig_shape[:-1], N)


# ---------------------------------------------------------------------------
# Self-test
# ---------------------------------------------------------------------------

if __name__ == "__main__":
    key = jax.random.PRNGKey(0)
    k_x, k_w1, k_b1, k_w2, k_b2 = jax.random.split(key, 5)

    # Small Swin-like Mlp: tokens = B*L, hidden = 4 * in_features.
    B, L = 2, 1024
    in_features = 32
    hidden_features = 4 * in_features      # 128
    out_features = in_features             # 32

    x = jax.random.normal(k_x, (B, L, in_features), jnp.float32)
    w1 = 0.02 * jax.random.normal(k_w1, (in_features, hidden_features), jnp.float32)
    b1 = 0.02 * jax.random.normal(k_b1, (hidden_features,), jnp.float32)
    w2 = 0.02 * jax.random.normal(k_w2, (hidden_features, out_features), jnp.float32)
    b2 = 0.02 * jax.random.normal(k_b2, (out_features,), jnp.float32)

    fwd = jax.jit(mlp_forward)
    y = fwd(x, w1, b1, w2, b2)
    jax.block_until_ready(y)

    # Pure-JAX f32 reference (full-precision matmuls; same tanh-GELU as the kernel).
    # The kernel uses bf16 MXU operands with f32 accumulation, hence the tolerances.
    def ref(xf, w1f, b1f, w2f, b2f):
        hp = jax.lax.Precision.HIGHEST
        h = jnp.dot(xf, w1f, precision=hp) + b1f
        h = _gelu_tanh_f32(h)
        return (jnp.dot(h, w2f, precision=hp) + b2f).astype(xf.dtype)

    y_ref = ref(x.reshape(-1, in_features), w1, b1, w2, b2).reshape(B, L, out_features)

    assert y.shape == (B, L, out_features)
    assert bool(jnp.all(jnp.isfinite(y)))
    max_err = float(jnp.max(jnp.abs(y - y_ref)))
    assert bool(jnp.allclose(y, y_ref, rtol=2e-2, atol=5e-3)), max_err
    print("KERNEL_OK")
</pallas_src>

<mosaic_0001>
module attributes {stable_mosaic.version = 11 : i64} {
  func.func @_mlp_fused_kernel(%arg0: i32, %arg1: i32, %arg2: memref<1024x32xbf16, #tpu.memory_space<vmem>>, %arg3: memref<32x128xbf16, #tpu.memory_space<vmem>>, %arg4: memref<1x128xf32, #tpu.memory_space<vmem>>, %arg5: memref<128x32xbf16, #tpu.memory_space<vmem>>, %arg6: memref<1x32xf32, #tpu.memory_space<vmem>>, %arg7: memref<1024x32xf32, #tpu.memory_space<vmem>>, %arg8: memref<1024x32xf32, #tpu.memory_space<vmem>>) attributes {dimension_semantics = [#tpu.dimension_semantics<parallel>, #tpu.dimension_semantics<arbitrary>], iteration_bounds = array<i64: 2, 1>, scalar_prefetch = 0 : i64, scratch_operands = 1 : i64, tpu.core_type = #tpu.core_type<tc>, window_params = [{transform_indices = @transform_0, window_bounds = array<i64: 1024, 32>}, {pipeline_mode = #tpu.pipeline_mode<synchronous>, transform_indices = @transform_1, window_bounds = array<i64: 32, 128>}, {pipeline_mode = #tpu.pipeline_mode<synchronous>, transform_indices = @transform_2, window_bounds = array<i64: 1, 128>}, {pipeline_mode = #tpu.pipeline_mode<synchronous>, transform_indices = @transform_3, window_bounds = array<i64: 128, 32>}, {pipeline_mode = #tpu.pipeline_mode<synchronous>, transform_indices = @transform_4, window_bounds = array<i64: 1, 32>}, {transform_indices = @transform_5, window_bounds = array<i64: 1024, 32>}]} {
    %c0_i32 = arith.constant 0 : i32
    %0 = arith.cmpi eq, %arg1, %c0_i32 : i32
    %1 = arith.extui %0 : i1 to i32
    %c0_i32_0 = arith.constant 0 : i32
    %2 = arith.cmpi ne, %1, %c0_i32_0 : i32
    scf.if %2 {
      %cst_19 = arith.constant 0.000000e+00 : f32
      %31 = vector.broadcast %cst_19 : f32 to vector<1024x32xf32>
      %c0_20 = arith.constant 0 : index
      %c0_21 = arith.constant 0 : index
      %32 = vector.load %arg8[%c0_20, %c0_21] : memref<1024x32xf32, #tpu.memory_space<vmem>>, vector<1024x32xf32>
      tpu.vector_store %arg8[%c0_20, %c0_21], %31 {strides = array<i32>} : memref<1024x32xf32, #tpu.memory_space<vmem>>, vector<1024x32xf32>,
    } else {
    }
    %c0 = arith.constant 0 : index
    %c0_1 = arith.constant 0 : index
    %3 = vector.load %arg2[%c0, %c0_1] : memref<1024x32xbf16, #tpu.memory_space<vmem>>, vector<1024x32xbf16>
    %c0_2 = arith.constant 0 : index
    %c0_3 = arith.constant 0 : index
    %4 = vector.load %arg3[%c0_2, %c0_3] : memref<32x128xbf16, #tpu.memory_space<vmem>>, vector<32x128xbf16>
    %cst = arith.constant dense<0.000000e+00> : vector<1024x128xf32>
    %5 = tpu.matmul %3, %4, %cst {dimension_numbers = #tpu.dot_dimension_numbers<[1], [0], [0], [1], [0, 0, 1, 1], [], []>} : vector<1024x32xbf16>, vector<32x128xbf16>, vector<1024x128xf32> -> vector<1024x128xf32>
    %c0_4 = arith.constant 0 : index
    %c0_5 = arith.constant 0 : index
    %6 = vector.load %arg4[%c0_4, %c0_5] : memref<1x128xf32, #tpu.memory_space<vmem>>, vector<1x128xf32>
    %7 = vector.broadcast %6 : vector<1x128xf32> to vector<1024x128xf32>
    %8 = arith.addf %5, %7 : vector<1024x128xf32>
    %cst_6 = arith.constant 5.000000e-01 : f32
    %9 = vector.broadcast %cst_6 : f32 to vector<1024x128xf32>
    %10 = arith.mulf %9, %8 : vector<1024x128xf32>
    %cst_7 = arith.constant 4.471500e-02 : f32
    %11 = vector.broadcast %cst_7 : f32 to vector<1024x128xf32>
    %12 = arith.mulf %11, %8 : vector<1024x128xf32>
    %13 = arith.mulf %12, %8 : vector<1024x128xf32>
    %14 = arith.mulf %13, %8 : vector<1024x128xf32>
    %15 = arith.addf %8, %14 : vector<1024x128xf32>
    %cst_8 = arith.constant 0.797884583 : f32
    %16 = vector.broadcast %cst_8 : f32 to vector<1024x128xf32>
    %17 = arith.mulf %16, %15 : vector<1024x128xf32>
    %18 = math.tanh %17 : vector<1024x128xf32>
    %cst_9 = arith.constant 1.000000e+00 : f32
    %19 = vector.broadcast %cst_9 : f32 to vector<1024x128xf32>
    %20 = arith.addf %19, %18 : vector<1024x128xf32>
    %21 = arith.mulf %10, %20 : vector<1024x128xf32>
    %c0_10 = arith.constant 0 : index
    %c0_11 = arith.constant 0 : index
    %22 = vector.load %arg8[%c0_10, %c0_11] : memref<1024x32xf32, #tpu.memory_space<vmem>>, vector<1024x32xf32>
    %23 = arith.truncf %21 : vector<1024x128xf32> to vector<1024x128xbf16>
    %c0_12 = arith.constant 0 : index
    %c0_13 = arith.constant 0 : index
    %24 = vector.load %arg5[%c0_12, %c0_13] : memref<128x32xbf16, #tpu.memory_space<vmem>>, vector<128x32xbf16>
    %cst_14 = arith.constant dense<0.000000e+00> : vector<1024x32xf32>
    %25 = tpu.matmul %23, %24, %cst_14 {dimension_numbers = #tpu.dot_dimension_numbers<[1], [0], [0], [1], [0, 0, 1, 1], [], []>} : vector<1024x128xbf16>, vector<128x32xbf16>, vector<1024x32xf32> -> vector<1024x32xf32>
    %26 = arith.addf %22, %25 : vector<1024x32xf32>
    %c0_15 = arith.constant 0 : index
    %c0_16 = arith.constant 0 : index
    %27 = vector.load %arg8[%c0_15, %c0_16] : memref<1024x32xf32, #tpu.memory_space<vmem>>, vector<1024x32xf32>
    tpu.vector_store %arg8[%c0_15, %c0_16], %26 {strides = array<i32>} : memref<1024x32xf32, #tpu.memory_space<vmem>>, vector<1024x32xf32>,
    %c0_i32_17 = arith.constant 0 : i32
    %28 = arith.cmpi eq, %arg1, %c0_i32_17 : i32
    %29 = arith.extui %28 : i1 to i32
    %c0_i32_18 = arith.constant 0 : i32
    %30 = arith.cmpi ne, %29, %c0_i32_18 : i32
    scf.if %30 {
      %c0_19 = arith.constant 0 : index
      %c0_20 = arith.constant 0 : index
      %31 = vector.load %arg8[%c0_19, %c0_20] : memref<1024x32xf32, #tpu.memory_space<vmem>>, vector<1024x32xf32>
      %c0_21 = arith.constant 0 : index
      %c0_22 = arith.constant 0 : index
      %32 = vector.load %arg6[%c0_21, %c0_22] : memref<1x32xf32, #tpu.memory_space<vmem>>, vector<1x32xf32>
      %33 = vector.broadcast %32 : vector<1x32xf32> to vector<1024x32xf32>
      %34 = arith.addf %31, %33 : vector<1024x32xf32>
      %c0_23 = arith.constant 0 : index
      %c0_24 = arith.constant 0 : index
      %35 = vector.load %arg7[%c0_23, %c0_24] : memref<1024x32xf32, #tpu.memory_space<vmem>>, vector<1024x32xf32>
      tpu.vector_store %arg7[%c0_23, %c0_24], %34 {strides = array<i32>} : memref<1024x32xf32, #tpu.memory_space<vmem>>, vector<1024x32xf32>,
    } else {
    }
    return
  }
  func.func @transform_0(%arg0: i32, %arg1: i32) -> (i32, i32) {
    %c0_i32 = arith.constant 0 : i32
    %c0_i32_0 = arith.constant 0 : i32
    return %arg0, %c0_i32 : i32, i32
  }
  func.func @transform_1(%arg0: i32, %arg1: i32) -> (i32, i32) {
    %c0_i32 = arith.constant 0 : i32
    %c0_i32_0 = arith.constant 0 : i32
    return %c0_i32, %arg1 : i32, i32
  }
  func.func @transform_2(%arg0: i32, %arg1: i32) -> (i32, i32) {
    %c0_i32 = arith.constant 0 : i32
    %c0_i32_0 = arith.constant 0 : i32
    return %c0_i32, %arg1 : i32, i32
  }
  func.func @transform_3(%arg0: i32, %arg1: i32) -> (i32, i32) {
    %c0_i32 = arith.constant 0 : i32
    %c0_i32_0 = arith.constant 0 : i32
    return %arg1, %c0_i32 : i32, i32
  }
  func.func @transform_4(%arg0: i32, %arg1: i32) -> (i32, i32) {
    %c0_i32 = arith.constant 0 : i32
    %c0_i32_0 = arith.constant 0 : i32
    %c0_i32_1 = arith.constant 0 : i32
    return %c0_i32, %c0_i32_0 : i32, i32
  }
  func.func @transform_5(%arg0: i32, %arg1: i32) -> (i32, i32) {
    %c0_i32 = arith.constant 0 : i32
    %c0_i32_0 = arith.constant 0 : i32
    return %arg0, %c0_i32 : i32, i32
  }
}

</mosaic_0001>

<llo_original>
// kernel: mlp_forward.1
$region0: #{mlp_forward.1}
  #allocation0 [shape = 'u32[]', space=smem, size = 0x4, offset = 0x4, fixed_abs, tag = 'smem constant byte address 0x4 - core index']
  #allocation1 [shape = 'u32[144,128]{1,0:T(1,128)}', space=vmem, size = 0x12000, scoped, tag = 'internal scratch']
  #allocation2 [shape = 'f32[1024,32]{1,0:T(8,128)}', space=vmem, size = 0x80000, scoped, tag = 'scratch operand']
  %s0 = inlined_call_operand.vmem [shape: bf16[2048,32], index: 0, kind: input, shape index: {}]
  %s1 = inlined_call_operand.vmem [shape: bf16[32,128], index: 1, kind: input, shape index: {}]
  %s2 = inlined_call_operand.vmem [shape: f32[1,128], index: 2, kind: input, shape index: {}]
  %s3 = inlined_call_operand.vmem [shape: bf16[128,32], index: 3, kind: input, shape index: {}]
  %s4 = inlined_call_operand.vmem [shape: f32[1,32], index: 4, kind: input, shape index: {}]
  %s5 = inlined_call_operand.vmem [shape: f32[2048,32], index: 5, kind: output, shape index: {}]
  %s6 = sld [smem:[#allocation0]]
  $region61: #{mlp_forward.1} parent=0
    _
  %s8 = ssub.s32 1, %s6
  %s9 = scalar_select 0, %s8, %s6
  loop: start=0, step=1, limit=4
  $region2: #{mlp_forward.1} parent=0 // loop_pre_header
    _
  $region3: #{mlp_forward.1} parent=0 // loop_header
    %s11 = sphi 0, %s15
    %p12 = scmp.ge.s32.totalorder %s11, 4
    %s18 = sphi 0, %s30
    %s19 = sphi 0, %s26
    %s20 = sphi 0, %s18
    %s21 = sphi 0, %s19
    %s22 = sphi 0, %s20
    %s23 = sphi 0, %s21
    %s33 = sphi 0, %s35
    %s36 = sphi 0, %s33
    %s37 = sphi 0, %s36
    %s53 = sphi 0, %s37
    %s59 = sphi 0, %s61
    %s62 = sphi 0, %s59
    %s63 = sphi 0, %s62
    %s79 = sphi 0, %s63
    %s85 = sphi 0, %s87
    %s88 = sphi 0, %s85
    %s89 = sphi 0, %s88
    %s105 = sphi 0, %s89
    %s111 = sphi 0, %s113
    %s114 = sphi 0, %s111
    %s115 = sphi 0, %s114
    %s131 = sphi 0, %s115
    %s135 = sphi 0, %s135
    %s137 = sphi 0, %s135
    %s138 = sphi 0, %s137
    %s152 = sphi 0, %s138
    %s158 = sphi 0, %s160
    %s161 = sphi 0, %s158
    %s162 = sphi 0, %s161
    %s178 = sphi 0, %s162
  $region4: #{mlp_forward.1} parent=0 // loop_header_branch
    %14 = sbr.rel (%p12) target = $region8
  $region5: #{mlp_forward.1} parent=0 // loop_body
    %s16 = ssub.s32 %s11, 1
    %s17 = ssub.s32 %s11, 2
    %s24 = sadd.s32 1, %s19
    %p25 = scmp.ge.s32.totalorder %s24, 1
    %s26 = scalar_select %p25, 0, %s24
    %s27 = sadd.s32 1, %s18
    %s28 = scalar_select %p25, %s27, %s18
    %p29 = scmp.ge.s32.totalorder %s28, 2
    %s30 = scalar_select %p29, 0, %s28
    %s31 = ssub.s32 %s18, %s30
    %p32 = scmp.eq.s32.totalorder %s31, 0
    %s34 = sadd.s32 %s33, 1
    %s35 = scalar_select %p32, %s33, %s34
    %p38 = pneg %p32
    %p39 = scmp.eq.s32.totalorder %s11, 1
    %p40 = por %p38, %p39
    %p41 = scmp.ne.s32.totalorder %s33, %s36
    %p42 = scmp.eq.s32.totalorder %s11, 0
    %p43 = por %p41, %p42
    %p44 = scmp.ne.s32.totalorder %s33, %s36
    %p45 = scmp.eq.s32.totalorder %s16, 1
    %p46 = por %p44, %p45
    %p47 = scmp.ne.s32.totalorder %s36, %s37
    %p48 = scmp.eq.s32.totalorder %s16, 0
    %p49 = por %p47, %p48
    %p50 = scmp.ne.s32.totalorder %s36, %s37
    %p51 = scmp.eq.s32.totalorder %s17, 1
    %p52 = por %p50, %p51
    %p54 = scmp.ne.s32.totalorder %s37, %s53
    %p55 = scmp.eq.s32.totalorder %s17, 0
    %p56 = por %p54, %p55
    %s57 = ssub.s32 %s19, %s26
    %p58 = scmp.eq.s32.totalorder %s57, 0
    %s60 = sadd.s32 %s59, 1
    %s61 = scalar_select %p58, %s59, %s60
    %p64 = pneg %p58
    %p65 = scmp.eq.s32.totalorder %s11, 1
    %p66 = por %p64, %p65
    %p67 = scmp.ne.s32.totalorder %s59, %s62
    %p68 = scmp.eq.s32.totalorder %s11, 0
    %p69 = por %p67, %p68
    %p70 = scmp.ne.s32.totalorder %s59, %s62
    %p71 = scmp.eq.s32.totalorder %s16, 1
    %p72 = por %p70, %p71
    %p73 = scmp.ne.s32.totalorder %s62, %s63
    %p74 = scmp.eq.s32.totalorder %s16, 0
    %p75 = por %p73, %p74
    %p76 = scmp.ne.s32.totalorder %s62, %s63
    %p77 = scmp.eq.s32.totalorder %s17, 1
    %p78 = por %p76, %p77
    %p80 = scmp.ne.s32.totalorder %s63, %s79
    %p81 = scmp.eq.s32.totalorder %s17, 0
    %p82 = por %p80, %p81
    %s83 = ssub.s32 %s19, %s26
    %p84 = scmp.eq.s32.totalorder %s83, 0
    %s86 = sadd.s32 %s85, 1
    %s87 = scalar_select %p84, %s85, %s86
    %p90 = pneg %p84
    %p91 = scmp.eq.s32.totalorder %s11, 1
    %p92 = por %p90, %p91
    %p93 = scmp.ne.s32.totalorder %s85, %s88
    %p94 = scmp.eq.s32.totalorder %s11, 0
    %p95 = por %p93, %p94
    %p96 = scmp.ne.s32.totalorder %s85, %s88
    %p97 = scmp.eq.s32.totalorder %s16, 1
    %p98 = por %p96, %p97
    %p99 = scmp.ne.s32.totalorder %s88, %s89
    %p100 = scmp.eq.s32.totalorder %s16, 0
    %p101 = por %p99, %p100
    %p102 = scmp.ne.s32.totalorder %s88, %s89
    %p103 = scmp.eq.s32.totalorder %s17, 1
    %p104 = por %p102, %p103
    %p106 = scmp.ne.s32.totalorder %s89, %s105
    %p107 = scmp.eq.s32.totalorder %s17, 0
    %p108 = por %p106, %p107
    %s109 = ssub.s32 %s19, %s26
    %p110 = scmp.eq.s32.totalorder %s109, 0
    %s112 = sadd.s32 %s111, 1
    %s113 = scalar_select %p110, %s111, %s112
    %p116 = pneg %p110
    %p117 = scmp.eq.s32.totalorder %s11, 1
    %p118 = por %p116, %p117
    %p119 = scmp.ne.s32.totalorder %s111, %s114
    %p120 = scmp.eq.s32.totalorder %s11, 0
    %p121 = por %p119, %p120
    %p122 = scmp.ne.s32.totalorder %s111, %s114
    %p123 = scmp.eq.s32.totalorder %s16, 1
    %p124 = por %p122, %p123
    %p125 = scmp.ne.s32.totalorder %s114, %s115
    %p126 = scmp.eq.s32.totalorder %s16, 0
    %p127 = por %p125, %p126
    %p128 = scmp.ne.s32.totalorder %s114, %s115
    %p129 = scmp.eq.s32.totalorder %s17, 1
    %p130 = por %p128, %p129
    %p132 = scmp.ne.s32.totalorder %s115, %s131
    %p133 = scmp.eq.s32.totalorder %s17, 0
    %p134 = por %p132, %p133
    %s136 = sadd.s32 %s135, 1
    %p139 = scmp.eq.s32.totalorder %s11, 1
    %p140 = scmp.ne.s32.totalorder %s135, %s137
    %p141 = scmp.eq.s32.totalorder %s11, 0
    %p142 = por %p140, %p141
    %p143 = scmp.ne.s32.totalorder %s135, %s137
    %p144 = scmp.eq.s32.totalorder %s16, 1
    %p145 = por %p143, %p144
    %p146 = scmp.ne.s32.totalorder %s137, %s138
    %p147 = scmp.eq.s32.totalorder %s16, 0
    %p148 = por %p146, %p147
    %p149 = scmp.ne.s32.totalorder %s137, %s138
    %p150 = scmp.eq.s32.totalorder %s17, 1
    %p151 = por %p149, %p150
    %p153 = scmp.ne.s32.totalorder %s138, %s152
    %p154 = scmp.eq.s32.totalorder %s17, 0
    %p155 = por %p153, %p154
    %s156 = ssub.s32 %s18, %s30
    %p157 = scmp.eq.s32.totalorder %s156, 0
    %s159 = sadd.s32 %s158, 1
    %s160 = scalar_select %p157, %s158, %s159
    %p163 = pneg %p157
    %p164 = scmp.eq.s32.totalorder %s11, 1
    %p165 = por %p163, %p164
    %p166 = scmp.ne.s32.totalorder %s158, %s161
    %p167 = scmp.eq.s32.totalorder %s11, 0
    %p168 = por %p166, %p167
    %p169 = scmp.ne.s32.totalorder %s158, %s161
    %p170 = scmp.eq.s32.totalorder %s16, 1
    %p171 = por %p169, %p170
    %p172 = scmp.ne.s32.totalorder %s161, %s162
    %p173 = scmp.eq.s32.totalorder %s16, 0
    %p174 = por %p172, %p173
    %p175 = scmp.ne.s32.totalorder %s161, %s162
    %p176 = scmp.eq.s32.totalorder %s17, 1
    %p177 = por %p175, %p176
    %p179 = scmp.ne.s32.totalorder %s162, %s178
    %p180 = scmp.eq.s32.totalorder %s17, 0
    %p181 = por %p179, %p180
    %p182 = scmp.le.s32.totalorder 1, %s11
    %p183 = scmp.lt.s32.totalorder %s11, 3
    %p184 = pnand %p182, %p183
    %p185 = pneg %p184
    // Predicated region
    $region9: #{mlp_forward.1} parent=5 // pred_check
      _
    $region10: #{mlp_forward.1} parent=5 // pred_check_branch
      %187 = sbr.rel (%p184) target = $region12
    $region11: #{mlp_forward.1} parent=5 // pred_region
      %s188 = ssub.s32 %s11, 1
      // Predicated region
      $region13: #{mlp_forward.1} parent=11 // pred_check
        %p189 = pneg %p75
      $region14: #{mlp_forward.1} parent=11 // pred_check_branch
        %191 = sbr.rel (%p189) target = $region16
      $region15: #{mlp_forward.1} parent=11 // pred_region
        %p192 = scmp.lt.s32.totalorder %s21, 0
        %s193 = scalar_select %p192, %s21, 0
        %s194 = smul.addr %s193, 4
        %s195 = scalar_lea.vmem %s1, %s194
      $region16: #{mlp_forward.1} parent=11 // pred_fallthru
        _
      // Predicated region
      $region17: #{mlp_forward.1} parent=11 // pred_check
        %p196 = pneg %p101
      $region18: #{mlp_forward.1} parent=11 // pred_check_branch
        %198 = sbr.rel (%p196) target = $region20
      $region19: #{mlp_forward.1} parent=11 // pred_region
        %p199 = scmp.lt.s32.totalorder %s21, 0
        %s200 = scalar_select %p199, %s21, 0
        %s201 = scalar_lea.vmem %s2, %s200
      $region20: #{mlp_forward.1} parent=11 // pred_fallthru
        _
      // Predicated region
      $region21: #{mlp_forward.1} parent=11 // pred_check
        %p202 = pneg %p127
      $region22: #{mlp_forward.1} parent=11 // pred_check_branch
        %204 = sbr.rel (%p202) target = $region24
      $region23: #{mlp_forward.1} parent=11 // pred_region
        %s205 = smul.u32 16, %s21
        %p206 = scmp.lt.s32.totalorder %s205, 15
        %s207 = scalar_select %p206, %s205, 15
        %s208 = smul.addr %s207, 4
        %s209 = scalar_lea.vmem %s3, %s208
        %s210 = smul.u32 16, %s21
      $region24: #{mlp_forward.1} parent=11 // pred_fallthru
        _
      // Predicated region
      $region25: #{mlp_forward.1} parent=11 // pred_check
        %p211 = pneg %p148
      $region26: #{mlp_forward.1} parent=11 // pred_check_branch
        %213 = sbr.rel (%p211) target = $region28
      $region27: #{mlp_forward.1} parent=11 // pred_region
        _
      $region28: #{mlp_forward.1} parent=11 // pred_fallthru
        _
    $region12: #{mlp_forward.1} parent=5 // pred_fallthru
      _
    %p214 = scmp.lt.s32.totalorder %s11, 2
    // Predicated region
    $region29: #{mlp_forward.1} parent=5 // pred_check
      %p215 = pneg %p214
    $region30: #{mlp_forward.1} parent=5 // pred_check_branch
      %217 = sbr.rel (%p215) target = $region32
    $region31: #{mlp_forward.1} parent=5 // pred_region
      // Predicated region
      $region33: #{mlp_forward.1} parent=31 // pred_check
        %p218 = pneg %p43
      $region34: #{mlp_forward.1} parent=31 // pred_check_branch
        %220 = sbr.rel (%p218) target = $region36
      $region35: #{mlp_forward.1} parent=31 // pred_region
        %s221 = smul.u32 128, %s18
        %p222 = scmp.lt.s32.totalorder %s221, 255
        %s223 = scalar_select %p222, %s221, 255
        %s224 = smul.addr %s223, 4
        %s225 = scalar_lea.vmem %s0, %s224
        %s226 = smul.u32 128, %s18
      $region36: #{mlp_forward.1} parent=31 // pred_fallthru
        _
    $region32: #{mlp_forward.1} parent=5 // pred_fallthru
      _
    %p227 = scmp.le.s32.totalorder 1, %s11
    %p228 = scmp.lt.s32.totalorder %s11, 3
    %p229 = pnand %p227, %p228
    %p230 = pneg %p229
    // Predicated region
    $region37: #{mlp_forward.1} parent=5 // pred_check
      _
    $region38: #{mlp_forward.1} parent=5 // pred_check_branch
      %232 = sbr.rel (%p229) target = $region40
    $region39: #{mlp_forward.1} parent=5 // pred_region
      %s233 = ssub.s32 %s11, 1
      %s234 = smul.u32 128, %s20
      %p235 = scmp.lt.s32.totalorder %s234, 255
      %s236 = scalar_select %p235, %s234, 255
      %s237 = smul.addr %s236, 4
      %s238 = scalar_lea.vmem %s0, %s237
      %p239 = pneg %p49
      %p240 = pneg %p46
      %p241 = scmp.lt.s32.totalorder %s21, 0
      %s242 = scalar_select %p241, %s21, 0
      %s243 = smul.addr %s242, 4
      %s244 = scalar_lea.vmem %s1, %s243
      %p245 = pneg %p75
      %p246 = pneg %p72
      %p247 = scmp.lt.s32.totalorder %s21, 0
      %s248 = scalar_select %p247, %s21, 0
      %s249 = scalar_lea.vmem %s2, %s248
      %p250 = pneg %p101
      %p251 = pneg %p98
      %s252 = smul.u32 16, %s21
      %p253 = scmp.lt.s32.totalorder %s252, 15
      %s254 = scalar_select %p253, %s252, 15
      %s255 = smul.addr %s254, 4
      %s256 = scalar_lea.vmem %s3, %s255
      %p257 = pneg %p127
      %p258 = pneg %p124
      %p259 = pneg %p148
      %p260 = pneg %p145
      %p261 = pneg %p174
      %p262 = pneg %p171
      %s263 = smul.u32 128, %s20
      %p264 = scmp.lt.s32.totalorder %s263, 255
      %s265 = scalar_select %p264, %s263, 255
      %s266 = smul.addr %s265, 8
      %s267 = scalar_lea.vmem %s5, %s266
      %s268 = smul.u32 128, %s20
      %p269 = scmp.lt.s32.totalorder %s268, 255
      %s270 = scalar_select %p269, %s268, 255
      %s271 = smul.addr %s270, 4
      %s272 = scalar_lea.vmem %s0, %s271
      %s273 = smul.u32 128, %s20
      %p274 = scmp.lt.s32.totalorder %s21, 0
      %s275 = scalar_select %p274, %s21, 0
      %s276 = smul.addr %s275, 4
      %s277 = scalar_lea.vmem %s1, %s276
      %p278 = scmp.lt.s32.totalorder %s21, 0
      %s279 = scalar_select %p278, %s21, 0
      %s280 = scalar_lea.vmem %s2, %s279
      %s281 = smul.u32 16, %s21
      %p282 = scmp.lt.s32.totalorder %s281, 15
      %s283 = scalar_select %p282, %s281, 15
      %s284 = smul.addr %s283, 4
      %s285 = scalar_lea.vmem %s3, %s284
      %s286 = smul.u32 16, %s21
      %s287 = smul.u32 128, %s20
      %p288 = scmp.lt.s32.totalorder %s287, 255
      %s289 = scalar_select %p288, %s287, 255
      %s290 = smul.addr %s289, 8
      %s291 = scalar_lea.vmem %s5, %s290
      %s292 = smul.u32 128, %s20
      %p294 = scmp.eq.s32.totalorder %s21, 0
      // Predicated region
      $region41: #{mlp_forward.1} parent=39 // pred_check
        %p295 = pneg %p294
      $region42: #{mlp_forward.1} parent=39 // pred_check_branch
        %297 = sbr.rel (%p295) target = $region44
      $region43: #{mlp_forward.1} parent=39 // pred_region
        %vm298 = vcmask 261120
        %299 = vst.msk [vmem:[#allocation2] sm:$0xff] %vm298, 0.0
        %300 = vst.msk [vmem:[#allocation2 + $0x8] sm:$0xff] %vm298, 0.0
        %301 = vst.msk [vmem:[#allocation2 + $0x10] sm:$0xff] %vm298, 0.0
        %302 = vst.msk [vmem:[#allocation2 + $0x18] sm:$0xff] %vm298, 0.0
        %303 = vst.msk [vmem:[#allocation2 + $0x20] sm:$0xff] %vm298, 0.0
        %304 = vst.msk [vmem:[#allocation2 + $0x28] sm:$0xff] %vm298, 0.0
        %305 = vst.msk [vmem:[#allocation2 + $0x30] sm:$0xff] %vm298, 0.0
        %306 = vst.msk [vmem:[#allocation2 + $0x38] sm:$0xff] %vm298, 0.0
        %307 = vst.msk [vmem:[#allocation2 + $0x40] sm:$0xff] %vm298, 0.0
        %308 = vst.msk [vmem:[#allocation2 + $0x48] sm:$0xff] %vm298, 0.0
        %309 = vst.msk [vmem:[#allocation2 + $0x50] sm:$0xff] %vm298, 0.0
        %310 = vst.msk [vmem:[#allocation2 + $0x58] sm:$0xff] %vm298, 0.0
        %311 = vst.msk [vmem:[#allocation2 + $0x60] sm:$0xff] %vm298, 0.0
        %312 = vst.msk [vmem:[#allocation2 + $0x68] sm:$0xff] %vm298, 0.0
        %313 = vst.msk [vmem:[#allocation2 + $0x70] sm:$0xff] %vm298, 0.0
        %314 = vst.msk [vmem:[#allocation2 + $0x78] sm:$0xff] %vm298, 0.0
        %315 = vst.msk [vmem:[#allocation2 + $0x80] sm:$0xff] %vm298, 0.0
        %316 = vst.msk [vmem:[#allocation2 + $0x88] sm:$0xff] %vm298, 0.0
        %317 = vst.msk [vmem:[#allocation2 + $0x90] sm:$0xff] %vm298, 0.0
        %318 = vst.msk [vmem:[#allocation2 + $0x98] sm:$0xff] %vm298, 0.0
        %319 = vst.msk [vmem:[#allocation2 + $0xa0] sm:$0xff] %vm298, 0.0
        %320 = vst.msk [vmem:[#allocation2 + $0xa8] sm:$0xff] %vm298, 0.0
        %321 = vst.msk [vmem:[#allocation2 + $0xb0] sm:$0xff] %vm298, 0.0
        %322 = vst.msk [vmem:[#allocation2 + $0xb8] sm:$0xff] %vm298, 0.0
        %323 = vst.msk [vmem:[#allocation2 + $0xc0] sm:$0xff] %vm298, 0.0
        %324 = vst.msk [vmem:[#allocation2 + $0xc8] sm:$0xff] %vm298, 0.0
        %325 = vst.msk [vmem:[#allocation2 + $0xd0] sm:$0xff] %vm298, 0.0
        %326 = vst.msk [vmem:[#allocation2 + $0xd8] sm:$0xff] %vm298, 0.0
        %327 = vst.msk [vmem:[#allocation2 + $0xe0] sm:$0xff] %vm298, 0.0
        %328 = vst.msk [vmem:[#allocation2 + $0xe8] sm:$0xff] %vm298, 0.0
        %329 = vst.msk [vmem:[#allocation2 + $0xf0] sm:$0xff] %vm298, 0.0
        %330 = vst.msk [vmem:[#allocation2 + $0xf8] sm:$0xff] %vm298, 0.0
        %331 = vst.msk [vmem:[#allocation2 + $0x100] sm:$0xff] %vm298, 0.0
        %332 = vst.msk [vmem:[#allocation2 + $0x108] sm:$0xff] %vm298, 0.0
        %333 = vst.msk [vmem:[#allocation2 + $0x110] sm:$0xff] %vm298, 0.0
        %334 = vst.msk [vmem:[#allocation2 + $0x118] sm:$0xff] %vm298, 0.0
        %335 = vst.msk [vmem:[#allocation2 + $0x120] sm:$0xff] %vm298, 0.0
        %336 = vst.msk [vmem:[#allocation2 + $0x128] sm:$0xff] %vm298, 0.0
        %337 = vst.msk [vmem:[#allocation2 + $0x130] sm:$0xff] %vm298, 0.0
        %338 = vst.msk [vmem:[#allocation2 + $0x138] sm:$0xff] %vm298, 0.0
        %339 = vst.msk [vmem:[#allocation2 + $0x140] sm:$0xff] %vm298, 0.0
        %340 = vst.msk [vmem:[#allocation2 + $0x148] sm:$0xff] %vm298, 0.0
        %341 = vst.msk [vmem:[#allocation2 + $0x150] sm:$0xff] %vm298, 0.0
        %342 = vst.msk [vmem:[#allocation2 + $0x158] sm:$0xff] %vm298, 0.0
        %343 = vst.msk [vmem:[#allocation2 + $0x160] sm:$0xff] %vm298, 0.0
        %344 = vst.msk [vmem:[#allocation2 + $0x168] sm:$0xff] %vm298, 0.0
        %345 = vst.msk [vmem:[#allocation2 + $0x170] sm:$0xff] %vm298, 0.0
        %346 = vst.msk [vmem:[#allocation2 + $0x178] sm:$0xff] %vm298, 0.0
        %347 = vst.msk [vmem:[#allocation2 + $0x180] sm:$0xff] %vm298, 0.0
        %348 = vst.msk [vmem:[#allocation2 + $0x188] sm:$0xff] %vm298, 0.0
        %349 = vst.msk [vmem:[#allocation2 + $0x190] sm:$0xff] %vm298, 0.0
        %350 = vst.msk [vmem:[#allocation2 + $0x198] sm:$0xff] %vm298, 0.0
        %351 = vst.msk [vmem:[#allocation2 + $0x1a0] sm:$0xff] %vm298, 0.0
        %352 = vst.msk [vmem:[#allocation2 + $0x1a8] sm:$0xff] %vm298, 0.0
        %353 = vst.msk [vmem:[#allocation2 + $0x1b0] sm:$0xff] %vm298, 0.0
        %354 = vst.msk [vmem:[#allocation2 + $0x1b8] sm:$0xff] %vm298, 0.0
        %355 = vst.msk [vmem:[#allocation2 + $0x1c0] sm:$0xff] %vm298, 0.0
        %356 = vst.msk [vmem:[#allocation2 + $0x1c8] sm:$0xff] %vm298, 0.0
        %357 = vst.msk [vmem:[#allocation2 + $0x1d0] sm:$0xff] %vm298, 0.0
        %358 = vst.msk [vmem:[#allocation2 + $0x1d8] sm:$0xff] %vm298, 0.0
        %359 = vst.msk [vmem:[#allocation2 + $0x1e0] sm:$0xff] %vm298, 0.0
        %360 = vst.msk [vmem:[#allocation2 + $0x1e8] sm:$0xff] %vm298, 0.0
        %361 = vst.msk [vmem:[#allocation2 + $0x1f0] sm:$0xff] %vm298, 0.0
        %362 = vst.msk [vmem:[#allocation2 + $0x1f8] sm:$0xff] %vm298, 0.0
        %363 = vst.msk [vmem:[#allocation2 + $0x200] sm:$0xff] %vm298, 0.0
        %364 = vst.msk [vmem:[#allocation2 + $0x208] sm:$0xff] %vm298, 0.0
        %365 = vst.msk [vmem:[#allocation2 + $0x210] sm:$0xff] %vm298, 0.0
        %366 = vst.msk [vmem:[#allocation2 + $0x218] sm:$0xff] %vm298, 0.0
        %367 = vst.msk [vmem:[#allocation2 + $0x220] sm:$0xff] %vm298, 0.0
        %368 = vst.msk [vmem:[#allocation2 + $0x228] sm:$0xff] %vm298, 0.0
        %369 = vst.msk [vmem:[#allocation2 + $0x230] sm:$0xff] %vm298, 0.0
        %370 = vst.msk [vmem:[#allocation2 + $0x238] sm:$0xff] %vm298, 0.0
        %371 = vst.msk [vmem:[#allocation2 + $0x240] sm:$0xff] %vm298, 0.0
        %372 = vst.msk [vmem:[#allocation2 + $0x248] sm:$0xff] %vm298, 0.0
        %373 = vst.msk [vmem:[#allocation2 + $0x250] sm:$0xff] %vm298, 0.0
        %374 = vst.msk [vmem:[#allocation2 + $0x258] sm:$0xff] %vm298, 0.0
        %375 = vst.msk [vmem:[#allocation2 + $0x260] sm:$0xff] %vm298, 0.0
        %376 = vst.msk [vmem:[#allocation2 + $0x268] sm:$0xff] %vm298, 0.0
        %377 = vst.msk [vmem:[#allocation2 + $0x270] sm:$0xff] %vm298, 0.0
        %378 = vst.msk [vmem:[#allocation2 + $0x278] sm:$0xff] %vm298, 0.0
        %379 = vst.msk [vmem:[#allocation2 + $0x280] sm:$0xff] %vm298, 0.0
        %380 = vst.msk [vmem:[#allocation2 + $0x288] sm:$0xff] %vm298, 0.0
        %381 = vst.msk [vmem:[#allocation2 + $0x290] sm:$0xff] %vm298, 0.0
        %382 = vst.msk [vmem:[#allocation2 + $0x298] sm:$0xff] %vm298, 0.0
        %383 = vst.msk [vmem:[#allocation2 + $0x2a0] sm:$0xff] %vm298, 0.0
        %384 = vst.msk [vmem:[#allocation2 + $0x2a8] sm:$0xff] %vm298, 0.0
        %385 = vst.msk [vmem:[#allocation2 + $0x2b0] sm:$0xff] %vm298, 0.0
        %386 = vst.msk [vmem:[#allocation2 + $0x2b8] sm:$0xff] %vm298, 0.0
        %387 = vst.msk [vmem:[#allocation2 + $0x2c0] sm:$0xff] %vm298, 0.0
        %388 = vst.msk [vmem:[#allocation2 + $0x2c8] sm:$0xff] %vm298, 0.0
        %389 = vst.msk [vmem:[#allocation2 + $0x2d0] sm:$0xff] %vm298, 0.0
        %390 = vst.msk [vmem:[#allocation2 + $0x2d8] sm:$0xff] %vm298, 0.0
        %391 = vst.msk [vmem:[#allocation2 + $0x2e0] sm:$0xff] %vm298, 0.0
        %392 = vst.msk [vmem:[#allocation2 + $0x2e8] sm:$0xff] %vm298, 0.0
        %393 = vst.msk [vmem:[#allocation2 + $0x2f0] sm:$0xff] %vm298, 0.0
        %394 = vst.msk [vmem:[#allocation2 + $0x2f8] sm:$0xff] %vm298, 0.0
        %395 = vst.msk [vmem:[#allocation2 + $0x300] sm:$0xff] %vm298, 0.0
        %396 = vst.msk [vmem:[#allocation2 + $0x308] sm:$0xff] %vm298, 0.0
        %397 = vst.msk [vmem:[#allocation2 + $0x310] sm:$0xff] %vm298, 0.0
        %398 = vst.msk [vmem:[#allocation2 + $0x318] sm:$0xff] %vm298, 0.0
        %399 = vst.msk [vmem:[#allocation2 + $0x320] sm:$0xff] %vm298, 0.0
        %400 = vst.msk [vmem:[#allocation2 + $0x328] sm:$0xff] %vm298, 0.0
        %401 = vst.msk [vmem:[#allocation2 + $0x330] sm:$0xff] %vm298, 0.0
        %402 = vst.msk [vmem:[#allocation2 + $0x338] sm:$0xff] %vm298, 0.0
        %403 = vst.msk [vmem:[#allocation2 + $0x340] sm:$0xff] %vm298, 0.0
        %404 = vst.msk [vmem:[#allocation2 + $0x348] sm:$0xff] %vm298, 0.0
        %405 = vst.msk [vmem:[#allocation2 + $0x350] sm:$0xff] %vm298, 0.0
        %406 = vst.msk [vmem:[#allocation2 + $0x358] sm:$0xff] %vm298, 0.0
        %407 = vst.msk [vmem:[#allocation2 + $0x360] sm:$0xff] %vm298, 0.0
        %408 = vst.msk [vmem:[#allocation2 + $0x368] sm:$0xff] %vm298, 0.0
        %409 = vst.msk [vmem:[#allocation2 + $0x370] sm:$0xff] %vm298, 0.0
        %410 = vst.msk [vmem:[#allocation2 + $0x378] sm:$0xff] %vm298, 0.0
        %411 = vst.msk [vmem:[#allocation2 + $0x380] sm:$0xff] %vm298, 0.0
        %412 = vst.msk [vmem:[#allocation2 + $0x388] sm:$0xff] %vm298, 0.0
        %413 = vst.msk [vmem:[#allocation2 + $0x390] sm:$0xff] %vm298, 0.0
        %414 = vst.msk [vmem:[#allocation2 + $0x398] sm:$0xff] %vm298, 0.0
        %415 = vst.msk [vmem:[#allocation2 + $0x3a0] sm:$0xff] %vm298, 0.0
        %416 = vst.msk [vmem:[#allocation2 + $0x3a8] sm:$0xff] %vm298, 0.0
        %417 = vst.msk [vmem:[#allocation2 + $0x3b0] sm:$0xff] %vm298, 0.0
        %418 = vst.msk [vmem:[#allocation2 + $0x3b8] sm:$0xff] %vm298, 0.0
        %419 = vst.msk [vmem:[#allocation2 + $0x3c0] sm:$0xff] %vm298, 0.0
        %420 = vst.msk [vmem:[#allocation2 + $0x3c8] sm:$0xff] %vm298, 0.0
        %421 = vst.msk [vmem:[#allocation2 + $0x3d0] sm:$0xff] %vm298, 0.0
        %422 = vst.msk [vmem:[#allocation2 + $0x3d8] sm:$0xff] %vm298, 0.0
        %423 = vst.msk [vmem:[#allocation2 + $0x3e0] sm:$0xff] %vm298, 0.0
        %424 = vst.msk [vmem:[#allocation2 + $0x3e8] sm:$0xff] %vm298, 0.0
        %425 = vst.msk [vmem:[#allocation2 + $0x3f0] sm:$0xff] %vm298, 0.0
        %426 = vst.msk [vmem:[#allocation2 + $0x3f8] sm:$0xff] %vm298, 0.0
      $region44: #{mlp_forward.1} parent=39 // pred_fallthru
        _
      %v427 = vld [vmem:[%s272] sm:$0xf]
      %v428 = vld [vmem:[%s272 + $0x4] sm:$0xf]
      %v429 = vld [vmem:[%s272 + $0x8] sm:$0xf]
      %v430 = vld [vmem:[%s272 + $0xc] sm:$0xf]
      %v431 = vld [vmem:[%s272 + $0x10] sm:$0xf]
      %v432 = vld [vmem:[%s272 + $0x14] sm:$0xf]
      %v433 = vld [vmem:[%s272 + $0x18] sm:$0xf]
      %v434 = vld [vmem:[%s272 + $0x1c] sm:$0xf]
      %v435 = vld [vmem:[%s272 + $0x20] sm:$0xf]
      %v436 = vld [vmem:[%s272 + $0x24] sm:$0xf]
      %v437 = vld [vmem:[%s272 + $0x28] sm:$0xf]
      %v438 = vld [vmem:[%s272 + $0x2c] sm:$0xf]
      %v439 = vld [vmem:[%s272 + $0x30] sm:$0xf]
      %v440 = vld [vmem:[%s272 + $0x34] sm:$0xf]
      %v441 = vld [vmem:[%s272 + $0x38] sm:$0xf]
      %v442 = vld [vmem:[%s272 + $0x3c] sm:$0xf]
      %v443 = vld [vmem:[%s272 + $0x40] sm:$0xf]
      %v444 = vld [vmem:[%s272 + $0x44] sm:$0xf]
      %v445 = vld [vmem:[%s272 + $0x48] sm:$0xf]
      %v446 = vld [vmem:[%s272 + $0x4c] sm:$0xf]
      %v447 = vld [vmem:[%s272 + $0x50] sm:$0xf]
      %v448 = vld [vmem:[%s272 + $0x54] sm:$0xf]
      %v449 = vld [vmem:[%s272 + $0x58] sm:$0xf]
      %v450 = vld [vmem:[%s272 + $0x5c] sm:$0xf]
      %v451 = vld [vmem:[%s272 + $0x60] sm:$0xf]
      %v452 = vld [vmem:[%s272 + $0x64] sm:$0xf]
      %v453 = vld [vmem:[%s272 + $0x68] sm:$0xf]
      %v454 = vld [vmem:[%s272 + $0x6c] sm:$0xf]
      %v455 = vld [vmem:[%s272 + $0x70] sm:$0xf]
      %v456 = vld [vmem:[%s272 + $0x74] sm:$0xf]
      %v457 = vld [vmem:[%s272 + $0x78] sm:$0xf]
      %v458 = vld [vmem:[%s272 + $0x7c] sm:$0xf]
      %v459 = vld [vmem:[%s272 + $0x80] sm:$0xf]
      %v460 = vld [vmem:[%s272 + $0x84] sm:$0xf]
      %v461 = vld [vmem:[%s272 + $0x88] sm:$0xf]
      %v462 = vld [vmem:[%s272 + $0x8c] sm:$0xf]
      %v463 = vld [vmem:[%s272 + $0x90] sm:$0xf]
      %v464 = vld [vmem:[%s272 + $0x94] sm:$0xf]
      %v465 = vld [vmem:[%s272 + $0x98] sm:$0xf]
      %v466 = vld [vmem:[%s272 + $0x9c] sm:$0xf]
      %v467 = vld [vmem:[%s272 + $0xa0] sm:$0xf]
      %v468 = vld [vmem:[%s272 + $0xa4] sm:$0xf]
      %v469 = vld [vmem:[%s272 + $0xa8] sm:$0xf]
      %v470 = vld [vmem:[%s272 + $0xac] sm:$0xf]
      %v471 = vld [vmem:[%s272 + $0xb0] sm:$0xf]
      %v472 = vld [vmem:[%s272 + $0xb4] sm:$0xf]
      %v473 = vld [vmem:[%s272 + $0xb8] sm:$0xf]
      %v474 = vld [vmem:[%s272 + $0xbc] sm:$0xf]
      %v475 = vld [vmem:[%s272 + $0xc0] sm:$0xf]
      %v476 = vld [vmem:[%s272 + $0xc4] sm:$0xf]
      %v477 = vld [vmem:[%s272 + $0xc8] sm:$0xf]
      %v478 = vld [vmem:[%s272 + $0xcc] sm:$0xf]
      %v479 = vld [vmem:[%s272 + $0xd0] sm:$0xf]
      %v480 = vld [vmem:[%s272 + $0xd4] sm:$0xf]
      %v481 = vld [vmem:[%s272 + $0xd8] sm:$0xf]
      %v482 = vld [vmem:[%s272 + $0xdc] sm:$0xf]
      %v483 = vld [vmem:[%s272 + $0xe0] sm:$0xf]
      %v484 = vld [vmem:[%s272 + $0xe4] sm:$0xf]
      %v485 = vld [vmem:[%s272 + $0xe8] sm:$0xf]
      %v486 = vld [vmem:[%s272 + $0xec] sm:$0xf]
      %v487 = vld [vmem:[%s272 + $0xf0] sm:$0xf]
      %v488 = vld [vmem:[%s272 + $0xf4] sm:$0xf]
      %v489 = vld [vmem:[%s272 + $0xf8] sm:$0xf]
      %v490 = vld [vmem:[%s272 + $0xfc] sm:$0xf]
      %v491 = vld [vmem:[%s272 + $0x100] sm:$0xf]
      %v492 = vld [vmem:[%s272 + $0x104] sm:$0xf]
      %v493 = vld [vmem:[%s272 + $0x108] sm:$0xf]
      %v494 = vld [vmem:[%s272 + $0x10c] sm:$0xf]
      %v495 = vld [vmem:[%s272 + $0x110] sm:$0xf]
      %v496 = vld [vmem:[%s272 + $0x114] sm:$0xf]
      %v497 = vld [vmem:[%s272 + $0x118] sm:$0xf]
      %v498 = vld [vmem:[%s272 + $0x11c] sm:$0xf]
      %v499 = vld [vmem:[%s272 + $0x120] sm:$0xf]
      %v500 = vld [vmem:[%s272 + $0x124] sm:$0xf]
      %v501 = vld [vmem:[%s272 + $0x128] sm:$0xf]
      %v502 = vld [vmem:[%s272 + $0x12c] sm:$0xf]
      %v503 = vld [vmem:[%s272 + $0x130] sm:$0xf]
      %v504 = vld [vmem:[%s272 + $0x134] sm:$0xf]
      %v505 = vld [vmem:[%s272 + $0x138] sm:$0xf]
      %v506 = vld [vmem:[%s272 + $0x13c] sm:$0xf]
      %v507 = vld [vmem:[%s272 + $0x140] sm:$0xf]
      %v508 = vld [vmem:[%s272 + $0x144] sm:$0xf]
      %v509 = vld [vmem:[%s272 + $0x148] sm:$0xf]
      %v510 = vld [vmem:[%s272 + $0x14c] sm:$0xf]
      %v511 = vld [vmem:[%s272 + $0x150] sm:$0xf]
      %v512 = vld [vmem:[%s272 + $0x154] sm:$0xf]
      %v513 = vld [vmem:[%s272 + $0x158] sm:$0xf]
      %v514 = vld [vmem:[%s272 + $0x15c] sm:$0xf]
      %v515 = vld [vmem:[%s272 + $0x160] sm:$0xf]
      %v516 = vld [vmem:[%s272 + $0x164] sm:$0xf]
      %v517 = vld [vmem:[%s272 + $0x168] sm:$0xf]
      %v518 = vld [vmem:[%s272 + $0x16c] sm:$0xf]
      %v519 = vld [vmem:[%s272 + $0x170] sm:$0xf]
      %v520 = vld [vmem:[%s272 + $0x174] sm:$0xf]
      %v521 = vld [vmem:[%s272 + $0x178] sm:$0xf]
      %v522 = vld [vmem:[%s272 + $0x17c] sm:$0xf]
      %v523 = vld [vmem:[%s272 + $0x180] sm:$0xf]
      %v524 = vld [vmem:[%s272 + $0x184] sm:$0xf]
      %v525 = vld [vmem:[%s272 + $0x188] sm:$0xf]
      %v526 = vld [vmem:[%s272 + $0x18c] sm:$0xf]
      %v527 = vld [vmem:[%s272 + $0x190] sm:$0xf]
      %v528 = vld [vmem:[%s272 + $0x194] sm:$0xf]
      %v529 = vld [vmem:[%s272 + $0x198] sm:$0xf]
      %v530 = vld [vmem:[%s272 + $0x19c] sm:$0xf]
      %v531 = vld [vmem:[%s272 + $0x1a0] sm:$0xf]
      %v532 = vld [vmem:[%s272 + $0x1a4] sm:$0xf]
      %v533 = vld [vmem:[%s272 + $0x1a8] sm:$0xf]
      %v534 = vld [vmem:[%s272 + $0x1ac] sm:$0xf]
      %v535 = vld [vmem:[%s272 + $0x1b0] sm:$0xf]
      %v536 = vld [vmem:[%s272 + $0x1b4] sm:$0xf]
      %v537 = vld [vmem:[%s272 + $0x1b8] sm:$0xf]
      %v538 = vld [vmem:[%s272 + $0x1bc] sm:$0xf]
      %v539 = vld [vmem:[%s272 + $0x1c0] sm:$0xf]
      %v540 = vld [vmem:[%s272 + $0x1c4] sm:$0xf]
      %v541 = vld [vmem:[%s272 + $0x1c8] sm:$0xf]
      %v542 = vld [vmem:[%s272 + $0x1cc] sm:$0xf]
      %v543 = vld [vmem:[%s272 + $0x1d0] sm:$0xf]
      %v544 = vld [vmem:[%s272 + $0x1d4] sm:$0xf]
      %v545 = vld [vmem:[%s272 + $0x1d8] sm:$0xf]
      %v546 = vld [vmem:[%s272 + $0x1dc] sm:$0xf]
      %v547 = vld [vmem:[%s272 + $0x1e0] sm:$0xf]
      %v548 = vld [vmem:[%s272 + $0x1e4] sm:$0xf]
      %v549 = vld [vmem:[%s272 + $0x1e8] sm:$0xf]
      %v550 = vld [vmem:[%s272 + $0x1ec] sm:$0xf]
      %v551 = vld [vmem:[%s272 + $0x1f0] sm:$0xf]
      %v552 = vld [vmem:[%s272 + $0x1f4] sm:$0xf]
      %v553 = vld [vmem:[%s272 + $0x1f8] sm:$0xf]
      %v554 = vld [vmem:[%s272 + $0x1fc] sm:$0xf]
      %v555 = vld [vmem:[%s277] sm:$0xf]
      %v556 = vld [vmem:[%s277 + $0x4] sm:$0xf]
      %v557 = vld [vmem:[%s277 + $0x8] sm:$0xf]
      %v558 = vld [vmem:[%s277 + $0xc] sm:$0xf]
      %v559 = vld [vmem:[%s280] sm:$0x1]
      %v561 = vlaneseq
      %v562 = vshrl.u32 %v561, 7
      %v563 = vsub.s32 0, %v562
      %v564 = vrot.slane %v559, %v563
      %v694 = vunpack.c.l.b16 %v427
      %v695 = vunpack.c.l.b16 %v428
      %v696 = vunpack.c.l.b16 %v429
      %v697 = vunpack.c.l.b16 %v430
      %v698 = vunpack.c.l.b16 %v431
      %v699 = vunpack.c.l.b16 %v432
      %v700 = vunpack.c.l.b16 %v433
      %v701 = vunpack.c.l.b16 %v434
      %v702 = vunpack.c.l.b16 %v435
      %v703 = vunpack.c.l.b16 %v436
      %v704 = vunpack.c.l.b16 %v437
      %v705 = vunpack.c.l.b16 %v438
      %v706 = vunpack.c.l.b16 %v439
      %v707 = vunpack.c.l.b16 %v440
      %v708 = vunpack.c.l.b16 %v441
      %v709 = vunpack.c.l.b16 %v442
      %v710 = vunpack.c.l.b16 %v443
      %v711 = vunpack.c.l.b16 %v444
      %v712 = vunpack.c.l.b16 %v445
      %v713 = vunpack.c.l.b16 %v446
      %v714 = vunpack.c.l.b16 %v447
      %v715 = vunpack.c.l.b16 %v448
      %v716 = vunpack.c.l.b16 %v449
      %v717 = vunpack.c.l.b16 %v450
      %v718 = vunpack.c.l.b16 %v451
      %v719 = vunpack.c.l.b16 %v452
      %v720 = vunpack.c.l.b16 %v453
      %v721 = vunpack.c.l.b16 %v454
      %v722 = vunpack.c.l.b16 %v455
      %v723 = vunpack.c.l.b16 %v456
      %v724 = vunpack.c.l.b16 %v457
      %v725 = vunpack.c.l.b16 %v458
      %v726 = vunpack.c.l.b16 %v459
      %v727 = vunpack.c.l.b16 %v460
      %v728 = vunpack.c.l.b16 %v461
      %v729 = vunpack.c.l.b16 %v462
      %v730 = vunpack.c.l.b16 %v463
      %v731 = vunpack.c.l.b16 %v464
      %v732 = vunpack.c.l.b16 %v465
      %v733 = vunpack.c.l.b16 %v466
      %v734 = vunpack.c.l.b16 %v467
      %v735 = vunpack.c.l.b16 %v468
      %v736 = vunpack.c.l.b16 %v469
      %v737 = vunpack.c.l.b16 %v470
      %v738 = vunpack.c.l.b16 %v471
      %v739 = vunpack.c.l.b16 %v472
      %v740 = vunpack.c.l.b16 %v473
      %v741 = vunpack.c.l.b16 %v474
      %v742 = vunpack.c.l.b16 %v475
      %v743 = vunpack.c.l.b16 %v476
      %v744 = vunpack.c.l.b16 %v477
      %v745 = vunpack.c.l.b16 %v478
      %v746 = vunpack.c.l.b16 %v479
      %v747 = vunpack.c.l.b16 %v480
      %v748 = vunpack.c.l.b16 %v481
      %v749 = vunpack.c.l.b16 %v482
      %v750 = vunpack.c.l.b16 %v483
      %v751 = vunpack.c.l.b16 %v484
      %v752 = vunpack.c.l.b16 %v485
      %v753 = vunpack.c.l.b16 %v486
      %v754 = vunpack.c.l.b16 %v487
      %v755 = vunpack.c.l.b16 %v488
      %v756 = vunpack.c.l.b16 %v489
      %v757 = vunpack.c.l.b16 %v490
      %v758 = vunpack.c.l.b16 %v491
      %v759 = vunpack.c.l.b16 %v492
      %v760 = vunpack.c.l.b16 %v493
      %v761 = vunpack.c.l.b16 %v494
      %v762 = vunpack.c.l.b16 %v495
      %v763 = vunpack.c.l.b16 %v496
      %v764 = vunpack.c.l.b16 %v497
      %v765 = vunpack.c.l.b16 %v498
      %v766 = vunpack.c.l.b16 %v499
      %v767 = vunpack.c.l.b16 %v500
      %v768 = vunpack.c.l.b16 %v501
      %v769 = vunpack.c.l.b16 %v502
      %v770 = vunpack.c.l.b16 %v503
      %v771 = vunpack.c.l.b16 %v504
      %v772 = vunpack.c.l.b16 %v505
      %v773 = vunpack.c.l.b16 %v506
      %v774 = vunpack.c.l.b16 %v507
      %v775 = vunpack.c.l.b16 %v508
      %v776 = vunpack.c.l.b16 %v509
      %v777 = vunpack.c.l.b16 %v510
      %v778 = vunpack.c.l.b16 %v511
      %v779 = vunpack.c.l.b16 %v512
      %v780 = vunpack.c.l.b16 %v513
      %v781 = vunpack.c.l.b16 %v514
      %v782 = vunpack.c.l.b16 %v515
      %v783 = vunpack.c.l.b16 %v516
      %v784 = vunpack.c.l.b16 %v517
      %v785 = vunpack.c.l.b16 %v518
      %v786 = vunpack.c.l.b16 %v519
      %v787 = vunpack.c.l.b16 %v520
      %v788 = vunpack.c.l.b16 %v521
      %v789 = vunpack.c.l.b16 %v522
      %v790 = vunpack.c.l.b16 %v523
      %v791 = vunpack.c.l.b16 %v524
      %v792 = vunpack.c.l.b16 %v525
      %v793 = vunpack.c.l.b16 %v526
      %v794 = vunpack.c.l.b16 %v527
      %v795 = vunpack.c.l.b16 %v528
      %v796 = vunpack.c.l.b16 %v529
      %v797 = vunpack.c.l.b16 %v530
      %v798 = vunpack.c.l.b16 %v531
      %v799 = vunpack.c.l.b16 %v532
      %v800 = vunpack.c.l.b16 %v533
      %v801 = vunpack.c.l.b16 %v534
      %v802 = vunpack.c.l.b16 %v535
      %v803 = vunpack.c.l.b16 %v536
      %v804 = vunpack.c.l.b16 %v537
      %v805 = vunpack.c.l.b16 %v538
      %v806 = vunpack.c.l.b16 %v539
      %v807 = vunpack.c.l.b16 %v540
      %v808 = vunpack.c.l.b16 %v541
      %v809 = vunpack.c.l.b16 %v542
      %v810 = vunpack.c.l.b16 %v543
      %v811 = vunpack.c.l.b16 %v544
      %v812 = vunpack.c.l.b16 %v545
      %v813 = vunpack.c.l.b16 %v546
      %v814 = vunpack.c.l.b16 %v547
      %v815 = vunpack.c.l.b16 %v548
      %v816 = vunpack.c.l.b16 %v549
      %v817 = vunpack.c.l.b16 %v550
      %v818 = vunpack.c.l.b16 %v551
      %v819 = vunpack.c.l.b16 %v552
      %v820 = vunpack.c.l.b16 %v553
      %v821 = vunpack.c.l.b16 %v554
      %v822 = vpack.c.b16 %v695, %v694
      %v823 = vpack.c.b16 %v697, %v696
      %v824 = vpack.c.b16 %v699, %v698
      %v825 = vpack.c.b16 %v701, %v700
      %v826 = vpack.c.b16 %v703, %v702
      %v827 = vpack.c.b16 %v705, %v704
      %v828 = vpack.c.b16 %v707, %v706
      %v829 = vpack.c.b16 %v709, %v708
      %v830 = vpack.c.b16 %v711, %v710
      %v831 = vpack.c.b16 %v713, %v712
      %v832 = vpack.c.b16 %v715, %v714
      %v833 = vpack.c.b16 %v717, %v716
      %v834 = vpack.c.b16 %v719, %v718
      %v835 = vpack.c.b16 %v721, %v720
      %v836 = vpack.c.b16 %v723, %v722
      %v837 = vpack.c.b16 %v725, %v724
      %v838 = vpack.c.b16 %v727, %v726
      %v839 = vpack.c.b16 %v729, %v728
      %v840 = vpack.c.b16 %v731, %v730
      %v841 = vpack.c.b16 %v733, %v732
      %v842 = vpack.c.b16 %v735, %v734
      %v843 = vpack.c.b16 %v737, %v736
      %v844 = vpack.c.b16 %v739, %v738
      %v845 = vpack.c.b16 %v741, %v740
      %v846 = vpack.c.b16 %v743, %v742
      %v847 = vpack.c.b16 %v745, %v744
      %v848 = vpack.c.b16 %v747, %v746
      %v849 = vpack.c.b16 %v749, %v748
      %v850 = vpack.c.b16 %v751, %v750
      %v851 = vpack.c.b16 %v753, %v752
      %v852 = vpack.c.b16 %v755, %v754
      %v853 = vpack.c.b16 %v757, %v756
      %v854 = vpack.c.b16 %v759, %v758
      %v855 = vpack.c.b16 %v761, %v760
      %v856 = vpack.c.b16 %v763, %v762
      %v857 = vpack.c.b16 %v765, %v764
      %v858 = vpack.c.b16 %v767, %v766
      %v859 = vpack.c.b16 %v769, %v768
      %v860 = vpack.c.b16 %v771, %v770
      %v861 = vpack.c.b16 %v773, %v772
      %v862 = vpack.c.b16 %v775, %v774
      %v863 = vpack.c.b16 %v777, %v776
      %v864 = vpack.c.b16 %v779, %v778
      %v865 = vpack.c.b16 %v781, %v780
      %v866 = vpack.c.b16 %v783, %v782
      %v867 = vpack.c.b16 %v785, %v784
      %v868 = vpack.c.b16 %v787, %v786
      %v869 = vpack.c.b16 %v789, %v788
      %v870 = vpack.c.b16 %v791, %v790
      %v871 = vpack.c.b16 %v793, %v792
      %v872 = vpack.c.b16 %v795, %v794
      %v873 = vpack.c.b16 %v797, %v796
      %v874 = vpack.c.b16 %v799, %v798
      %v875 = vpack.c.b16 %v801, %v800
      %v876 = vpack.c.b16 %v803, %v802
      %v877 = vpack.c.b16 %v805, %v804
      %v878 = vpack.c.b16 %v807, %v806
      %v879 = vpack.c.b16 %v809, %v808
      %v880 = vpack.c.b16 %v811, %v810
      %v881 = vpack.c.b16 %v813, %v812
      %v882 = vpack.c.b16 %v815, %v814
      %v883 = vpack.c.b16 %v817, %v816
      %v884 = vpack.c.b16 %v819, %v818
      %v885 = vpack.c.b16 %v821, %v820
      %v890 = vunpack.c.l.b16 %v555
      %v891 = vunpack.c.l.b16 %v556
      %v892 = vunpack.c.l.b16 %v557
      %v893 = vunpack.c.l.b16 %v558
      %v894 = vpack.c.b16 %v891, %v890
      %v895 = vpack.c.b16 %v893, %v892
      %vm898 = vcmask 261120
      %v900 = vsel %vm898, %v822, 0
      %v903 = vsel %vm898, %v823, 0
      %v906 = vsel %vm898, %v824, 0
      %v909 = vsel %vm898, %v825, 0
      %v912 = vsel %vm898, %v826, 0
      %v915 = vsel %vm898, %v827, 0
      %v918 = vsel %vm898, %v828, 0
      %v921 = vsel %vm898, %v829, 0
      %v924 = vsel %vm898, %v830, 0
      %v927 = vsel %vm898, %v831, 0
      %v930 = vsel %vm898, %v832, 0
      %v933 = vsel %vm898, %v833, 0
      %v936 = vsel %vm898, %v834, 0
      %v939 = vsel %vm898, %v835, 0
      %v942 = vsel %vm898, %v836, 0
      %v945 = vsel %vm898, %v837, 0
      %v948 = vsel %vm898, %v838, 0
      %v951 = vsel %vm898, %v839, 0
      %v954 = vsel %vm898, %v840, 0
      %v957 = vsel %vm898, %v841, 0
      %v960 = vsel %vm898, %v842, 0
      %v963 = vsel %vm898, %v843, 0
      %v966 = vsel %vm898, %v844, 0
      %v969 = vsel %vm898, %v845, 0
      %v972 = vsel %vm898, %v846, 0
      %v975 = vsel %vm898, %v847, 0
      %v978 = vsel %vm898, %v848, 0
      %v981 = vsel %vm898, %v849, 0
      %v984 = vsel %vm898, %v850, 0
      %v987 = vsel %vm898, %v851, 0
      %v990 = vsel %vm898, %v852, 0
      %v993 = vsel %vm898, %v853, 0
      %v996 = vsel %vm898, %v854, 0
      %v999 = vsel %vm898, %v855, 0
      %v1002 = vsel %vm898, %v856, 0
      %v1005 = vsel %vm898, %v857, 0
      %v1008 = vsel %vm898, %v858, 0
      %v1011 = vsel %vm898, %v859, 0
      %v1014 = vsel %vm898, %v860, 0
      %v1017 = vsel %vm898, %v861, 0
      %v1020 = vsel %vm898, %v862, 0
      %v1023 = vsel %vm898, %v863, 0
      %v1026 = vsel %vm898, %v864, 0
      %v1029 = vsel %vm898, %v865, 0
      %v1032 = vsel %vm898, %v866, 0
      %v1035 = vsel %vm898, %v867, 0
      %v1038 = vsel %vm898, %v868, 0
      %v1041 = vsel %vm898, %v869, 0
      %v1044 = vsel %vm898, %v870, 0
      %v1047 = vsel %vm898, %v871, 0
      %v1050 = vsel %vm898, %v872, 0
      %v1053 = vsel %vm898, %v873, 0
      %v1056 = vsel %vm898, %v874, 0
      %v1059 = vsel %vm898, %v875, 0
      %v1062 = vsel %vm898, %v876, 0
      %v1065 = vsel %vm898, %v877, 0
      %v1068 = vsel %vm898, %v878, 0
      %v1071 = vsel %vm898, %v879, 0
      %v1074 = vsel %vm898, %v880, 0
      %v1077 = vsel %vm898, %v881, 0
      %v1080 = vsel %vm898, %v882, 0
      %v1083 = vsel %vm898, %v883, 0
      %v1086 = vsel %vm898, %v884, 0
      %v1089 = vsel %vm898, %v885, 0
      %1091 = vmatprep.subr.bf16.mxu0 0
      %1092 = vmatpush1.bf16.msra.mxu0 %v894
      %1093 = vmatprep.subr.bf16.mxu0 0
      %1094 = vmatpush1.bf16.msra.mxu0 %v895
      %1095 = vmatprep.subr.bf16.mxu0 0
      %1096 = vmatpush1.bf16.msra.mxu0 0
      %1097 = vmatprep.subr.bf16.mxu0 0
      %1098 = vmatpush1.bf16.msra.mxu0 0
      %1099 = vmatprep.subr.bf16.mxu0 0
      %1100 = vmatpush1.bf16.msra.mxu0 0
      %1101 = vmatprep.subr.bf16.mxu0 0
      %1102 = vmatpush1.bf16.msra.mxu0 0
      %1103 = vmatprep.subr.bf16.mxu0 0
      %1104 = vmatpush1.bf16.msra.mxu0 0
      %1105 = vmatprep.subr.bf16.mxu0 0
      %1106 = vmatpush1.bf16.msra.mxu0 0
      %1107 = vmatprep.subr.bf16.mxu0 0
      %1108 = vmatpush1.bf16.msra.mxu0 0
      %1109 = vmatprep.subr.bf16.mxu0 0
      %1110 = vmatpush1.bf16.msra.mxu0 0
      %1111 = vmatprep.subr.bf16.mxu0 0
      %1112 = vmatpush1.bf16.msra.mxu0 0
      %1113 = vmatprep.subr.bf16.mxu0 0
      %1114 = vmatpush1.bf16.msra.mxu0 0
      %1115 = vmatprep.subr.bf16.mxu0 0
      %1116 = vmatpush1.bf16.msra.mxu0 0
      %1117 = vmatprep.subr.bf16.mxu0 0
      %1118 = vmatpush1.bf16.msra.mxu0 0
      %1119 = vmatprep.subr.bf16.mxu0 0
      %1120 = vmatpush1.bf16.msra.mxu0 0
      %1121 = vmatprep.subr.bf16.mxu0 0
      %1122 = vmatpush1.bf16.msra.mxu0 0
      %1123 = vmatprep.mubr.bf16.mxu0 0
      %1124 = vmatmul.mubr.bf16.gmra.mrb[0].mxu0 %v900
      %v1125 = vpop.f32.mrb[0].mxu0
      %v1126 = vadd.f32 %v564, %v1125
      %v1127 = vpop.f32.mrb[0].mxu0
      %v1128 = vpop.f32.mrb[0].mxu0
      %v1129 = vadd.f32 %v564, %v1128
      %v1130 = vpop.f32.mrb[0].mxu0
      %1131 = vmatprep.mubr.bf16.mxu0 0
      %1132 = vmatmul.mubr.bf16.gmra.mrb[0].mxu0 %v903
      %v1133 = vpop.f32.mrb[0].mxu0
      %v1134 = vadd.f32 %v564, %v1133
      %v1135 = vpop.f32.mrb[0].mxu0
      %v1136 = vpop.f32.mrb[0].mxu0
      %v1137 = vadd.f32 %v564, %v1136
      %v1138 = vpop.f32.mrb[0].mxu0
      %1139 = vmatprep.mubr.bf16.mxu0 0
      %1140 = vmatmul.mubr.bf16.gmra.mrb[0].mxu0 %v906
      %v1141 = vpop.f32.mrb[0].mxu0
      %v1142 = vadd.f32 %v564, %v1141
      %v1143 = vpop.f32.mrb[0].mxu0
      %v1144 = vpop.f32.mrb[0].mxu0
      %v1145 = vadd.f32 %v564, %v1144
      %v1146 = vpop.f32.mrb[0].mxu0
      %1147 = vmatprep.mubr.bf16.mxu0 0
      %1148 = vmatmul.mubr.bf16.gmra.mrb[0].mxu0 %v909
      %v1149 = vpop.f32.mrb[0].mxu0
      %v1150 = vadd.f32 %v564, %v1149
      %v1151 = vpop.f32.mrb[0].mxu0
      %v1152 = vpop.f32.mrb[0].mxu0
      %v1153 = vadd.f32 %v564, %v1152
      %v1154 = vpop.f32.mrb[0].mxu0
      %1155 = vmatprep.mubr.bf16.mxu0 0
      %1156 = vmatmul.mubr.bf16.gmra.mrb[0].mxu0 %v912
      %v1157 = vpop.f32.mrb[0].mxu0
      %v1158 = vadd.f32 %v564, %v1157
      %v1159 = vpop.f32.mrb[0].mxu0
      %v1160 = vpop.f32.mrb[0].mxu0
      %v1161 = vadd.f32 %v564, %v1160
      %v1162 = vpop.f32.mrb[0].mxu0
      %1163 = vmatprep.mubr.bf16.mxu0 0
      %1164 = vmatmul.mubr.bf16.gmra.mrb[0].mxu0 %v915
      %v1165 = vpop.f32.mrb[0].mxu0
      %v1166 = vadd.f32 %v564, %v1165
      %v1167 = vpop.f32.mrb[0].mxu0
      %v1168 = vpop.f32.mrb[0].mxu0
      %v1169 = vadd.f32 %v564, %v1168
      %v1170 = vpop.f32.mrb[0].mxu0
      %1171 = vmatprep.mubr.bf16.mxu0 0
      %1172 = vmatmul.mubr.bf16.gmra.mrb[0].mxu0 %v918
      %v1173 = vpop.f32.mrb[0].mxu0
      %v1174 = vadd.f32 %v564, %v1173
      %v1175 = vpop.f32.mrb[0].mxu0
      %v1176 = vpop.f32.mrb[0].mxu0
      %v1177 = vadd.f32 %v564, %v1176
      %v1178 = vpop.f32.mrb[0].mxu0
      %1179 = vmatprep.mubr.bf16.mxu0 0
      %1180 = vmatmul.mubr.bf16.gmra.mrb[0].mxu0 %v921
      %v1181 = vpop.f32.mrb[0].mxu0
      %v1182 = vadd.f32 %v564, %v1181
      %v1183 = vpop.f32.mrb[0].mxu0
      %v1184 = vpop.f32.mrb[0].mxu0
      %v1185 = vadd.f32 %v564, %v1184
      %v1186 = vpop.f32.mrb[0].mxu0
      %1187 = vmatprep.mubr.bf16.mxu0 0
      %1188 = vmatmul.mubr.bf16.gmra.mrb[0].mxu0 %v924
      %v1189 = vpop.f32.mrb[0].mxu0
      %v1190 = vadd.f32 %v564, %v1189
      %v1191 = vpop.f32.mrb[0].mxu0
      %v1192 = vpop.f32.mrb[0].mxu0
      %v1193 = vadd.f32 %v564, %v1192
      %v1194 = vpop.f32.mrb[0].mxu0
      %1195 = vmatprep.mubr.bf16.mxu0 0
      %1196 = vmatmul.mubr.bf16.gmra.mrb[0].mxu0 %v927
      %v1197 = vpop.f32.mrb[0].mxu0
      %v1198 = vadd.f32 %v564, %v1197
      %v1199 = vpop.f32.mrb[0].mxu0
      %v1200 = vpop.f32.mrb[0].mxu0
      %v1201 = vadd.f32 %v564, %v1200
      %v1202 = vpop.f32.mrb[0].mxu0
      %1203 = vmatprep.mubr.bf16.mxu0 0
      %1204 = vmatmul.mubr.bf16.gmra.mrb[0].mxu0 %v930
      %v1205 = vpop.f32.mrb[0].mxu0
      %v1206 = vadd.f32 %v564, %v1205
      %v1207 = vpop.f32.mrb[0].mxu0
      %v1208 = vpop.f32.mrb[0].mxu0
      %v1209 = vadd.f32 %v564, %v1208
      %v1210 = vpop.f32.mrb[0].mxu0
      %1211 = vmatprep.mubr.bf16.mxu0 0
      %1212 = vmatmul.mubr.bf16.gmra.mrb[0].mxu0 %v933
      %v1213 = vpop.f32.mrb[0].mxu0
      %v1214 = vadd.f32 %v564, %v1213
      %v1215 = vpop.f32.mrb[0].mxu0
      %v1216 = vpop.f32.mrb[0].mxu0
      %v1217 = vadd.f32 %v564, %v1216
      %v1218 = vpop.f32.mrb[0].mxu0
      %1219 = vmatprep.mubr.bf16.mxu0 0
      %1220 = vmatmul.mubr.bf16.gmra.mrb[0].mxu0 %v936
      %v1221 = vpop.f32.mrb[0].mxu0
      %v1222 = vadd.f32 %v564, %v1221
      %v1223 = vpop.f32.mrb[0].mxu0
      %v1224 = vpop.f32.mrb[0].mxu0
      %v1225 = vadd.f32 %v564, %v1224
      %v1226 = vpop.f32.mrb[0].mxu0
      %1227 = vmatprep.mubr.bf16.mxu0 0
      %1228 = vmatmul.mubr.bf16.gmra.mrb[0].mxu0 %v939
      %v1229 = vpop.f32.mrb[0].mxu0
      %v1230 = vadd.f32 %v564, %v1229
      %v1231 = vpop.f32.mrb[0].mxu0
      %v1232 = vpop.f32.mrb[0].mxu0
      %v1233 = vadd.f32 %v564, %v1232
      %v1234 = vpop.f32.mrb[0].mxu0
      %1235 = vmatprep.mubr.bf16.mxu0 0
      %1236 = vmatmul.mubr.bf16.gmra.mrb[0].mxu0 %v942
      %v1237 = vpop.f32.mrb[0].mxu0
      %v1238 = vadd.f32 %v564, %v1237
      %v1239 = vpop.f32.mrb[0].mxu0
      %v1240 = vpop.f32.mrb[0].mxu0
      %v1241 = vadd.f32 %v564, %v1240
      %v1242 = vpop.f32.mrb[0].mxu0
      %1243 = vmatprep.mubr.bf16.mxu0 0
      %1244 = vmatmul.mubr.bf16.gmra.mrb[0].mxu0 %v945
      %v1245 = vpop.f32.mrb[0].mxu0
      %v1246 = vadd.f32 %v564, %v1245
      %v1247 = vpop.f32.mrb[0].mxu0
      %v1248 = vpop.f32.mrb[0].mxu0
      %v1249 = vadd.f32 %v564, %v1248
      %v1250 = vpop.f32.mrb[0].mxu0
      %1251 = vmatprep.mubr.bf16.mxu0 0
      %1252 = vmatmul.mubr.bf16.gmra.mrb[0].mxu0 %v948
      %v1253 = vpop.f32.mrb[0].mxu0
      %v1254 = vadd.f32 %v564, %v1253
      %v1255 = vpop.f32.mrb[0].mxu0
      %v1256 = vpop.f32.mrb[0].mxu0
      %v1257 = vadd.f32 %v564, %v1256
      %v1258 = vpop.f32.mrb[0].mxu0
      %1259 = vmatprep.mubr.bf16.mxu0 0
      %1260 = vmatmul.mubr.bf16.gmra.mrb[0].mxu0 %v951
      %v1261 = vpop.f32.mrb[0].mxu0
      %v1262 = vadd.f32 %v564, %v1261
      %v1263 = vpop.f32.mrb[0].mxu0
      %v1264 = vpop.f32.mrb[0].mxu0
      %v1265 = vadd.f32 %v564, %v1264
      %v1266 = vpop.f32.mrb[0].mxu0
      %1267 = vmatprep.mubr.bf16.mxu0 0
      %1268 = vmatmul.mubr.bf16.gmra.mrb[0].mxu0 %v954
      %v1269 = vpop.f32.mrb[0].mxu0
      %v1270 = vadd.f32 %v564, %v1269
      %v1271 = vpop.f32.mrb[0].mxu0
      %v1272 = vpop.f32.mrb[0].mxu0
      %v1273 = vadd.f32 %v564, %v1272
      %v1274 = vpop.f32.mrb[0].mxu0
      %1275 = vmatprep.mubr.bf16.mxu0 0
      %1276 = vmatmul.mubr.bf16.gmra.mrb[0].mxu0 %v957
      %v1277 = vpop.f32.mrb[0].mxu0
      %v1278 = vadd.f32 %v564, %v1277
      %v1279 = vpop.f32.mrb[0].mxu0
      %v1280 = vpop.f32.mrb[0].mxu0
      %v1281 = vadd.f32 %v564, %v1280
      %v1282 = vpop.f32.mrb[0].mxu0
      %1283 = vmatprep.mubr.bf16.mxu0 0
      %1284 = vmatmul.mubr.bf16.gmra.mrb[0].mxu0 %v960
      %v1285 = vpop.f32.mrb[0].mxu0
      %v1286 = vadd.f32 %v564, %v1285
      %v1287 = vpop.f32.mrb[0].mxu0
      %v1288 = vpop.f32.mrb[0].mxu0
      %v1289 = vadd.f32 %v564, %v1288
      %v1290 = vpop.f32.mrb[0].mxu0
      %1291 = vmatprep.mubr.bf16.mxu0 0
      %1292 = vmatmul.mubr.bf16.gmra.mrb[0].mxu0 %v963
      %v1293 = vpop.f32.mrb[0].mxu0
      %v1294 = vadd.f32 %v564, %v1293
      %v1295 = vpop.f32.mrb[0].mxu0
      %v1296 = vpop.f32.mrb[0].mxu0
      %v1297 = vadd.f32 %v564, %v1296
      %v1298 = vpop.f32.mrb[0].mxu0
      %1299 = vmatprep.mubr.bf16.mxu0 0
      %1300 = vmatmul.mubr.bf16.gmra.mrb[0].mxu0 %v966
      %v1301 = vpop.f32.mrb[0].mxu0
      %v1302 = vadd.f32 %v564, %v1301
      %v1303 = vpop.f32.mrb[0].mxu0
      %v1304 = vpop.f32.mrb[0].mxu0
      %v1305 = vadd.f32 %v564, %v1304
      %v1306 = vpop.f32.mrb[0].mxu0
      %1307 = vmatprep.mubr.bf16.mxu0 0
      %1308 = vmatmul.mubr.bf16.gmra.mrb[0].mxu0 %v969
      %v1309 = vpop.f32.mrb[0].mxu0
      %v1310 = vadd.f32 %v564, %v1309
      %v1311 = vpop.f32.mrb[0].mxu0
      %v1312 = vpop.f32.mrb[0].mxu0
      %v1313 = vadd.f32 %v564, %v1312
      %v1314 = vpop.f32.mrb[0].mxu0
      %1315 = vmatprep.mubr.bf16.mxu0 0
      %1316 = vmatmul.mubr.bf16.gmra.mrb[0].mxu0 %v972
      %v1317 = vpop.f32.mrb[0].mxu0
      %v1318 = vadd.f32 %v564, %v1317
      %v1319 = vpop.f32.mrb[0].mxu0
      %v1320 = vpop.f32.mrb[0].mxu0
      %v1321 = vadd.f32 %v564, %v1320
      %v1322 = vpop.f32.mrb[0].mxu0
      %1323 = vmatprep.mubr.bf16.mxu0 0
      %1324 = vmatmul.mubr.bf16.gmra.mrb[0].mxu0 %v975
      %v1325 = vpop.f32.mrb[0].mxu0
      %v1326 = vadd.f32 %v564, %v1325
      %v1327 = vpop.f32.mrb[0].mxu0
      %v1328 = vpop.f32.mrb[0].mxu0
      %v1329 = vadd.f32 %v564, %v1328
      %v1330 = vpop.f32.mrb[0].mxu0
      %1331 = vmatprep.mubr.bf16.mxu0 0
      %1332 = vmatmul.mubr.bf16.gmra.mrb[0].mxu0 %v978
      %v1333 = vpop.f32.mrb[0].mxu0
      %v1334 = vadd.f32 %v564, %v1333
      %v1335 = vpop.f32.mrb[0].mxu0
      %v1336 = vpop.f32.mrb[0].mxu0
      %v1337 = vadd.f32 %v564, %v1336
      %v1338 = vpop.f32.mrb[0].mxu0
      %1339 = vmatprep.mubr.bf16.mxu0 0
      %1340 = vmatmul.mubr.bf16.gmra.mrb[0].mxu0 %v981
      %v1341 = vpop.f32.mrb[0].mxu0
      %v1342 = vadd.f32 %v564, %v1341
      %v1343 = vpop.f32.mrb[0].mxu0
      %v1344 = vpop.f32.mrb[0].mxu0
      %v1345 = vadd.f32 %v564, %v1344
      %v1346 = vpop.f32.mrb[0].mxu0
      %1347 = vmatprep.mubr.bf16.mxu0 0
      %1348 = vmatmul.mubr.bf16.gmra.mrb[0].mxu0 %v984
      %v1349 = vpop.f32.mrb[0].mxu0
      %v1350 = vadd.f32 %v564, %v1349
      %v1351 = vpop.f32.mrb[0].mxu0
      %v1352 = vpop.f32.mrb[0].mxu0
      %v1353 = vadd.f32 %v564, %v1352
      %v1354 = vpop.f32.mrb[0].mxu0
      %1355 = vmatprep.mubr.bf16.mxu0 0
      %1356 = vmatmul.mubr.bf16.gmra.mrb[0].mxu0 %v987
      %v1357 = vpop.f32.mrb[0].mxu0
      %v1358 = vadd.f32 %v564, %v1357
      %v1359 = vpop.f32.mrb[0].mxu0
      %v1360 = vpop.f32.mrb[0].mxu0
      %v1361 = vadd.f32 %v564, %v1360
      %v1362 = vpop.f32.mrb[0].mxu0
      %1363 = vmatprep.mubr.bf16.mxu0 0
      %1364 = vmatmul.mubr.bf16.gmra.mrb[0].mxu0 %v990
      %v1365 = vpop.f32.mrb[0].mxu0
      %v1366 = vadd.f32 %v564, %v1365
      %v1367 = vpop.f32.mrb[0].mxu0
      %v1368 = vpop.f32.mrb[0].mxu0
      %v1369 = vadd.f32 %v564, %v1368
      %v1370 = vpop.f32.mrb[0].mxu0
      %1371 = vmatprep.mubr.bf16.mxu0 0
      %1372 = vmatmul.mubr.bf16.gmra.mrb[0].mxu0 %v993
      %v1373 = vpop.f32.mrb[0].mxu0
      %v1374 = vadd.f32 %v564, %v1373
      %v1375 = vpop.f32.mrb[0].mxu0
      %v1376 = vpop.f32.mrb[0].mxu0
      %v1377 = vadd.f32 %v564, %v1376
      %v1378 = vpop.f32.mrb[0].mxu0
      %1379 = vmatprep.mubr.bf16.mxu0 0
      %1380 = vmatmul.mubr.bf16.gmra.mrb[0].mxu0 %v996
      %v1381 = vpop.f32.mrb[0].mxu0
      %v1382 = vadd.f32 %v564, %v1381
      %v1383 = vpop.f32.mrb[0].mxu0
      %v1384 = vpop.f32.mrb[0].mxu0
      %v1385 = vadd.f32 %v564, %v1384
      %v1386 = vpop.f32.mrb[0].mxu0
      %1387 = vmatprep.mubr.bf16.mxu0 0
      %1388 = vmatmul.mubr.bf16.gmra.mrb[0].mxu0 %v999
      %v1389 = vpop.f32.mrb[0].mxu0
      %v1390 = vadd.f32 %v564, %v1389
      %v1391 = vpop.f32.mrb[0].mxu0
      %v1392 = vpop.f32.mrb[0].mxu0
      %v1393 = vadd.f32 %v564, %v1392
      %v1394 = vpop.f32.mrb[0].mxu0
      %1395 = vmatprep.mubr.bf16.mxu0 0
      %1396 = vmatmul.mubr.bf16.gmra.mrb[0].mxu0 %v1002
      %v1397 = vpop.f32.mrb[0].mxu0
      %v1398 = vadd.f32 %v564, %v1397
      %v1399 = vpop.f32.mrb[0].mxu0
      %v1400 = vpop.f32.mrb[0].mxu0
      %v1401 = vadd.f32 %v564, %v1400
      %v1402 = vpop.f32.mrb[0].mxu0
      %1403 = vmatprep.mubr.bf16.mxu0 0
      %1404 = vmatmul.mubr.bf16.gmra.mrb[0].mxu0 %v1005
      %v1405 = vpop.f32.mrb[0].mxu0
      %v1406 = vadd.f32 %v564, %v1405
      %v1407 = vpop.f32.mrb[0].mxu0
      %v1408 = vpop.f32.mrb[0].mxu0
      %v1409 = vadd.f32 %v564, %v1408
      %v1410 = vpop.f32.mrb[0].mxu0
      %1411 = vmatprep.mubr.bf16.mxu0 0
      %1412 = vmatmul.mubr.bf16.gmra.mrb[0].mxu0 %v1008
      %v1413 = vpop.f32.mrb[0].mxu0
      %v1414 = vadd.f32 %v564, %v1413
      %v1415 = vpop.f32.mrb[0].mxu0
      %v1416 = vpop.f32.mrb[0].mxu0
      %v1417 = vadd.f32 %v564, %v1416
      %v1418 = vpop.f32.mrb[0].mxu0
      %1419 = vmatprep.mubr.bf16.mxu0 0
      %1420 = vmatmul.mubr.bf16.gmra.mrb[0].mxu0 %v1011
      %v1421 = vpop.f32.mrb[0].mxu0
      %v1422 = vadd.f32 %v564, %v1421
      %v1423 = vpop.f32.mrb[0].mxu0
      %v1424 = vpop.f32.mrb[0].mxu0
      %v1425 = vadd.f32 %v564, %v1424
      %v1426 = vpop.f32.mrb[0].mxu0
      %1427 = vmatprep.mubr.bf16.mxu0 0
      %1428 = vmatmul.mubr.bf16.gmra.mrb[0].mxu0 %v1014
      %v1429 = vpop.f32.mrb[0].mxu0
      %v1430 = vadd.f32 %v564, %v1429
      %v1431 = vpop.f32.mrb[0].mxu0
      %v1432 = vpop.f32.mrb[0].mxu0
      %v1433 = vadd.f32 %v564, %v1432
      %v1434 = vpop.f32.mrb[0].mxu0
      %1435 = vmatprep.mubr.bf16.mxu0 0
      %1436 = vmatmul.mubr.bf16.gmra.mrb[0].mxu0 %v1017
      %v1437 = vpop.f32.mrb[0].mxu0
      %v1438 = vadd.f32 %v564, %v1437
      %v1439 = vpop.f32.mrb[0].mxu0
      %v1440 = vpop.f32.mrb[0].mxu0
      %v1441 = vadd.f32 %v564, %v1440
      %v1442 = vpop.f32.mrb[0].mxu0
      %1443 = vmatprep.mubr.bf16.mxu0 0
      %1444 = vmatmul.mubr.bf16.gmra.mrb[0].mxu0 %v1020
      %v1445 = vpop.f32.mrb[0].mxu0
      %v1446 = vadd.f32 %v564, %v1445
      %v1447 = vpop.f32.mrb[0].mxu0
      %v1448 = vpop.f32.mrb[0].mxu0
      %v1449 = vadd.f32 %v564, %v1448
      %v1450 = vpop.f32.mrb[0].mxu0
      %1451 = vmatprep.mubr.bf16.mxu0 0
      %1452 = vmatmul.mubr.bf16.gmra.mrb[0].mxu0 %v1023
      %v1453 = vpop.f32.mrb[0].mxu0
      %v1454 = vadd.f32 %v564, %v1453
      %v1455 = vpop.f32.mrb[0].mxu0
      %v1456 = vpop.f32.mrb[0].mxu0
      %v1457 = vadd.f32 %v564, %v1456
      %v1458 = vpop.f32.mrb[0].mxu0
      %1459 = vmatprep.mubr.bf16.mxu0 0
      %1460 = vmatmul.mubr.bf16.gmra.mrb[0].mxu0 %v1026
      %v1461 = vpop.f32.mrb[0].mxu0
      %v1462 = vadd.f32 %v564, %v1461
      %v1463 = vpop.f32.mrb[0].mxu0
      %v1464 = vpop.f32.mrb[0].mxu0
      %v1465 = vadd.f32 %v564, %v1464
      %v1466 = vpop.f32.mrb[0].mxu0
      %1467 = vmatprep.mubr.bf16.mxu0 0
      %1468 = vmatmul.mubr.bf16.gmra.mrb[0].mxu0 %v1029
      %v1469 = vpop.f32.mrb[0].mxu0
      %v1470 = vadd.f32 %v564, %v1469
      %v1471 = vpop.f32.mrb[0].mxu0
      %v1472 = vpop.f32.mrb[0].mxu0
      %v1473 = vadd.f32 %v564, %v1472
      %v1474 = vpop.f32.mrb[0].mxu0
      %1475 = vmatprep.mubr.bf16.mxu0 0
      %1476 = vmatmul.mubr.bf16.gmra.mrb[0].mxu0 %v1032
      %v1477 = vpop.f32.mrb[0].mxu0
      %v1478 = vadd.f32 %v564, %v1477
      %v1479 = vpop.f32.mrb[0].mxu0
      %v1480 = vpop.f32.mrb[0].mxu0
      %v1481 = vadd.f32 %v564, %v1480
      %v1482 = vpop.f32.mrb[0].mxu0
      %1483 = vmatprep.mubr.bf16.mxu0 0
      %1484 = vmatmul.mubr.bf16.gmra.mrb[0].mxu0 %v1035
      %v1485 = vpop.f32.mrb[0].mxu0
      %v1486 = vadd.f32 %v564, %v1485
      %v1487 = vpop.f32.mrb[0].mxu0
      %v1488 = vpop.f32.mrb[0].mxu0
      %v1489 = vadd.f32 %v564, %v1488
      %v1490 = vpop.f32.mrb[0].mxu0
      %1491 = vmatprep.mubr.bf16.mxu0 0
      %1492 = vmatmul.mubr.bf16.gmra.mrb[0].mxu0 %v1038
      %v1493 = vpop.f32.mrb[0].mxu0
      %v1494 = vadd.f32 %v564, %v1493
      %v1495 = vpop.f32.mrb[0].mxu0
      %v1496 = vpop.f32.mrb[0].mxu0
      %v1497 = vadd.f32 %v564, %v1496
      %v1498 = vpop.f32.mrb[0].mxu0
      %1499 = vmatprep.mubr.bf16.mxu0 0
      %1500 = vmatmul.mubr.bf16.gmra.mrb[0].mxu0 %v1041
      %v1501 = vpop.f32.mrb[0].mxu0
      %v1502 = vadd.f32 %v564, %v1501
      %v1503 = vpop.f32.mrb[0].mxu0
      %v1504 = vpop.f32.mrb[0].mxu0
      %v1505 = vadd.f32 %v564, %v1504
      %v1506 = vpop.f32.mrb[0].mxu0
      %1507 = vmatprep.mubr.bf16.mxu0 0
      %1508 = vmatmul.mubr.bf16.gmra.mrb[0].mxu0 %v1044
      %v1509 = vpop.f32.mrb[0].mxu0
      %v1510 = vadd.f32 %v564, %v1509
      %v1511 = vpop.f32.mrb[0].mxu0
      %v1512 = vpop.f32.mrb[0].mxu0
      %v1513 = vadd.f32 %v564, %v1512
      %v1514 = vpop.f32.mrb[0].mxu0
      %1515 = vmatprep.mubr.bf16.mxu0 0
      %1516 = vmatmul.mubr.bf16.gmra.mrb[0].mxu0 %v1047
      %v1517 = vpop.f32.mrb[0].mxu0
      %v1518 = vadd.f32 %v564, %v1517
      %v1519 = vpop.f32.mrb[0].mxu0
      %v1520 = vpop.f32.mrb[0].mxu0
      %v1521 = vadd.f32 %v564, %v1520
      %v1522 = vpop.f32.mrb[0].mxu0
      %1523 = vmatprep.mubr.bf16.mxu0 0
      %1524 = vmatmul.mubr.bf16.gmra.mrb[0].mxu0 %v1050
      %v1525 = vpop.f32.mrb[0].mxu0
      %v1526 = vadd.f32 %v564, %v1525
      %v1527 = vpop.f32.mrb[0].mxu0
      %v1528 = vpop.f32.mrb[0].mxu0
      %v1529 = vadd.f32 %v564, %v1528
      %v1530 = vpop.f32.mrb[0].mxu0
      %1531 = vmatprep.mubr.bf16.mxu0 0
      %1532 = vmatmul.mubr.bf16.gmra.mrb[0].mxu0 %v1053
      %v1533 = vpop.f32.mrb[0].mxu0
      %v1534 = vadd.f32 %v564, %v1533
      %v1535 = vpop.f32.mrb[0].mxu0
      %v1536 = vpop.f32.mrb[0].mxu0
      %v1537 = vadd.f32 %v564, %v1536
      %v1538 = vpop.f32.mrb[0].mxu0
      %1539 = vmatprep.mubr.bf16.mxu0 0
      %1540 = vmatmul.mubr.bf16.gmra.mrb[0].mxu0 %v1056
      %v1541 = vpop.f32.mrb[0].mxu0
      %v1542 = vadd.f32 %v564, %v1541
      %v1543 = vpop.f32.mrb[0].mxu0
      %v1544 = vpop.f32.mrb[0].mxu0
      %v1545 = vadd.f32 %v564, %v1544
      %v1546 = vpop.f32.mrb[0].mxu0
      %1547 = vmatprep.mubr.bf16.mxu0 0
      %1548 = vmatmul.mubr.bf16.gmra.mrb[0].mxu0 %v1059
      %v1549 = vpop.f32.mrb[0].mxu0
      %v1550 = vadd.f32 %v564, %v1549
      %v1551 = vpop.f32.mrb[0].mxu0
      %v1552 = vpop.f32.mrb[0].mxu0
      %v1553 = vadd.f32 %v564, %v1552
      %v1554 = vpop.f32.mrb[0].mxu0
      %1555 = vmatprep.mubr.bf16.mxu0 0
      %1556 = vmatmul.mubr.bf16.gmra.mrb[0].mxu0 %v1062
      %v1557 = vpop.f32.mrb[0].mxu0
      %v1558 = vadd.f32 %v564, %v1557
      %v1559 = vpop.f32.mrb[0].mxu0
      %v1560 = vpop.f32.mrb[0].mxu0
      %v1561 = vadd.f32 %v564, %v1560
      %v1562 = vpop.f32.mrb[0].mxu0
      %1563 = vmatprep.mubr.bf16.mxu0 0
      %1564 = vmatmul.mubr.bf16.gmra.mrb[0].mxu0 %v1065
      %v1565 = vpop.f32.mrb[0].mxu0
      %v1566 = vadd.f32 %v564, %v1565
      %v1567 = vpop.f32.mrb[0].mxu0
      %v1568 = vpop.f32.mrb[0].mxu0
      %v1569 = vadd.f32 %v564, %v1568
      %v1570 = vpop.f32.mrb[0].mxu0
      %1571 = vmatprep.mubr.bf16.mxu0 0
      %1572 = vmatmul.mubr.bf16.gmra.mrb[0].mxu0 %v1068
      %v1573 = vpop.f32.mrb[0].mxu0
      %v1574 = vadd.f32 %v564, %v1573
      %v1575 = vpop.f32.mrb[0].mxu0
      %v1576 = vpop.f32.mrb[0].mxu0
      %v1577 = vadd.f32 %v564, %v1576
      %v1578 = vpop.f32.mrb[0].mxu0
      %1579 = vmatprep.mubr.bf16.mxu0 0
      %1580 = vmatmul.mubr.bf16.gmra.mrb[0].mxu0 %v1071
      %v1581 = vpop.f32.mrb[0].mxu0
      %v1582 = vadd.f32 %v564, %v1581
      %v1583 = vpop.f32.mrb[0].mxu0
      %v1584 = vpop.f32.mrb[0].mxu0
      %v1585 = vadd.f32 %v564, %v1584
      %v1586 = vpop.f32.mrb[0].mxu0
      %1587 = vmatprep.mubr.bf16.mxu0 0
      %1588 = vmatmul.mubr.bf16.gmra.mrb[0].mxu0 %v1074
      %v1589 = vpop.f32.mrb[0].mxu0
      %v1590 = vadd.f32 %v564, %v1589
      %v1591 = vpop.f32.mrb[0].mxu0
      %v1592 = vpop.f32.mrb[0].mxu0
      %v1593 = vadd.f32 %v564, %v1592
      %v1594 = vpop.f32.mrb[0].mxu0
      %1595 = vmatprep.mubr.bf16.mxu0 0
      %1596 = vmatmul.mubr.bf16.gmra.mrb[0].mxu0 %v1077
      %v1597 = vpop.f32.mrb[0].mxu0
      %v1598 = vadd.f32 %v564, %v1597
      %v1599 = vpop.f32.mrb[0].mxu0
      %v1600 = vpop.f32.mrb[0].mxu0
      %v1601 = vadd.f32 %v564, %v1600
      %v1602 = vpop.f32.mrb[0].mxu0
      %1603 = vmatprep.mubr.bf16.mxu0 0
      %1604 = vmatmul.mubr.bf16.gmra.mrb[0].mxu0 %v1080
      %v1605 = vpop.f32.mrb[0].mxu0
      %v1606 = vadd.f32 %v564, %v1605
      %v1607 = vpop.f32.mrb[0].mxu0
      %v1608 = vpop.f32.mrb[0].mxu0
      %v1609 = vadd.f32 %v564, %v1608
      %v1610 = vpop.f32.mrb[0].mxu0
      %1611 = vmatprep.mubr.bf16.mxu0 0
      %1612 = vmatmul.mubr.bf16.gmra.mrb[0].mxu0 %v1083
      %v1613 = vpop.f32.mrb[0].mxu0
      %v1614 = vadd.f32 %v564, %v1613
      %v1615 = vpop.f32.mrb[0].mxu0
      %v1616 = vpop.f32.mrb[0].mxu0
      %v1617 = vadd.f32 %v564, %v1616
      %v1618 = vpop.f32.mrb[0].mxu0
      %1619 = vmatprep.mubr.bf16.mxu0 0
      %1620 = vmatmul.mubr.bf16.gmra.mrb[0].mxu0 %v1086
      %v1621 = vpop.f32.mrb[0].mxu0
      %v1622 = vadd.f32 %v564, %v1621
      %v1623 = vpop.f32.mrb[0].mxu0
      %v1624 = vpop.f32.mrb[0].mxu0
      %v1625 = vadd.f32 %v564, %v1624
      %v1626 = vpop.f32.mrb[0].mxu0
      %1627 = vmatprep.mubr.bf16.mxu0 0
      %1628 = vmatmul.mubr.bf16.gmra.mrb[0].mxu0 %v1089
      %v1629 = vpop.f32.mrb[0].mxu0
      %v1630 = vadd.f32 %v564, %v1629
      %v1631 = vpop.f32.mrb[0].mxu0
      %v1632 = vpop.f32.mrb[0].mxu0
      %v1633 = vadd.f32 %v564, %v1632
      %v1634 = vpop.f32.mrb[0].mxu0
      %1635 = vdwg.mxu0
      %v1636 = vmul.f32 %v1126, 0.5
      %v1637 = vmul.f32 %v1129, 0.5
      %v1638 = vmul.f32 %v1134, 0.5
      %v1639 = vmul.f32 %v1137, 0.5
      %v1640 = vmul.f32 %v1142, 0.5
      %v1641 = vmul.f32 %v1145, 0.5
      %v1642 = vmul.f32 %v1150, 0.5
      %v1643 = vmul.f32 %v1153, 0.5
      %v1644 = vmul.f32 %v1158, 0.5
      %v1645 = vmul.f32 %v1161, 0.5
      %v1646 = vmul.f32 %v1166, 0.5
      %v1647 = vmul.f32 %v1169, 0.5
      %v1648 = vmul.f32 %v1174, 0.5
      %v1649 = vmul.f32 %v1177, 0.5
      %v1650 = vmul.f32 %v1182, 0.5
      %v1651 = vmul.f32 %v1185, 0.5
      %v1652 = vmul.f32 %v1190, 0.5
      %v1653 = vmul.f32 %v1193, 0.5
      %v1654 = vmul.f32 %v1198, 0.5
      %v1655 = vmul.f32 %v1201, 0.5
      %v1656 = vmul.f32 %v1206, 0.5
      %v1657 = vmul.f32 %v1209, 0.5
      %v1658 = vmul.f32 %v1214, 0.5
      %v1659 = vmul.f32 %v1217, 0.5
      %v1660 = vmul.f32 %v1222, 0.5
      %v1661 = vmul.f32 %v1225, 0.5
      %v1662 = vmul.f32 %v1230, 0.5
      %v1663 = vmul.f32 %v1233, 0.5
      %v1664 = vmul.f32 %v1238, 0.5
      %v1665 = vmul.f32 %v1241, 0.5
      %v1666 = vmul.f32 %v1246, 0.5
      %v1667 = vmul.f32 %v1249, 0.5
      %v1668 = vmul.f32 %v1254, 0.5
      %v1669 = vmul.f32 %v1257, 0.5
      %v1670 = vmul.f32 %v1262, 0.5
      %v1671 = vmul.f32 %v1265, 0.5
      %v1672 = vmul.f32 %v1270, 0.5
      %v1673 = vmul.f32 %v1273, 0.5
      %v1674 = vmul.f32 %v1278, 0.5
      %v1675 = vmul.f32 %v1281, 0.5
      %v1676 = vmul.f32 %v1286, 0.5
      %v1677 = vmul.f32 %v1289, 0.5
      %v1678 = vmul.f32 %v1294, 0.5
      %v1679 = vmul.f32 %v1297, 0.5
      %v1680 = vmul.f32 %v1302, 0.5
      %v1681 = vmul.f32 %v1305, 0.5
      %v1682 = vmul.f32 %v1310, 0.5
      %v1683 = vmul.f32 %v1313, 0.5
      %v1684 = vmul.f32 %v1318, 0.5
      %v1685 = vmul.f32 %v1321, 0.5
      %v1686 = vmul.f32 %v1326, 0.5
      %v1687 = vmul.f32 %v1329, 0.5
      %v1688 = vmul.f32 %v1334, 0.5
      %v1689 = vmul.f32 %v1337, 0.5
      %v1690 = vmul.f32 %v1342, 0.5
      %v1691 = vmul.f32 %v1345, 0.5
      %v1692 = vmul.f32 %v1350, 0.5
      %v1693 = vmul.f32 %v1353, 0.5
      %v1694 = vmul.f32 %v1358, 0.5
      %v1695 = vmul.f32 %v1361, 0.5
      %v1696 = vmul.f32 %v1366, 0.5
      %v1697 = vmul.f32 %v1369, 0.5
      %v1698 = vmul.f32 %v1374, 0.5
      %v1699 = vmul.f32 %v1377, 0.5
      %v1700 = vmul.f32 %v1382, 0.5
      %v1701 = vmul.f32 %v1385, 0.5
      %v1702 = vmul.f32 %v1390, 0.5
      %v1703 = vmul.f32 %v1393, 0.5
      %v1704 = vmul.f32 %v1398, 0.5
      %v1705 = vmul.f32 %v1401, 0.5
      %v1706 = vmul.f32 %v1406, 0.5
      %v1707 = vmul.f32 %v1409, 0.5
      %v1708 = vmul.f32 %v1414, 0.5
      %v1709 = vmul.f32 %v1417, 0.5
      %v1710 = vmul.f32 %v1422, 0.5
      %v1711 = vmul.f32 %v1425, 0.5
      %v1712 = vmul.f32 %v1430, 0.5
      %v1713 = vmul.f32 %v1433, 0.5
      %v1714 = vmul.f32 %v1438, 0.5
      %v1715 = vmul.f32 %v1441, 0.5
      %v1716 = vmul.f32 %v1446, 0.5
      %v1717 = vmul.f32 %v1449, 0.5
      %v1718 = vmul.f32 %v1454, 0.5
      %v1719 = vmul.f32 %v1457, 0.5
      %v1720 = vmul.f32 %v1462, 0.5
      %v1721 = vmul.f32 %v1465, 0.5
      %v1722 = vmul.f32 %v1470, 0.5
      %v1723 = vmul.f32 %v1473, 0.5
      %v1724 = vmul.f32 %v1478, 0.5
      %v1725 = vmul.f32 %v1481, 0.5
      %v1726 = vmul.f32 %v1486, 0.5
      %v1727 = vmul.f32 %v1489, 0.5
      %v1728 = vmul.f32 %v1494, 0.5
      %v1729 = vmul.f32 %v1497, 0.5
      %v1730 = vmul.f32 %v1502, 0.5
      %v1731 = vmul.f32 %v1505, 0.5
      %v1732 = vmul.f32 %v1510, 0.5
      %v1733 = vmul.f32 %v1513, 0.5
      %v1734 = vmul.f32 %v1518, 0.5
      %v1735 = vmul.f32 %v1521, 0.5
      %v1736 = vmul.f32 %v1526, 0.5
      %v1737 = vmul.f32 %v1529, 0.5
      %v1738 = vmul.f32 %v1534, 0.5
      %v1739 = vmul.f32 %v1537, 0.5
      %v1740 = vmul.f32 %v1542, 0.5
      %v1741 = vmul.f32 %v1545, 0.5
      %v1742 = vmul.f32 %v1550, 0.5
      %v1743 = vmul.f32 %v1553, 0.5
      %v1744 = vmul.f32 %v1558, 0.5
      %v1745 = vmul.f32 %v1561, 0.5
      %v1746 = vmul.f32 %v1566, 0.5
      %v1747 = vmul.f32 %v1569, 0.5
      %v1748 = vmul.f32 %v1574, 0.5
      %v1749 = vmul.f32 %v1577, 0.5
      %v1750 = vmul.f32 %v1582, 0.5
      %v1751 = vmul.f32 %v1585, 0.5
      %v1752 = vmul.f32 %v1590, 0.5
      %v1753 = vmul.f32 %v1593, 0.5
      %v1754 = vmul.f32 %v1598, 0.5
      %v1755 = vmul.f32 %v1601, 0.5
      %v1756 = vmul.f32 %v1606, 0.5
      %v1757 = vmul.f32 %v1609, 0.5
      %v1758 = vmul.f32 %v1614, 0.5
      %v1759 = vmul.f32 %v1617, 0.5
      %v1760 = vmul.f32 %v1622, 0.5
      %v1761 = vmul.f32 %v1625, 0.5
      %v1762 = vmul.f32 %v1630, 0.5
      %v1763 = vmul.f32 %v1633, 0.5
      %v1764 = vmul.f32 %v1126, 0.044715
      %v1765 = vmul.f32 %v1129, 0.044715
      %v1766 = vmul.f32 %v1134, 0.044715
      %v1767 = vmul.f32 %v1137, 0.044715
      %v1768 = vmul.f32 %v1142, 0.044715
      %v1769 = vmul.f32 %v1145, 0.044715
      %v1770 = vmul.f32 %v1150, 0.044715
      %v1771 = vmul.f32 %v1153, 0.044715
      %v1772 = vmul.f32 %v1158, 0.044715
      %v1773 = vmul.f32 %v1161, 0.044715
      %v1774 = vmul.f32 %v1166, 0.044715
      %v1775 = vmul.f32 %v1169, 0.044715
      %v1776 = vmul.f32 %v1174, 0.044715
      %v1777 = vmul.f32 %v1177, 0.044715
      %v1778 = vmul.f32 %v1182, 0.044715
      %v1779 = vmul.f32 %v1185, 0.044715
      %v1780 = vmul.f32 %v1190, 0.044715
      %v1781 = vmul.f32 %v1193, 0.044715
      %v1782 = vmul.f32 %v1198, 0.044715
      %v1783 = vmul.f32 %v1201, 0.044715
      %v1784 = vmul.f32 %v1206, 0.044715
      %v1785 = vmul.f32 %v1209, 0.044715
      %v1786 = vmul.f32 %v1214, 0.044715
      %v1787 = vmul.f32 %v1217, 0.044715
      %v1788 = vmul.f32 %v1222, 0.044715
      %v1789 = vmul.f32 %v1225, 0.044715
      %v1790 = vmul.f32 %v1230, 0.044715
      %v1791 = vmul.f32 %v1233, 0.044715
      %v1792 = vmul.f32 %v1238, 0.044715
      %v1793 = vmul.f32 %v1241, 0.044715
      %v1794 = vmul.f32 %v1246, 0.044715
      %v1795 = vmul.f32 %v1249, 0.044715
      %v1796 = vmul.f32 %v1254, 0.044715
      %v1797 = vmul.f32 %v1257, 0.044715
      %v1798 = vmul.f32 %v1262, 0.044715
      %v1799 = vmul.f32 %v1265, 0.044715
      %v1800 = vmul.f32 %v1270, 0.044715
      %v1801 = vmul.f32 %v1273, 0.044715
      %v1802 = vmul.f32 %v1278, 0.044715
      %v1803 = vmul.f32 %v1281, 0.044715
      %v1804 = vmul.f32 %v1286, 0.044715
      %v1805 = vmul.f32 %v1289, 0.044715
      %v1806 = vmul.f32 %v1294, 0.044715
      %v1807 = vmul.f32 %v1297, 0.044715
      %v1808 = vmul.f32 %v1302, 0.044715
      %v1809 = vmul.f32 %v1305, 0.044715
      %v1810 = vmul.f32 %v1310, 0.044715
      %v1811 = vmul.f32 %v1313, 0.044715
      %v1812 = vmul.f32 %v1318, 0.044715
      %v1813 = vmul.f32 %v1321, 0.044715
      %v1814 = vmul.f32 %v1326, 0.044715
      %v1815 = vmul.f32 %v1329, 0.044715
      %v1816 = vmul.f32 %v1334, 0.044715
      %v1817 = vmul.f32 %v1337, 0.044715
      %v1818 = vmul.f32 %v1342, 0.044715
      %v1819 = vmul.f32 %v1345, 0.044715
      %v1820 = vmul.f32 %v1350, 0.044715
      %v1821 = vmul.f32 %v1353, 0.044715
      %v1822 = vmul.f32 %v1358, 0.044715
      %v1823 = vmul.f32 %v1361, 0.044715
      %v1824 = vmul.f32 %v1366, 0.044715
      %v1825 = vmul.f32 %v1369, 0.044715
      %v1826 = vmul.f32 %v1374, 0.044715
      %v1827 = vmul.f32 %v1377, 0.044715
      %v1828 = vmul.f32 %v1382, 0.044715
      %v1829 = vmul.f32 %v1385, 0.044715
      %v1830 = vmul.f32 %v1390, 0.044715
      %v1831 = vmul.f32 %v1393, 0.044715
      %v1832 = vmul.f32 %v1398, 0.044715
      %v1833 = vmul.f32 %v1401, 0.044715
      %v1834 = vmul.f32 %v1406, 0.044715
      %v1835 = vmul.f32 %v1409, 0.044715
      %v1836 = vmul.f32 %v1414, 0.044715
      %v1837 = vmul.f32 %v1417, 0.044715
      %v1838 = vmul.f32 %v1422, 0.044715
      %v1839 = vmul.f32 %v1425, 0.044715
      %v1840 = vmul.f32 %v1430, 0.044715
      %v1841 = vmul.f32 %v1433, 0.044715
      %v1842 = vmul.f32 %v1438, 0.044715
      %v1843 = vmul.f32 %v1441, 0.044715
      %v1844 = vmul.f32 %v1446, 0.044715
      %v1845 = vmul.f32 %v1449, 0.044715
      %v1846 = vmul.f32 %v1454, 0.044715
      %v1847 = vmul.f32 %v1457, 0.044715
      %v1848 = vmul.f32 %v1462, 0.044715
      %v1849 = vmul.f32 %v1465, 0.044715
      %v1850 = vmul.f32 %v1470, 0.044715
      %v1851 = vmul.f32 %v1473, 0.044715
      %v1852 = vmul.f32 %v1478, 0.044715
      %v1853 = vmul.f32 %v1481, 0.044715
      %v1854 = vmul.f32 %v1486, 0.044715
      %v1855 = vmul.f32 %v1489, 0.044715
      %v1856 = vmul.f32 %v1494, 0.044715
      %v1857 = vmul.f32 %v1497, 0.044715
      %v1858 = vmul.f32 %v1502, 0.044715
      %v1859 = vmul.f32 %v1505, 0.044715
      %v1860 = vmul.f32 %v1510, 0.044715
      %v1861 = vmul.f32 %v1513, 0.044715
      %v1862 = vmul.f32 %v1518, 0.044715
      %v1863 = vmul.f32 %v1521, 0.044715
      %v1864 = vmul.f32 %v1526, 0.044715
      %v1865 = vmul.f32 %v1529, 0.044715
      %v1866 = vmul.f32 %v1534, 0.044715
      %v1867 = vmul.f32 %v1537, 0.044715
      %v1868 = vmul.f32 %v1542, 0.044715
      %v1869 = vmul.f32 %v1545, 0.044715
      %v1870 = vmul.f32 %v1550, 0.044715
      %v1871 = vmul.f32 %v1553, 0.044715
      %v1872 = vmul.f32 %v1558, 0.044715
      %v1873 = vmul.f32 %v1561, 0.044715
      %v1874 = vmul.f32 %v1566, 0.044715
      %v1875 = vmul.f32 %v1569, 0.044715
      %v1876 = vmul.f32 %v1574, 0.044715
      %v1877 = vmul.f32 %v1577, 0.044715
      %v1878 = vmul.f32 %v1582, 0.044715
      %v1879 = vmul.f32 %v1585, 0.044715
      %v1880 = vmul.f32 %v1590, 0.044715
      %v1881 = vmul.f32 %v1593, 0.044715
      %v1882 = vmul.f32 %v1598, 0.044715
      %v1883 = vmul.f32 %v1601, 0.044715
      %v1884 = vmul.f32 %v1606, 0.044715
      %v1885 = vmul.f32 %v1609, 0.044715
      %v1886 = vmul.f32 %v1614, 0.044715
      %v1887 = vmul.f32 %v1617, 0.044715
      %v1888 = vmul.f32 %v1622, 0.044715
      %v1889 = vmul.f32 %v1625, 0.044715
      %v1890 = vmul.f32 %v1630, 0.044715
      %v1891 = vmul.f32 %v1633, 0.044715
      %v1892 = vmul.f32 %v1764, %v1126
      %v1893 = vmul.f32 %v1765, %v1129
      %v1894 = vmul.f32 %v1766, %v1134
      %v1895 = vmul.f32 %v1767, %v1137
      %v1896 = vmul.f32 %v1768, %v1142
      %v1897 = vmul.f32 %v1769, %v1145
      %v1898 = vmul.f32 %v1770, %v1150
      %v1899 = vmul.f32 %v1771, %v1153
      %v1900 = vmul.f32 %v1772, %v1158
      %v1901 = vmul.f32 %v1773, %v1161
      %v1902 = vmul.f32 %v1774, %v1166
      %v1903 = vmul.f32 %v1775, %v1169
      %v1904 = vmul.f32 %v1776, %v1174
      %v1905 = vmul.f32 %v1777, %v1177
      %v1906 = vmul.f32 %v1778, %v1182
      %v1907 = vmul.f32 %v1779, %v1185
      %v1908 = vmul.f32 %v1780, %v1190
      %v1909 = vmul.f32 %v1781, %v1193
      %v1910 = vmul.f32 %v1782, %v1198
      %v1911 = vmul.f32 %v1783, %v1201
      %v1912 = vmul.f32 %v1784, %v1206
      %v1913 = vmul.f32 %v1785, %v1209
      %v1914 = vmul.f32 %v1786, %v1214
      %v1915 = vmul.f32 %v1787, %v1217
      %v1916 = vmul.f32 %v1788, %v1222
      %v1917 = vmul.f32 %v1789, %v1225
      %v1918 = vmul.f32 %v1790, %v1230
      %v1919 = vmul.f32 %v1791, %v1233
      %v1920 = vmul.f32 %v1792, %v1238
      %v1921 = vmul.f32 %v1793, %v1241
      %v1922 = vmul.f32 %v1794, %v1246
      %v1923 = vmul.f32 %v1795, %v1249
      %v1924 = vmul.f32 %v1796, %v1254
      %v1925 = vmul.f32 %v1797, %v1257
      %v1926 = vmul.f32 %v1798, %v1262
      %v1927 = vmul.f32 %v1799, %v1265
      %v1928 = vmul.f32 %v1800, %v1270
      %v1929 = vmul.f32 %v1801, %v1273
      %v1930 = vmul.f32 %v1802, %v1278
      %v1931 = vmul.f32 %v1803, %v1281
      %v1932 = vmul.f32 %v1804, %v1286
      %v1933 = vmul.f32 %v1805, %v1289
      %v1934 = vmul.f32 %v1806, %v1294
      %v1935 = vmul.f32 %v1807, %v1297
      %v1936 = vmul.f32 %v1808, %v1302
      %v1937 = vmul.f32 %v1809, %v1305
      %v1938 = vmul.f32 %v1810, %v1310
      %v1939 = vmul.f32 %v1811, %v1313
      %v1940 = vmul.f32 %v1812, %v1318
      %v1941 = vmul.f32 %v1813, %v1321
      %v1942 = vmul.f32 %v1814, %v1326
      %v1943 = vmul.f32 %v1815, %v1329
      %v1944 = vmul.f32 %v1816, %v1334
      %v1945 = vmul.f32 %v1817, %v1337
      %v1946 = vmul.f32 %v1818, %v1342
      %v1947 = vmul.f32 %v1819, %v1345
      %v1948 = vmul.f32 %v1820, %v1350
      %v1949 = vmul.f32 %v1821, %v1353
      %v1950 = vmul.f32 %v1822, %v1358
      %v1951 = vmul.f32 %v1823, %v1361
      %v1952 = vmul.f32 %v1824, %v1366
      %v1953 = vmul.f32 %v1825, %v1369
      %v1954 = vmul.f32 %v1826, %v1374
      %v1955 = vmul.f32 %v1827, %v1377
      %v1956 = vmul.f32 %v1828, %v1382
      %v1957 = vmul.f32 %v1829, %v1385
      %v1958 = vmul.f32 %v1830, %v1390
      %v1959 = vmul.f32 %v1831, %v1393
      %v1960 = vmul.f32 %v1832, %v1398
      %v1961 = vmul.f32 %v1833, %v1401
      %v1962 = vmul.f32 %v1834, %v1406
      %v1963 = vmul.f32 %v1835, %v1409
      %v1964 = vmul.f32 %v1836, %v1414
      %v1965 = vmul.f32 %v1837, %v1417
      %v1966 = vmul.f32 %v1838, %v1422
      %v1967 = vmul.f32 %v1839, %v1425
      %v1968 = vmul.f32 %v1840, %v1430
      %v1969 = vmul.f32 %v1841, %v1433
      %v1970 = vmul.f32 %v1842, %v1438
      %v1971 = vmul.f32 %v1843, %v1441
      %v1972 = vmul.f32 %v1844, %v1446
      %v1973 = vmul.f32 %v1845, %v1449
      %v1974 = vmul.f32 %v1846, %v1454
      %v1975 = vmul.f32 %v1847, %v1457
      %v1976 = vmul.f32 %v1848, %v1462
      %v1977 = vmul.f32 %v1849, %v1465
      %v1978 = vmul.f32 %v1850, %v1470
      %v1979 = vmul.f32 %v1851, %v1473
      %v1980 = vmul.f32 %v1852, %v1478
      %v1981 = vmul.f32 %v1853, %v1481
      %v1982 = vmul.f32 %v1854, %v1486
      %v1983 = vmul.f32 %v1855, %v1489
      %v1984 = vmul.f32 %v1856, %v1494
      %v1985 = vmul.f32 %v1857, %v1497
      %v1986 = vmul.f32 %v1858, %v1502
      %v1987 = vmul.f32 %v1859, %v1505
      %v1988 = vmul.f32 %v1860, %v1510
      %v1989 = vmul.f32 %v1861, %v1513
      %v1990 = vmul.f32 %v1862, %v1518
      %v1991 = vmul.f32 %v1863, %v1521
      %v1992 = vmul.f32 %v1864, %v1526
      %v1993 = vmul.f32 %v1865, %v1529
      %v1994 = vmul.f32 %v1866, %v1534
      %v1995 = vmul.f32 %v1867, %v1537
      %v1996 = vmul.f32 %v1868, %v1542
      %v1997 = vmul.f32 %v1869, %v1545
      %v1998 = vmul.f32 %v1870, %v1550
      %v1999 = vmul.f32 %v1871, %v1553
      %v2000 = vmul.f32 %v1872, %v1558
      %v2001 = vmul.f32 %v1873, %v1561
      %v2002 = vmul.f32 %v1874, %v1566
      %v2003 = vmul.f32 %v1875, %v1569
      %v2004 = vmul.f32 %v1876, %v1574
      %v2005 = vmul.f32 %v1877, %v1577
      %v2006 = vmul.f32 %v1878, %v1582
      %v2007 = vmul.f32 %v1879, %v1585
      %v2008 = vmul.f32 %v1880, %v1590
      %v2009 = vmul.f32 %v1881, %v1593
      %v2010 = vmul.f32 %v1882, %v1598
      %v2011 = vmul.f32 %v1883, %v1601
      %v2012 = vmul.f32 %v1884, %v1606
      %v2013 = vmul.f32 %v1885, %v1609
      %v2014 = vmul.f32 %v1886, %v1614
      %v2015 = vmul.f32 %v1887, %v1617
      %v2016 = vmul.f32 %v1888, %v1622
      %v2017 = vmul.f32 %v1889, %v1625
      %v2018 = vmul.f32 %v1890, %v1630
      %v2019 = vmul.f32 %v1891, %v1633
      %v2020 = vmul.f32 %v1892, %v1126
      %v2021 = vmul.f32 %v1893, %v1129
      %v2022 = vmul.f32 %v1894, %v1134
      %v2023 = vmul.f32 %v1895, %v1137
      %v2024 = vmul.f32 %v1896, %v1142
      %v2025 = vmul.f32 %v1897, %v1145
      %v2026 = vmul.f32 %v1898, %v1150
      %v2027 = vmul.f32 %v1899, %v1153
      %v2028 = vmul.f32 %v1900, %v1158
      %v2029 = vmul.f32 %v1901, %v1161
      %v2030 = vmul.f32 %v1902, %v1166
      %v2031 = vmul.f32 %v1903, %v1169
      %v2032 = vmul.f32 %v1904, %v1174
      %v2033 = vmul.f32 %v1905, %v1177
      %v2034 = vmul.f32 %v1906, %v1182
      %v2035 = vmul.f32 %v1907, %v1185
      %v2036 = vmul.f32 %v1908, %v1190
      %v2037 = vmul.f32 %v1909, %v1193
      %v2038 = vmul.f32 %v1910, %v1198
      %v2039 = vmul.f32 %v1911, %v1201
      %v2040 = vmul.f32 %v1912, %v1206
      %v2041 = vmul.f32 %v1913, %v1209
      %v2042 = vmul.f32 %v1914, %v1214
      %v2043 = vmul.f32 %v1915, %v1217
      %v2044 = vmul.f32 %v1916, %v1222
      %v2045 = vmul.f32 %v1917, %v1225
      %v2046 = vmul.f32 %v1918, %v1230
      %v2047 = vmul.f32 %v1919, %v1233
      %v2048 = vmul.f32 %v1920, %v1238
      %v2049 = vmul.f32 %v1921, %v1241
      %v2050 = vmul.f32 %v1922, %v1246
      %v2051 = vmul.f32 %v1923, %v1249
      %v2052 = vmul.f32 %v1924, %v1254
      %v2053 = vmul.f32 %v1925, %v1257
      %v2054 = vmul.f32 %v1926, %v1262
      %v2055 = vmul.f32 %v1927, %v1265
      %v2056 = vmul.f32 %v1928, %v1270
      %v2057 = vmul.f32 %v1929, %v1273
      %v2058 = vmul.f32 %v1930, %v1278
      %v2059 = vmul.f32 %v1931, %v1281
      %v2060 = vmul.f32 %v1932, %v1286
      %v2061 = vmul.f32 %v1933, %v1289
      %v2062 = vmul.f32 %v1934, %v1294
      %v2063 = vmul.f32 %v1935, %v1297
      %v2064 = vmul.f32 %v1936, %v1302
      %v2065 = vmul.f32 %v1937, %v1305
      %v2066 = vmul.f32 %v1938, %v1310
      %v2067 = vmul.f32 %v1939, %v1313
      %v2068 = vmul.f32 %v1940, %v1318
      %v2069 = vmul.f32 %v1941, %v1321
      %v2070 = vmul.f32 %v1942, %v1326
      %v2071 = vmul.f32 %v1943, %v1329
      %v2072 = vmul.f32 %v1944, %v1334
      %v2073 = vmul.f32 %v1945, %v1337
      %v2074 = vmul.f32 %v1946, %v1342
      %v2075 = vmul.f32 %v1947, %v1345
      %v2076 = vmul.f32 %v1948, %v1350
      %v2077 = vmul.f32 %v1949, %v1353
      %v2078 = vmul.f32 %v1950, %v1358
      %v2079 = vmul.f32 %v1951, %v1361
      %v2080 = vmul.f32 %v1952, %v1366
      %v2081 = vmul.f32 %v1953, %v1369
      %v2082 = vmul.f32 %v1954, %v1374
      %v2083 = vmul.f32 %v1955, %v1377
      %v2084 = vmul.f32 %v1956, %v1382
      %v2085 = vmul.f32 %v1957, %v1385
      %v2086 = vmul.f32 %v1958, %v1390
      %v2087 = vmul.f32 %v1959, %v1393
      %v2088 = vmul.f32 %v1960, %v1398
      %v2089 = vmul.f32 %v1961, %v1401
      %v2090 = vmul.f32 %v1962, %v1406
      %v2091 = vmul.f32 %v1963, %v1409
      %v2092 = vmul.f32 %v1964, %v1414
      %v2093 = vmul.f32 %v1965, %v1417
      %v2094 = vmul.f32 %v1966, %v1422
      %v2095 = vmul.f32 %v1967, %v1425
      %v2096 = vmul.f32 %v1968, %v1430
      %v2097 = vmul.f32 %v1969, %v1433
      %v2098 = vmul.f32 %v1970, %v1438
      %v2099 = vmul.f32 %v1971, %v1441
      %v2100 = vmul.f32 %v1972, %v1446
      %v2101 = vmul.f32 %v1973, %v1449
      %v2102 = vmul.f32 %v1974, %v1454
      %v2103 = vmul.f32 %v1975, %v1457
      %v2104 = vmul.f32 %v1976, %v1462
      %v2105 = vmul.f32 %v1977, %v1465
      %v2106 = vmul.f32 %v1978, %v1470
      %v2107 = vmul.f32 %v1979, %v1473
      %v2108 = vmul.f32 %v1980, %v1478
      %v2109 = vmul.f32 %v1981, %v1481
      %v2110 = vmul.f32 %v1982, %v1486
      %v2111 = vmul.f32 %v1983, %v1489
      %v2112 = vmul.f32 %v1984, %v1494
      %v2113 = vmul.f32 %v1985, %v1497
      %v2114 = vmul.f32 %v1986, %v1502
      %v2115 = vmul.f32 %v1987, %v1505
      %v2116 = vmul.f32 %v1988, %v1510
      %v2117 = vmul.f32 %v1989, %v1513
      %v2118 = vmul.f32 %v1990, %v1518
      %v2119 = vmul.f32 %v1991, %v1521
      %v2120 = vmul.f32 %v1992, %v1526
      %v2121 = vmul.f32 %v1993, %v1529
      %v2122 = vmul.f32 %v1994, %v1534
      %v2123 = vmul.f32 %v1995, %v1537
      %v2124 = vmul.f32 %v1996, %v1542
      %v2125 = vmul.f32 %v1997, %v1545
      %v2126 = vmul.f32 %v1998, %v1550
      %v2127 = vmul.f32 %v1999, %v1553
      %v2128 = vmul.f32 %v2000, %v1558
      %v2129 = vmul.f32 %v2001, %v1561
      %v2130 = vmul.f32 %v2002, %v1566
      %v2131 = vmul.f32 %v2003, %v1569
      %v2132 = vmul.f32 %v2004, %v1574
      %v2133 = vmul.f32 %v2005, %v1577
      %v2134 = vmul.f32 %v2006, %v1582
      %v2135 = vmul.f32 %v2007, %v1585
      %v2136 = vmul.f32 %v2008, %v1590
      %v2137 = vmul.f32 %v2009, %v1593
      %v2138 = vmul.f32 %v2010, %v1598
      %v2139 = vmul.f32 %v2011, %v1601
      %v2140 = vmul.f32 %v2012, %v1606
      %v2141 = vmul.f32 %v2013, %v1609
      %v2142 = vmul.f32 %v2014, %v1614
      %v2143 = vmul.f32 %v2015, %v1617
      %v2144 = vmul.f32 %v2016, %v1622
      %v2145 = vmul.f32 %v2017, %v1625
      %v2146 = vmul.f32 %v2018, %v1630
      %v2147 = vmul.f32 %v2019, %v1633
      %v2148 = vadd.f32 %v1126, %v2020
      %v2149 = vadd.f32 %v1129, %v2021
      %v2150 = vadd.f32 %v1134, %v2022
      %v2151 = vadd.f32 %v1137, %v2023
      %v2152 = vadd.f32 %v1142, %v2024
      %v2153 = vadd.f32 %v1145, %v2025
      %v2154 = vadd.f32 %v1150, %v2026
      %v2155 = vadd.f32 %v1153, %v2027
      %v2156 = vadd.f32 %v1158, %v2028
      %v2157 = vadd.f32 %v1161, %v2029
      %v2158 = vadd.f32 %v1166, %v2030
      %v2159 = vadd.f32 %v1169, %v2031
      %v2160 = vadd.f32 %v1174, %v2032
      %v2161 = vadd.f32 %v1177, %v2033
      %v2162 = vadd.f32 %v1182, %v2034
      %v2163 = vadd.f32 %v1185, %v2035
      %v2164 = vadd.f32 %v1190, %v2036
      %v2165 = vadd.f32 %v1193, %v2037
      %v2166 = vadd.f32 %v1198, %v2038
      %v2167 = vadd.f32 %v1201, %v2039
      %v2168 = vadd.f32 %v1206, %v2040
      %v2169 = vadd.f32 %v1209, %v2041
      %v2170 = vadd.f32 %v1214, %v2042
      %v2171 = vadd.f32 %v1217, %v2043
      %v2172 = vadd.f32 %v1222, %v2044
      %v2173 = vadd.f32 %v1225, %v2045
      %v2174 = vadd.f32 %v1230, %v2046
      %v2175 = vadd.f32 %v1233, %v2047
      %v2176 = vadd.f32 %v1238, %v2048
      %v2177 = vadd.f32 %v1241, %v2049
      %v2178 = vadd.f32 %v1246, %v2050
      %v2179 = vadd.f32 %v1249, %v2051
      %v2180 = vadd.f32 %v1254, %v2052
      %v2181 = vadd.f32 %v1257, %v2053
      %v2182 = vadd.f32 %v1262, %v2054
      %v2183 = vadd.f32 %v1265, %v2055
      %v2184 = vadd.f32 %v1270, %v2056
      %v2185 = vadd.f32 %v1273, %v2057
      %v2186 = vadd.f32 %v1278, %v2058
      %v2187 = vadd.f32 %v1281, %v2059
      %v2188 = vadd.f32 %v1286, %v2060
      %v2189 = vadd.f32 %v1289, %v2061
      %v2190 = vadd.f32 %v1294, %v2062
      %v2191 = vadd.f32 %v1297, %v2063
      %v2192 = vadd.f32 %v1302, %v2064
      %v2193 = vadd.f32 %v1305, %v2065
      %v2194 = vadd.f32 %v1310, %v2066
      %v2195 = vadd.f32 %v1313, %v2067
      %v2196 = vadd.f32 %v1318, %v2068
      %v2197 = vadd.f32 %v1321, %v2069
      %v2198 = vadd.f32 %v1326, %v2070
      %v2199 = vadd.f32 %v1329, %v2071
      %v2200 = vadd.f32 %v1334, %v2072
      %v2201 = vadd.f32 %v1337, %v2073
      %v2202 = vadd.f32 %v1342, %v2074
      %v2203 = vadd.f32 %v1345, %v2075
      %v2204 = vadd.f32 %v1350, %v2076
      %v2205 = vadd.f32 %v1353, %v2077
      %v2206 = vadd.f32 %v1358, %v2078
      %v2207 = vadd.f32 %v1361, %v2079
      %v2208 = vadd.f32 %v1366, %v2080
      %v2209 = vadd.f32 %v1369, %v2081
      %v2210 = vadd.f32 %v1374, %v2082
      %v2211 = vadd.f32 %v1377, %v2083
      %v2212 = vadd.f32 %v1382, %v2084
      %v2213 = vadd.f32 %v1385, %v2085
      %v2214 = vadd.f32 %v1390, %v2086
      %v2215 = vadd.f32 %v1393, %v2087
      %v2216 = vadd.f32 %v1398, %v2088
      %v2217 = vadd.f32 %v1401, %v2089
      %v2218 = vadd.f32 %v1406, %v2090
      %v2219 = vadd.f32 %v1409, %v2091
      %v2220 = vadd.f32 %v1414, %v2092
      %v2221 = vadd.f32 %v1417, %v2093
      %v2222 = vadd.f32 %v1422, %v2094
      %v2223 = vadd.f32 %v1425, %v2095
      %v2224 = vadd.f32 %v1430, %v2096
      %v2225 = vadd.f32 %v1433, %v2097
      %v2226 = vadd.f32 %v1438, %v2098
      %v2227 = vadd.f32 %v1441, %v2099
      %v2228 = vadd.f32 %v1446, %v2100
      %v2229 = vadd.f32 %v1449, %v2101
      %v2230 = vadd.f32 %v1454, %v2102
      %v2231 = vadd.f32 %v1457, %v2103
      %v2232 = vadd.f32 %v1462, %v2104
      %v2233 = vadd.f32 %v1465, %v2105
      %v2234 = vadd.f32 %v1470, %v2106
      %v2235 = vadd.f32 %v1473, %v2107
      %v2236 = vadd.f32 %v1478, %v2108
      %v2237 = vadd.f32 %v1481, %v2109
      %v2238 = vadd.f32 %v1486, %v2110
      %v2239 = vadd.f32 %v1489, %v2111
      %v2240 = vadd.f32 %v1494, %v2112
      %v2241 = vadd.f32 %v1497, %v2113
      %v2242 = vadd.f32 %v1502, %v2114
      %v2243 = vadd.f32 %v1505, %v2115
      %v2244 = vadd.f32 %v1510, %v2116
      %v2245 = vadd.f32 %v1513, %v2117
      %v2246 = vadd.f32 %v1518, %v2118
      %v2247 = vadd.f32 %v1521, %v2119
      %v2248 = vadd.f32 %v1526, %v2120
      %v2249 = vadd.f32 %v1529, %v2121
      %v2250 = vadd.f32 %v1534, %v2122
      %v2251 = vadd.f32 %v1537, %v2123
      %v2252 = vadd.f32 %v1542, %v2124
      %v2253 = vadd.f32 %v1545, %v2125
      %v2254 = vadd.f32 %v1550, %v2126
      %v2255 = vadd.f32 %v1553, %v2127
      %v2256 = vadd.f32 %v1558, %v2128
      %v2257 = vadd.f32 %v1561, %v2129
      %v2258 = vadd.f32 %v1566, %v2130
      %v2259 = vadd.f32 %v1569, %v2131
      %v2260 = vadd.f32 %v1574, %v2132
      %v2261 = vadd.f32 %v1577, %v2133
      %v2262 = vadd.f32 %v1582, %v2134
      %v2263 = vadd.f32 %v1585, %v2135
      %v2264 = vadd.f32 %v1590, %v2136
      %v2265 = vadd.f32 %v1593, %v2137
      %v2266 = vadd.f32 %v1598, %v2138
      %v2267 = vadd.f32 %v1601, %v2139
      %v2268 = vadd.f32 %v1606, %v2140
      %v2269 = vadd.f32 %v1609, %v2141
      %v2270 = vadd.f32 %v1614, %v2142
      %v2271 = vadd.f32 %v1617, %v2143
      %v2272 = vadd.f32 %v1622, %v2144
      %v2273 = vadd.f32 %v1625, %v2145
      %v2274 = vadd.f32 %v1630, %v2146
      %v2275 = vadd.f32 %v1633, %v2147
      %v2276 = vmul.f32 %v2148, 0.7978846
      %v2277 = vmul.f32 %v2149, 0.7978846
      %v2278 = vmul.f32 %v2150, 0.7978846
      %v2279 = vmul.f32 %v2151, 0.7978846
      %v2280 = vmul.f32 %v2152, 0.7978846
      %v2281 = vmul.f32 %v2153, 0.7978846
      %v2282 = vmul.f32 %v2154, 0.7978846
      %v2283 = vmul.f32 %v2155, 0.7978846
      %v2284 = vmul.f32 %v2156, 0.7978846
      %v2285 = vmul.f32 %v2157, 0.7978846
      %v2286 = vmul.f32 %v2158, 0.7978846
      %v2287 = vmul.f32 %v2159, 0.7978846
      %v2288 = vmul.f32 %v2160, 0.7978846
      %v2289 = vmul.f32 %v2161, 0.7978846
      %v2290 = vmul.f32 %v2162, 0.7978846
      %v2291 = vmul.f32 %v2163, 0.7978846
      %v2292 = vmul.f32 %v2164, 0.7978846
      %v2293 = vmul.f32 %v2165, 0.7978846
      %v2294 = vmul.f32 %v2166, 0.7978846
      %v2295 = vmul.f32 %v2167, 0.7978846
      %v2296 = vmul.f32 %v2168, 0.7978846
      %v2297 = vmul.f32 %v2169, 0.7978846
      %v2298 = vmul.f32 %v2170, 0.7978846
      %v2299 = vmul.f32 %v2171, 0.7978846
      %v2300 = vmul.f32 %v2172, 0.7978846
      %v2301 = vmul.f32 %v2173, 0.7978846
      %v2302 = vmul.f32 %v2174, 0.7978846
      %v2303 = vmul.f32 %v2175, 0.7978846
      %v2304 = vmul.f32 %v2176, 0.7978846
      %v2305 = vmul.f32 %v2177, 0.7978846
      %v2306 = vmul.f32 %v2178, 0.7978846
      %v2307 = vmul.f32 %v2179, 0.7978846
      %v2308 = vmul.f32 %v2180, 0.7978846
      %v2309 = vmul.f32 %v2181, 0.7978846
      %v2310 = vmul.f32 %v2182, 0.7978846
      %v2311 = vmul.f32 %v2183, 0.7978846
      %v2312 = vmul.f32 %v2184, 0.7978846
      %v2313 = vmul.f32 %v2185, 0.7978846
      %v2314 = vmul.f32 %v2186, 0.7978846
      %v2315 = vmul.f32 %v2187, 0.7978846
      %v2316 = vmul.f32 %v2188, 0.7978846
      %v2317 = vmul.f32 %v2189, 0.7978846
      %v2318 = vmul.f32 %v2190, 0.7978846
      %v2319 = vmul.f32 %v2191, 0.7978846
      %v2320 = vmul.f32 %v2192, 0.7978846
      %v2321 = vmul.f32 %v2193, 0.7978846
      %v2322 = vmul.f32 %v2194, 0.7978846
      %v2323 = vmul.f32 %v2195, 0.7978846
      %v2324 = vmul.f32 %v2196, 0.7978846
      %v2325 = vmul.f32 %v2197, 0.7978846
      %v2326 = vmul.f32 %v2198, 0.7978846
      %v2327 = vmul.f32 %v2199, 0.7978846
      %v2328 = vmul.f32 %v2200, 0.7978846
      %v2329 = vmul.f32 %v2201, 0.7978846
      %v2330 = vmul.f32 %v2202, 0.7978846
      %v2331 = vmul.f32 %v2203, 0.7978846
      %v2332 = vmul.f32 %v2204, 0.7978846
      %v2333 = vmul.f32 %v2205, 0.7978846
      %v2334 = vmul.f32 %v2206, 0.7978846
      %v2335 = vmul.f32 %v2207, 0.7978846
      %v2336 = vmul.f32 %v2208, 0.7978846
      %v2337 = vmul.f32 %v2209, 0.7978846
      %v2338 = vmul.f32 %v2210, 0.7978846
      %v2339 = vmul.f32 %v2211, 0.7978846
      %v2340 = vmul.f32 %v2212, 0.7978846
      %v2341 = vmul.f32 %v2213, 0.7978846
      %v2342 = vmul.f32 %v2214, 0.7978846
      %v2343 = vmul.f32 %v2215, 0.7978846
      %v2344 = vmul.f32 %v2216, 0.7978846
      %v2345 = vmul.f32 %v2217, 0.7978846
      %v2346 = vmul.f32 %v2218, 0.7978846
      %v2347 = vmul.f32 %v2219, 0.7978846
      %v2348 = vmul.f32 %v2220, 0.7978846
      %v2349 = vmul.f32 %v2221, 0.7978846
      %v2350 = vmul.f32 %v2222, 0.7978846
      %v2351 = vmul.f32 %v2223, 0.7978846
      %v2352 = vmul.f32 %v2224, 0.7978846
      %v2353 = vmul.f32 %v2225, 0.7978846
      %v2354 = vmul.f32 %v2226, 0.7978846
      %v2355 = vmul.f32 %v2227, 0.7978846
      %v2356 = vmul.f32 %v2228, 0.7978846
      %v2357 = vmul.f32 %v2229, 0.7978846
      %v2358 = vmul.f32 %v2230, 0.7978846
      %v2359 = vmul.f32 %v2231, 0.7978846
      %v2360 = vmul.f32 %v2232, 0.7978846
      %v2361 = vmul.f32 %v2233, 0.7978846
      %v2362 = vmul.f32 %v2234, 0.7978846
      %v2363 = vmul.f32 %v2235, 0.7978846
      %v2364 = vmul.f32 %v2236, 0.7978846
      %v2365 = vmul.f32 %v2237, 0.7978846
      %v2366 = vmul.f32 %v2238, 0.7978846
      %v2367 = vmul.f32 %v2239, 0.7978846
      %v2368 = vmul.f32 %v2240, 0.7978846
      %v2369 = vmul.f32 %v2241, 0.7978846
      %v2370 = vmul.f32 %v2242, 0.7978846
      %v2371 = vmul.f32 %v2243, 0.7978846
      %v2372 = vmul.f32 %v2244, 0.7978846
      %v2373 = vmul.f32 %v2245, 0.7978846
      %v2374 = vmul.f32 %v2246, 0.7978846
      %v2375 = vmul.f32 %v2247, 0.7978846
      %v2376 = vmul.f32 %v2248, 0.7978846
      %v2377 = vmul.f32 %v2249, 0.7978846
      %v2378 = vmul.f32 %v2250, 0.7978846
      %v2379 = vmul.f32 %v2251, 0.7978846
      %v2380 = vmul.f32 %v2252, 0.7978846
      %v2381 = vmul.f32 %v2253, 0.7978846
      %v2382 = vmul.f32 %v2254, 0.7978846
      %v2383 = vmul.f32 %v2255, 0.7978846
      %v2384 = vmul.f32 %v2256, 0.7978846
      %v2385 = vmul.f32 %v2257, 0.7978846
      %v2386 = vmul.f32 %v2258, 0.7978846
      %v2387 = vmul.f32 %v2259, 0.7978846
      %v2388 = vmul.f32 %v2260, 0.7978846
      %v2389 = vmul.f32 %v2261, 0.7978846
      %v2390 = vmul.f32 %v2262, 0.7978846
      %v2391 = vmul.f32 %v2263, 0.7978846
      %v2392 = vmul.f32 %v2264, 0.7978846
      %v2393 = vmul.f32 %v2265, 0.7978846
      %v2394 = vmul.f32 %v2266, 0.7978846
      %v2395 = vmul.f32 %v2267, 0.7978846
      %v2396 = vmul.f32 %v2268, 0.7978846
      %v2397 = vmul.f32 %v2269, 0.7978846
      %v2398 = vmul.f32 %v2270, 0.7978846
      %v2399 = vmul.f32 %v2271, 0.7978846
      %v2400 = vmul.f32 %v2272, 0.7978846
      %v2401 = vmul.f32 %v2273, 0.7978846
      %v2402 = vmul.f32 %v2274, 0.7978846
      %v2403 = vmul.f32 %v2275, 0.7978846
      %v2404 = vtanh.pop %v2276
      %v2405 = vtanh.pop %v2277
      %v2406 = vtanh.pop %v2278
      %v2407 = vtanh.pop %v2279
      %v2408 = vtanh.pop %v2280
      %v2409 = vtanh.pop %v2281
      %v2410 = vtanh.pop %v2282
      %v2411 = vtanh.pop %v2283
      %v2412 = vtanh.pop %v2284
      %v2413 = vtanh.pop %v2285
      %v2414 = vtanh.pop %v2286
      %v2415 = vtanh.pop %v2287
      %v2416 = vtanh.pop %v2288
      %v2417 = vtanh.pop %v2289
      %v2418 = vtanh.pop %v2290
      %v2419 = vtanh.pop %v2291
      %v2420 = vtanh.pop %v2292
      %v2421 = vtanh.pop %v2293
      %v2422 = vtanh.pop %v2294
      %v2423 = vtanh.pop %v2295
      %v2424 = vtanh.pop %v2296
      %v2425 = vtanh.pop %v2297
      %v2426 = vtanh.pop %v2298
      %v2427 = vtanh.pop %v2299
      %v2428 = vtanh.pop %v2300
      %v2429 = vtanh.pop %v2301
      %v2430 = vtanh.pop %v2302
      %v2431 = vtanh.pop %v2303
      %v2432 = vtanh.pop %v2304
      %v2433 = vtanh.pop %v2305
      %v2434 = vtanh.pop %v2306
      %v2435 = vtanh.pop %v2307
      %v2436 = vtanh.pop %v2308
      %v2437 = vtanh.pop %v2309
      %v2438 = vtanh.pop %v2310
      %v2439 = vtanh.pop %v2311
      %v2440 = vtanh.pop %v2312
      %v2441 = vtanh.pop %v2313
      %v2442 = vtanh.pop %v2314
      %v2443 = vtanh.pop %v2315
      %v2444 = vtanh.pop %v2316
      %v2445 = vtanh.pop %v2317
      %v2446 = vtanh.pop %v2318
      %v2447 = vtanh.pop %v2319
      %v2448 = vtanh.pop %v2320
      %v2449 = vtanh.pop %v2321
      %v2450 = vtanh.pop %v2322
      %v2451 = vtanh.pop %v2323
      %v2452 = vtanh.pop %v2324
      %v2453 = vtanh.pop %v2325
      %v2454 = vtanh.pop %v2326
      %v2455 = vtanh.pop %v2327
      %v2456 = vtanh.pop %v2328
      %v2457 = vtanh.pop %v2329
      %v2458 = vtanh.pop %v2330
      %v2459 = vtanh.pop %v2331
      %v2460 = vtanh.pop %v2332
      %v2461 = vtanh.pop %v2333
      %v2462 = vtanh.pop %v2334
      %v2463 = vtanh.pop %v2335
      %v2464 = vtanh.pop %v2336
      %v2465 = vtanh.pop %v2337
      %v2466 = vtanh.pop %v2338
      %v2467 = vtanh.pop %v2339
      %v2468 = vtanh.pop %v2340
      %v2469 = vtanh.pop %v2341
      %v2470 = vtanh.pop %v2342
      %v2471 = vtanh.pop %v2343
      %v2472 = vtanh.pop %v2344
      %v2473 = vtanh.pop %v2345
      %v2474 = vtanh.pop %v2346
      %v2475 = vtanh.pop %v2347
      %v2476 = vtanh.pop %v2348
      %v2477 = vtanh.pop %v2349
      %v2478 = vtanh.pop %v2350
      %v2479 = vtanh.pop %v2351
      %v2480 = vtanh.pop %v2352
      %v2481 = vtanh.pop %v2353
      %v2482 = vtanh.pop %v2354
      %v2483 = vtanh.pop %v2355
      %v2484 = vtanh.pop %v2356
      %v2485 = vtanh.pop %v2357
      %v2486 = vtanh.pop %v2358
      %v2487 = vtanh.pop %v2359
      %v2488 = vtanh.pop %v2360
      %v2489 = vtanh.pop %v2361
      %v2490 = vtanh.pop %v2362
      %v2491 = vtanh.pop %v2363
      %v2492 = vtanh.pop %v2364
      %v2493 = vtanh.pop %v2365
      %v2494 = vtanh.pop %v2366
      %v2495 = vtanh.pop %v2367
      %v2496 = vtanh.pop %v2368
      %v2497 = vtanh.pop %v2369
      %v2498 = vtanh.pop %v2370
      %v2499 = vtanh.pop %v2371
      %v2500 = vtanh.pop %v2372
      %v2501 = vtanh.pop %v2373
      %v2502 = vtanh.pop %v2374
      %v2503 = vtanh.pop %v2375
      %v2504 = vtanh.pop %v2376
      %v2505 = vtanh.pop %v2377
      %v2506 = vtanh.pop %v2378
      %v2507 = vtanh.pop %v2379
      %v2508 = vtanh.pop %v2380
      %v2509 = vtanh.pop %v2381
      %v2510 = vtanh.pop %v2382
      %v2511 = vtanh.pop %v2383
      %v2512 = vtanh.pop %v2384
      %v2513 = vtanh.pop %v2385
      %v2514 = vtanh.pop %v2386
      %v2515 = vtanh.pop %v2387
      %v2516 = vtanh.pop %v2388
      %v2517 = vtanh.pop %v2389
      %v2518 = vtanh.pop %v2390
      %v2519 = vtanh.pop %v2391
      %v2520 = vtanh.pop %v2392
      %v2521 = vtanh.pop %v2393
      %v2522 = vtanh.pop %v2394
      %v2523 = vtanh.pop %v2395
      %v2524 = vtanh.pop %v2396
      %v2525 = vtanh.pop %v2397
      %v2526 = vtanh.pop %v2398
      %v2527 = vtanh.pop %v2399
      %v2528 = vtanh.pop %v2400
      %v2529 = vtanh.pop %v2401
      %v2530 = vtanh.pop %v2402
      %v2531 = vtanh.pop %v2403
      %v2532 = vadd.f32 %v2404, 1.0
      %v2533 = vadd.f32 %v2405, 1.0
      %v2534 = vadd.f32 %v2406, 1.0
      %v2535 = vadd.f32 %v2407, 1.0
      %v2536 = vadd.f32 %v2408, 1.0
      %v2537 = vadd.f32 %v2409, 1.0
      %v2538 = vadd.f32 %v2410, 1.0
      %v2539 = vadd.f32 %v2411, 1.0
      %v2540 = vadd.f32 %v2412, 1.0
      %v2541 = vadd.f32 %v2413, 1.0
      %v2542 = vadd.f32 %v2414, 1.0
      %v2543 = vadd.f32 %v2415, 1.0
      %v2544 = vadd.f32 %v2416, 1.0
      %v2545 = vadd.f32 %v2417, 1.0
      %v2546 = vadd.f32 %v2418, 1.0
      %v2547 = vadd.f32 %v2419, 1.0
      %v2548 = vadd.f32 %v2420, 1.0
      %v2549 = vadd.f32 %v2421, 1.0
      %v2550 = vadd.f32 %v2422, 1.0
      %v2551 = vadd.f32 %v2423, 1.0
      %v2552 = vadd.f32 %v2424, 1.0
      %v2553 = vadd.f32 %v2425, 1.0
      %v2554 = vadd.f32 %v2426, 1.0
      %v2555 = vadd.f32 %v2427, 1.0
      %v2556 = vadd.f32 %v2428, 1.0
      %v2557 = vadd.f32 %v2429, 1.0
      %v2558 = vadd.f32 %v2430, 1.0
      %v2559 = vadd.f32 %v2431, 1.0
      %v2560 = vadd.f32 %v2432, 1.0
      %v2561 = vadd.f32 %v2433, 1.0
      %v2562 = vadd.f32 %v2434, 1.0
      %v2563 = vadd.f32 %v2435, 1.0
      %v2564 = vadd.f32 %v2436, 1.0
      %v2565 = vadd.f32 %v2437, 1.0
      %v2566 = vadd.f32 %v2438, 1.0
      %v2567 = vadd.f32 %v2439, 1.0
      %v2568 = vadd.f32 %v2440, 1.0
      %v2569 = vadd.f32 %v2441, 1.0
      %v2570 = vadd.f32 %v2442, 1.0
      %v2571 = vadd.f32 %v2443, 1.0
      %v2572 = vadd.f32 %v2444, 1.0
      %v2573 = vadd.f32 %v2445, 1.0
      %v2574 = vadd.f32 %v2446, 1.0
      %v2575 = vadd.f32 %v2447, 1.0
      %v2576 = vadd.f32 %v2448, 1.0
      %v2577 = vadd.f32 %v2449, 1.0
      %v2578 = vadd.f32 %v2450, 1.0
      %v2579 = vadd.f32 %v2451, 1.0
      %v2580 = vadd.f32 %v2452, 1.0
      %v2581 = vadd.f32 %v2453, 1.0
      %v2582 = vadd.f32 %v2454, 1.0
      %v2583 = vadd.f32 %v2455, 1.0
      %v2584 = vadd.f32 %v2456, 1.0
      %v2585 = vadd.f32 %v2457, 1.0
      %v2586 = vadd.f32 %v2458, 1.0
      %v2587 = vadd.f32 %v2459, 1.0
      %v2588 = vadd.f32 %v2460, 1.0
      %v2589 = vadd.f32 %v2461, 1.0
      %v2590 = vadd.f32 %v2462, 1.0
      %v2591 = vadd.f32 %v2463, 1.0
      %v2592 = vadd.f32 %v2464, 1.0
      %v2593 = vadd.f32 %v2465, 1.0
      %v2594 = vadd.f32 %v2466, 1.0
      %v2595 = vadd.f32 %v2467, 1.0
      %v2596 = vadd.f32 %v2468, 1.0
      %v2597 = vadd.f32 %v2469, 1.0
      %v2598 = vadd.f32 %v2470, 1.0
      %v2599 = vadd.f32 %v2471, 1.0
      %v2600 = vadd.f32 %v2472, 1.0
      %v2601 = vadd.f32 %v2473, 1.0
      %v2602 = vadd.f32 %v2474, 1.0
      %v2603 = vadd.f32 %v2475, 1.0
      %v2604 = vadd.f32 %v2476, 1.0
      %v2605 = vadd.f32 %v2477, 1.0
      %v2606 = vadd.f32 %v2478, 1.0
      %v2607 = vadd.f32 %v2479, 1.0
      %v2608 = vadd.f32 %v2480, 1.0
      %v2609 = vadd.f32 %v2481, 1.0
      %v2610 = vadd.f32 %v2482, 1.0
      %v2611 = vadd.f32 %v2483, 1.0
      %v2612 = vadd.f32 %v2484, 1.0
      %v2613 = vadd.f32 %v2485, 1.0
      %v2614 = vadd.f32 %v2486, 1.0
      %v2615 = vadd.f32 %v2487, 1.0
      %v2616 = vadd.f32 %v2488, 1.0
      %v2617 = vadd.f32 %v2489, 1.0
      %v2618 = vadd.f32 %v2490, 1.0
      %v2619 = vadd.f32 %v2491, 1.0
      %v2620 = vadd.f32 %v2492, 1.0
      %v2621 = vadd.f32 %v2493, 1.0
      %v2622 = vadd.f32 %v2494, 1.0
      %v2623 = vadd.f32 %v2495, 1.0
      %v2624 = vadd.f32 %v2496, 1.0
      %v2625 = vadd.f32 %v2497, 1.0
      %v2626 = vadd.f32 %v2498, 1.0
      %v2627 = vadd.f32 %v2499, 1.0
      %v2628 = vadd.f32 %v2500, 1.0
      %v2629 = vadd.f32 %v2501, 1.0
      %v2630 = vadd.f32 %v2502, 1.0
      %v2631 = vadd.f32 %v2503, 1.0
      %v2632 = vadd.f32 %v2504, 1.0
      %v2633 = vadd.f32 %v2505, 1.0
      %v2634 = vadd.f32 %v2506, 1.0
      %v2635 = vadd.f32 %v2507, 1.0
      %v2636 = vadd.f32 %v2508, 1.0
      %v2637 = vadd.f32 %v2509, 1.0
      %v2638 = vadd.f32 %v2510, 1.0
      %v2639 = vadd.f32 %v2511, 1.0
      %v2640 = vadd.f32 %v2512, 1.0
      %v2641 = vadd.f32 %v2513, 1.0
      %v2642 = vadd.f32 %v2514, 1.0
      %v2643 = vadd.f32 %v2515, 1.0
      %v2644 = vadd.f32 %v2516, 1.0
      %v2645 = vadd.f32 %v2517, 1.0
      %v2646 = vadd.f32 %v2518, 1.0
      %v2647 = vadd.f32 %v2519, 1.0
      %v2648 = vadd.f32 %v2520, 1.0
      %v2649 = vadd.f32 %v2521, 1.0
      %v2650 = vadd.f32 %v2522, 1.0
      %v2651 = vadd.f32 %v2523, 1.0
      %v2652 = vadd.f32 %v2524, 1.0
      %v2653 = vadd.f32 %v2525, 1.0
      %v2654 = vadd.f32 %v2526, 1.0
      %v2655 = vadd.f32 %v2527, 1.0
      %v2656 = vadd.f32 %v2528, 1.0
      %v2657 = vadd.f32 %v2529, 1.0
      %v2658 = vadd.f32 %v2530, 1.0
      %v2659 = vadd.f32 %v2531, 1.0
      %v2660 = vmul.f32 %v1636, %v2532
      %v2661 = vmul.f32 %v1637, %v2533
      %v2662 = vmul.f32 %v1638, %v2534
      %v2663 = vmul.f32 %v1639, %v2535
      %v2664 = vmul.f32 %v1640, %v2536
      %v2665 = vmul.f32 %v1641, %v2537
      %v2666 = vmul.f32 %v1642, %v2538
      %v2667 = vmul.f32 %v1643, %v2539
      %v2668 = vmul.f32 %v1644, %v2540
      %v2669 = vmul.f32 %v1645, %v2541
      %v2670 = vmul.f32 %v1646, %v2542
      %v2671 = vmul.f32 %v1647, %v2543
      %v2672 = vmul.f32 %v1648, %v2544
      %v2673 = vmul.f32 %v1649, %v2545
      %v2674 = vmul.f32 %v1650, %v2546
      %v2675 = vmul.f32 %v1651, %v2547
      %v2676 = vmul.f32 %v1652, %v2548
      %v2677 = vmul.f32 %v1653, %v2549
      %v2678 = vmul.f32 %v1654, %v2550
      %v2679 = vmul.f32 %v1655, %v2551
      %v2680 = vmul.f32 %v1656, %v2552
      %v2681 = vmul.f32 %v1657, %v2553
      %v2682 = vmul.f32 %v1658, %v2554
      %v2683 = vmul.f32 %v1659, %v2555
      %v2684 = vmul.f32 %v1660, %v2556
      %v2685 = vmul.f32 %v1661, %v2557
      %v2686 = vmul.f32 %v1662, %v2558
      %v2687 = vmul.f32 %v1663, %v2559
      %v2688 = vmul.f32 %v1664, %v2560
      %v2689 = vmul.f32 %v1665, %v2561
      %v2690 = vmul.f32 %v1666, %v2562
      %v2691 = vmul.f32 %v1667, %v2563
      %v2692 = vmul.f32 %v1668, %v2564
      %v2693 = vmul.f32 %v1669, %v2565
      %v2694 = vmul.f32 %v1670, %v2566
      %v2695 = vmul.f32 %v1671, %v2567
      %v2696 = vmul.f32 %v1672, %v2568
      %v2697 = vmul.f32 %v1673, %v2569
      %v2698 = vmul.f32 %v1674, %v2570
      %v2699 = vmul.f32 %v1675, %v2571
      %v2700 = vmul.f32 %v1676, %v2572
      %v2701 = vmul.f32 %v1677, %v2573
      %v2702 = vmul.f32 %v1678, %v2574
      %v2703 = vmul.f32 %v1679, %v2575
      %v2704 = vmul.f32 %v1680, %v2576
      %v2705 = vmul.f32 %v1681, %v2577
      %v2706 = vmul.f32 %v1682, %v2578
      %v2707 = vmul.f32 %v1683, %v2579
      %v2708 = vmul.f32 %v1684, %v2580
      %v2709 = vmul.f32 %v1685, %v2581
      %v2710 = vmul.f32 %v1686, %v2582
      %v2711 = vmul.f32 %v1687, %v2583
      %v2712 = vmul.f32 %v1688, %v2584
      %v2713 = vmul.f32 %v1689, %v2585
      %v2714 = vmul.f32 %v1690, %v2586
      %v2715 = vmul.f32 %v1691, %v2587
      %v2716 = vmul.f32 %v1692, %v2588
      %v2717 = vmul.f32 %v1693, %v2589
      %v2718 = vmul.f32 %v1694, %v2590
      %v2719 = vmul.f32 %v1695, %v2591
      %v2720 = vmul.f32 %v1696, %v2592
      %v2721 = vmul.f32 %v1697, %v2593
      %v2722 = vmul.f32 %v1698, %v2594
      %v2723 = vmul.f32 %v1699, %v2595
      %v2724 = vmul.f32 %v1700, %v2596
      %v2725 = vmul.f32 %v1701, %v2597
      %v2726 = vmul.f32 %v1702, %v2598
      %v2727 = vmul.f32 %v1703, %v2599
      %v2728 = vmul.f32 %v1704, %v2600
      %v2729 = vmul.f32 %v1705, %v2601
      %v2730 = vmul.f32 %v1706, %v2602
      %v2731 = vmul.f32 %v1707, %v2603
      %v2732 = vmul.f32 %v1708, %v2604
      %v2733 = vmul.f32 %v1709, %v2605
      %v2734 = vmul.f32 %v1710, %v2606
      %v2735 = vmul.f32 %v1711, %v2607
      %v2736 = vmul.f32 %v1712, %v2608
      %v2737 = vmul.f32 %v1713, %v2609
      %v2738 = vmul.f32 %v1714, %v2610
      %v2739 = vmul.f32 %v1715, %v2611
      %v2740 = vmul.f32 %v1716, %v2612
      %v2741 = vmul.f32 %v1717, %v2613
      %v2742 = vmul.f32 %v1718, %v2614
      %v2743 = vmul.f32 %v1719, %v2615
      %v2744 = vmul.f32 %v1720, %v2616
      %v2745 = vmul.f32 %v1721, %v2617
      %v2746 = vmul.f32 %v1722, %v2618
      %v2747 = vmul.f32 %v1723, %v2619
      %v2748 = vmul.f32 %v1724, %v2620
      %v2749 = vmul.f32 %v1725, %v2621
      %v2750 = vmul.f32 %v1726, %v2622
      %v2751 = vmul.f32 %v1727, %v2623
      %v2752 = vmul.f32 %v1728, %v2624
      %v2753 = vmul.f32 %v1729, %v2625
      %v2754 = vmul.f32 %v1730, %v2626
      %v2755 = vmul.f32 %v1731, %v2627
      %v2756 = vmul.f32 %v1732, %v2628
      %v2757 = vmul.f32 %v1733, %v2629
      %v2758 = vmul.f32 %v1734, %v2630
      %v2759 = vmul.f32 %v1735, %v2631
      %v2760 = vmul.f32 %v1736, %v2632
      %v2761 = vmul.f32 %v1737, %v2633
      %v2762 = vmul.f32 %v1738, %v2634
      %v2763 = vmul.f32 %v1739, %v2635
      %v2764 = vmul.f32 %v1740, %v2636
      %v2765 = vmul.f32 %v1741, %v2637
      %v2766 = vmul.f32 %v1742, %v2638
      %v2767 = vmul.f32 %v1743, %v2639
      %v2768 = vmul.f32 %v1744, %v2640
      %v2769 = vmul.f32 %v1745, %v2641
      %v2770 = vmul.f32 %v1746, %v2642
      %v2771 = vmul.f32 %v1747, %v2643
      %v2772 = vmul.f32 %v1748, %v2644
      %v2773 = vmul.f32 %v1749, %v2645
      %v2774 = vmul.f32 %v1750, %v2646
      %v2775 = vmul.f32 %v1751, %v2647
      %v2776 = vmul.f32 %v1752, %v2648
      %v2777 = vmul.f32 %v1753, %v2649
      %v2778 = vmul.f32 %v1754, %v2650
      %v2779 = vmul.f32 %v1755, %v2651
      %v2780 = vmul.f32 %v1756, %v2652
      %v2781 = vmul.f32 %v1757, %v2653
      %v2782 = vmul.f32 %v1758, %v2654
      %v2783 = vmul.f32 %v1759, %v2655
      %v2784 = vmul.f32 %v1760, %v2656
      %v2785 = vmul.f32 %v1761, %v2657
      %v2786 = vmul.f32 %v1762, %v2658
      %v2787 = vmul.f32 %v1763, %v2659
      %v2788 = vld [vmem:[#allocation2] sm:$0xff]
      %v2789 = vld [vmem:[#allocation2 + $0x8] sm:$0xff]
      %v2790 = vld [vmem:[#allocation2 + $0x10] sm:$0xff]
      %v2791 = vld [vmem:[#allocation2 + $0x18] sm:$0xff]
      %v2792 = vld [vmem:[#allocation2 + $0x20] sm:$0xff]
      %v2793 = vld [vmem:[#allocation2 + $0x28] sm:$0xff]
      %v2794 = vld [vmem:[#allocation2 + $0x30] sm:$0xff]
      %v2795 = vld [vmem:[#allocation2 + $0x38] sm:$0xff]
      %v2796 = vld [vmem:[#allocation2 + $0x40] sm:$0xff]
      %v2797 = vld [vmem:[#allocation2 + $0x48] sm:$0xff]
      %v2798 = vld [vmem:[#allocation2 + $0x50] sm:$0xff]
      %v2799 = vld [vmem:[#allocation2 + $0x58] sm:$0xff]
      %v2800 = vld [vmem:[#allocation2 + $0x60] sm:$0xff]
      %v2801 = vld [vmem:[#allocation2 + $0x68] sm:$0xff]
      %v2802 = vld [vmem:[#allocation2 + $0x70] sm:$0xff]
      %v2803 = vld [vmem:[#allocation2 + $0x78] sm:$0xff]
      %v2804 = vld [vmem:[#allocation2 + $0x80] sm:$0xff]
      %v2805 = vld [vmem:[#allocation2 + $0x88] sm:$0xff]
      %v2806 = vld [vmem:[#allocation2 + $0x90] sm:$0xff]
      %v2807 = vld [vmem:[#allocation2 + $0x98] sm:$0xff]
      %v2808 = vld [vmem:[#allocation2 + $0xa0] sm:$0xff]
      %v2809 = vld [vmem:[#allocation2 + $0xa8] sm:$0xff]
      %v2810 = vld [vmem:[#allocation2 + $0xb0] sm:$0xff]
      %v2811 = vld [vmem:[#allocation2 + $0xb8] sm:$0xff]
      %v2812 = vld [vmem:[#allocation2 + $0xc0] sm:$0xff]
      %v2813 = vld [vmem:[#allocation2 + $0xc8] sm:$0xff]
      %v2814 = vld [vmem:[#allocation2 + $0xd0] sm:$0xff]
      %v2815 = vld [vmem:[#allocation2 + $0xd8] sm:$0xff]
      %v2816 = vld [vmem:[#allocation2 + $0xe0] sm:$0xff]
      %v2817 = vld [vmem:[#allocation2 + $0xe8] sm:$0xff]
      %v2818 = vld [vmem:[#allocation2 + $0xf0] sm:$0xff]
      %v2819 = vld [vmem:[#allocation2 + $0xf8] sm:$0xff]
      %v2820 = vld [vmem:[#allocation2 + $0x100] sm:$0xff]
      %v2821 = vld [vmem:[#allocation2 + $0x108] sm:$0xff]
      %v2822 = vld [vmem:[#allocation2 + $0x110] sm:$0xff]
      %v2823 = vld [vmem:[#allocation2 + $0x118] sm:$0xff]
      %v2824 = vld [vmem:[#allocation2 + $0x120] sm:$0xff]
      %v2825 = vld [vmem:[#allocation2 + $0x128] sm:$0xff]
      %v2826 = vld [vmem:[#allocation2 + $0x130] sm:$0xff]
      %v2827 = vld [vmem:[#allocation2 + $0x138] sm:$0xff]
      %v2828 = vld [vmem:[#allocation2 + $0x140] sm:$0xff]
      %v2829 = vld [vmem:[#allocation2 + $0x148] sm:$0xff]
      %v2830 = vld [vmem:[#allocation2 + $0x150] sm:$0xff]
      %v2831 = vld [vmem:[#allocation2 + $0x158] sm:$0xff]
      %v2832 = vld [vmem:[#allocation2 + $0x160] sm:$0xff]
      %v2833 = vld [vmem:[#allocation2 + $0x168] sm:$0xff]
      %v2834 = vld [vmem:[#allocation2 + $0x170] sm:$0xff]
      %v2835 = vld [vmem:[#allocation2 + $0x178] sm:$0xff]
      %v2836 = vld [vmem:[#allocation2 + $0x180] sm:$0xff]
      %v2837 = vld [vmem:[#allocation2 + $0x188] sm:$0xff]
      %v2838 = vld [vmem:[#allocation2 + $0x190] sm:$0xff]
      %v2839 = vld [vmem:[#allocation2 + $0x198] sm:$0xff]
      %v2840 = vld [vmem:[#allocation2 + $0x1a0] sm:$0xff]
      %v2841 = vld [vmem:[#allocation2 + $0x1a8] sm:$0xff]
      %v2842 = vld [vmem:[#allocation2 + $0x1b0] sm:$0xff]
      %v2843 = vld [vmem:[#allocation2 + $0x1b8] sm:$0xff]
      %v2844 = vld [vmem:[#allocation2 + $0x1c0] sm:$0xff]
      %v2845 = vld [vmem:[#allocation2 + $0x1c8] sm:$0xff]
      %v2846 = vld [vmem:[#allocation2 + $0x1d0] sm:$0xff]
      %v2847 = vld [vmem:[#allocation2 + $0x1d8] sm:$0xff]
      %v2848 = vld [vmem:[#allocation2 + $0x1e0] sm:$0xff]
      %v2849 = vld [vmem:[#allocation2 + $0x1e8] sm:$0xff]
      %v2850 = vld [vmem:[#allocation2 + $0x1f0] sm:$0xff]
      %v2851 = vld [vmem:[#allocation2 + $0x1f8] sm:$0xff]
      %v2852 = vld [vmem:[#allocation2 + $0x200] sm:$0xff]
      %v2853 = vld [vmem:[#allocation2 + $0x208] sm:$0xff]
      %v2854 = vld [vmem:[#allocation2 + $0x210] sm:$0xff]
      %v2855 = vld [vmem:[#allocation2 + $0x218] sm:$0xff]
      %v2856 = vld [vmem:[#allocation2 + $0x220] sm:$0xff]
      %v2857 = vld [vmem:[#allocation2 + $0x228] sm:$0xff]
      %v2858 = vld [vmem:[#allocation2 + $0x230] sm:$0xff]
      %v2859 = vld [vmem:[#allocation2 + $0x238] sm:$0xff]
      %v2860 = vld [vmem:[#allocation2 + $0x240] sm:$0xff]
      %v2861 = vld [vmem:[#allocation2 + $0x248] sm:$0xff]
      %v2862 = vld [vmem:[#allocation2 + $0x250] sm:$0xff]
      %v2863 = vld [vmem:[#allocation2 + $0x258] sm:$0xff]
      %v2864 = vld [vmem:[#allocation2 + $0x260] sm:$0xff]
      %v2865 = vld [vmem:[#allocation2 + $0x268] sm:$0xff]
      %v2866 = vld [vmem:[#allocation2 + $0x270] sm:$0xff]
      %v2867 = vld [vmem:[#allocation2 + $0x278] sm:$0xff]
      %v2868 = vld [vmem:[#allocation2 + $0x280] sm:$0xff]
      %v2869 = vld [vmem:[#allocation2 + $0x288] sm:$0xff]
      %v2870 = vld [vmem:[#allocation2 + $0x290] sm:$0xff]
      %v2871 = vld [vmem:[#allocation2 + $0x298] sm:$0xff]
      %v2872 = vld [vmem:[#allocation2 + $0x2a0] sm:$0xff]
      %v2873 = vld [vmem:[#allocation2 + $0x2a8] sm:$0xff]
      %v2874 = vld [vmem:[#allocation2 + $0x2b0] sm:$0xff]
      %v2875 = vld [vmem:[#allocation2 + $0x2b8] sm:$0xff]
      %v2876 = vld [vmem:[#allocation2 + $0x2c0] sm:$0xff]
      %v2877 = vld [vmem:[#allocation2 + $0x2c8] sm:$0xff]
      %v2878 = vld [vmem:[#allocation2 + $0x2d0] sm:$0xff]
      %v2879 = vld [vmem:[#allocation2 + $0x2d8] sm:$0xff]
      %v2880 = vld [vmem:[#allocation2 + $0x2e0] sm:$0xff]
      %v2881 = vld [vmem:[#allocation2 + $0x2e8] sm:$0xff]
      %v2882 = vld [vmem:[#allocation2 + $0x2f0] sm:$0xff]
      %v2883 = vld [vmem:[#allocation2 + $0x2f8] sm:$0xff]
      %v2884 = vld [vmem:[#allocation2 + $0x300] sm:$0xff]
      %v2885 = vld [vmem:[#allocation2 + $0x308] sm:$0xff]
      %v2886 = vld [vmem:[#allocation2 + $0x310] sm:$0xff]
      %v2887 = vld [vmem:[#allocation2 + $0x318] sm:$0xff]
      %v2888 = vld [vmem:[#allocation2 + $0x320] sm:$0xff]
      %v2889 = vld [vmem:[#allocation2 + $0x328] sm:$0xff]
      %v2890 = vld [vmem:[#allocation2 + $0x330] sm:$0xff]
      %v2891 = vld [vmem:[#allocation2 + $0x338] sm:$0xff]
      %v2892 = vld [vmem:[#allocation2 + $0x340] sm:$0xff]
      %v2893 = vld [vmem:[#allocation2 + $0x348] sm:$0xff]
      %v2894 = vld [vmem:[#allocation2 + $0x350] sm:$0xff]
      %v2895 = vld [vmem:[#allocation2 + $0x358] sm:$0xff]
      %v2896 = vld [vmem:[#allocation2 + $0x360] sm:$0xff]
      %v2897 = vld [vmem:[#allocation2 + $0x368] sm:$0xff]
      %v2898 = vld [vmem:[#allocation2 + $0x370] sm:$0xff]
      %v2899 = vld [vmem:[#allocation2 + $0x378] sm:$0xff]
      %v2900 = vld [vmem:[#allocation2 + $0x380] sm:$0xff]
      %v2901 = vld [vmem:[#allocation2 + $0x388] sm:$0xff]
      %v2902 = vld [vmem:[#allocation2 + $0x390] sm:$0xff]
      %v2903 = vld [vmem:[#allocation2 + $0x398] sm:$0xff]
      %v2904 = vld [vmem:[#allocation2 + $0x3a0] sm:$0xff]
      %v2905 = vld [vmem:[#allocation2 + $0x3a8] sm:$0xff]
      %v2906 = vld [vmem:[#allocation2 + $0x3b0] sm:$0xff]
      %v2907 = vld [vmem:[#allocation2 + $0x3b8] sm:$0xff]
      %v2908 = vld [vmem:[#allocation2 + $0x3c0] sm:$0xff]
      %v2909 = vld [vmem:[#allocation2 + $0x3c8] sm:$0xff]
      %v2910 = vld [vmem:[#allocation2 + $0x3d0] sm:$0xff]
      %v2911 = vld [vmem:[#allocation2 + $0x3d8] sm:$0xff]
      %v2912 = vld [vmem:[#allocation2 + $0x3e0] sm:$0xff]
      %v2913 = vld [vmem:[#allocation2 + $0x3e8] sm:$0xff]
      %v2914 = vld [vmem:[#allocation2 + $0x3f0] sm:$0xff]
      %v2915 = vld [vmem:[#allocation2 + $0x3f8] sm:$0xff]
      %v2916 = vpack.c.bf16 %v2661, %v2660
      %v2917 = vpack.c.bf16 %v2663, %v2662
      %v2918 = vpack.c.bf16 %v2665, %v2664
      %v2919 = vpack.c.bf16 %v2667, %v2666
      %v2920 = vpack.c.bf16 %v2669, %v2668
      %v2921 = vpack.c.bf16 %v2671, %v2670
      %v2922 = vpack.c.bf16 %v2673, %v2672
      %v2923 = vpack.c.bf16 %v2675, %v2674
      %v2924 = vpack.c.bf16 %v2677, %v2676
      %v2925 = vpack.c.bf16 %v2679, %v2678
      %v2926 = vpack.c.bf16 %v2681, %v2680
      %v2927 = vpack.c.bf16 %v2683, %v2682
      %v2928 = vpack.c.bf16 %v2685, %v2684
      %v2929 = vpack.c.bf16 %v2687, %v2686
      %v2930 = vpack.c.bf16 %v2689, %v2688
      %v2931 = vpack.c.bf16 %v2691, %v2690
      %v2932 = vpack.c.bf16 %v2693, %v2692
      %v2933 = vpack.c.bf16 %v2695, %v2694
      %v2934 = vpack.c.bf16 %v2697, %v2696
      %v2935 = vpack.c.bf16 %v2699, %v2698
      %v2936 = vpack.c.bf16 %v2701, %v2700
      %v2937 = vpack.c.bf16 %v2703, %v2702
      %v2938 = vpack.c.bf16 %v2705, %v2704
      %v2939 = vpack.c.bf16 %v2707, %v2706
      %v2940 = vpack.c.bf16 %v2709, %v2708
      %v2941 = vpack.c.bf16 %v2711, %v2710
      %v2942 = vpack.c.bf16 %v2713, %v2712
      %v2943 = vpack.c.bf16 %v2715, %v2714
      %v2944 = vpack.c.bf16 %v2717, %v2716
      %v2945 = vpack.c.bf16 %v2719, %v2718
      %v2946 = vpack.c.bf16 %v2721, %v2720
      %v2947 = vpack.c.bf16 %v2723, %v2722
      %v2948 = vpack.c.bf16 %v2725, %v2724
      %v2949 = vpack.c.bf16 %v2727, %v2726
      %v2950 = vpack.c.bf16 %v2729, %v2728
      %v2951 = vpack.c.bf16 %v2731, %v2730
      %v2952 = vpack.c.bf16 %v2733, %v2732
      %v2953 = vpack.c.bf16 %v2735, %v2734
      %v2954 = vpack.c.bf16 %v2737, %v2736
      %v2955 = vpack.c.bf16 %v2739, %v2738
      %v2956 = vpack.c.bf16 %v2741, %v2740
      %v2957 = vpack.c.bf16 %v2743, %v2742
      %v2958 = vpack.c.bf16 %v2745, %v2744
      %v2959 = vpack.c.bf16 %v2747, %v2746
      %v2960 = vpack.c.bf16 %v2749, %v2748
      %v2961 = vpack.c.bf16 %v2751, %v2750
      %v2962 = vpack.c.bf16 %v2753, %v2752
      %v2963 = vpack.c.bf16 %v2755, %v2754
      %v2964 = vpack.c.bf16 %v2757, %v2756
      %v2965 = vpack.c.bf16 %v2759, %v2758
      %v2966 = vpack.c.bf16 %v2761, %v2760
      %v2967 = vpack.c.bf16 %v2763, %v2762
      %v2968 = vpack.c.bf16 %v2765, %v2764
      %v2969 = vpack.c.bf16 %v2767, %v2766
      %v2970 = vpack.c.bf16 %v2769, %v2768
      %v2971 = vpack.c.bf16 %v2771, %v2770
      %v2972 = vpack.c.bf16 %v2773, %v2772
      %v2973 = vpack.c.bf16 %v2775, %v2774
      %v2974 = vpack.c.bf16 %v2777, %v2776
      %v2975 = vpack.c.bf16 %v2779, %v2778
      %v2976 = vpack.c.bf16 %v2781, %v2780
      %v2977 = vpack.c.bf16 %v2783, %v2782
      %v2978 = vpack.c.bf16 %v2785, %v2784
      %v2979 = vpack.c.bf16 %v2787, %v2786
      %v2980 = vld [vmem:[%s285] sm:$0xf]
      %v2981 = vld [vmem:[%s285 + $0x4] sm:$0xf]
      %v2982 = vld [vmem:[%s285 + $0x8] sm:$0xf]
      %v2983 = vld [vmem:[%s285 + $0xc] sm:$0xf]
      %v2984 = vld [vmem:[%s285 + $0x10] sm:$0xf]
      %v2985 = vld [vmem:[%s285 + $0x14] sm:$0xf]
      %v2986 = vld [vmem:[%s285 + $0x18] sm:$0xf]
      %v2987 = vld [vmem:[%s285 + $0x1c] sm:$0xf]
      %v2988 = vld [vmem:[%s285 + $0x20] sm:$0xf]
      %v2989 = vld [vmem:[%s285 + $0x24] sm:$0xf]
      %v2990 = vld [vmem:[%s285 + $0x28] sm:$0xf]
      %v2991 = vld [vmem:[%s285 + $0x2c] sm:$0xf]
      %v2992 = vld [vmem:[%s285 + $0x30] sm:$0xf]
      %v2993 = vld [vmem:[%s285 + $0x34] sm:$0xf]
      %v2994 = vld [vmem:[%s285 + $0x38] sm:$0xf]
      %v2995 = vld [vmem:[%s285 + $0x3c] sm:$0xf]
      %v3012 = vunpack.c.l.b16 %v2980
      %v3013 = vunpack.c.l.b16 %v2981
      %v3014 = vunpack.c.l.b16 %v2982
      %v3015 = vunpack.c.l.b16 %v2983
      %v3016 = vunpack.c.l.b16 %v2984
      %v3017 = vunpack.c.l.b16 %v2985
      %v3018 = vunpack.c.l.b16 %v2986
      %v3019 = vunpack.c.l.b16 %v2987
      %v3020 = vunpack.c.l.b16 %v2988
      %v3021 = vunpack.c.l.b16 %v2989
      %v3022 = vunpack.c.l.b16 %v2990
      %v3023 = vunpack.c.l.b16 %v2991
      %v3024 = vunpack.c.l.b16 %v2992
      %v3025 = vunpack.c.l.b16 %v2993
      %v3026 = vunpack.c.l.b16 %v2994
      %v3027 = vunpack.c.l.b16 %v2995
      %v3028 = vpack.c.b16 %v3013, %v3012
      %v3029 = vpack.c.b16 %v3015, %v3014
      %v3030 = vpack.c.b16 %v3017, %v3016
      %v3031 = vpack.c.b16 %v3019, %v3018
      %v3032 = vpack.c.b16 %v3021, %v3020
      %v3033 = vpack.c.b16 %v3023, %v3022
      %v3034 = vpack.c.b16 %v3025, %v3024
      %v3035 = vpack.c.b16 %v3027, %v3026
      %3044 = vmatprep.subr.bf16.mxu0 0
      %3045 = vmatpush1.bf16.msra.mxu0 %v3028
      %3046 = vmatprep.subr.bf16.mxu0 0
      %3047 = vmatpush1.bf16.msra.mxu0 %v3029
      %3048 = vmatprep.subr.bf16.mxu0 0
      %3049 = vmatpush1.bf16.msra.mxu0 %v3030
      %3050 = vmatprep.subr.bf16.mxu0 0
      %3051 = vmatpush1.bf16.msra.mxu0 %v3031
      %3052 = vmatprep.subr.bf16.mxu0 0
      %3053 = vmatpush1.bf16.msra.mxu0 %v3032
      %3054 = vmatprep.subr.bf16.mxu0 0
      %3055 = vmatpush1.bf16.msra.mxu0 %v3033
      %3056 = vmatprep.subr.bf16.mxu0 0
      %3057 = vmatpush1.bf16.msra.mxu0 %v3034
      %3058 = vmatprep.subr.bf16.mxu0 0
      %3059 = vmatpush1.bf16.msra.mxu0 %v3035
      %3060 = vmatprep.subr.bf16.mxu0 0
      %3061 = vmatpush1.bf16.msra.mxu0 0
      %3062 = vmatprep.subr.bf16.mxu0 0
      %3063 = vmatpush1.bf16.msra.mxu0 0
      %3064 = vmatprep.subr.bf16.mxu0 0
      %3065 = vmatpush1.bf16.msra.mxu0 0
      %3066 = vmatprep.subr.bf16.mxu0 0
      %3067 = vmatpush1.bf16.msra.mxu0 0
      %3068 = vmatprep.subr.bf16.mxu0 0
      %3069 = vmatpush1.bf16.msra.mxu0 0
      %3070 = vmatprep.subr.bf16.mxu0 0
      %3071 = vmatpush1.bf16.msra.mxu0 0
      %3072 = vmatprep.subr.bf16.mxu0 0
      %3073 = vmatpush1.bf16.msra.mxu0 0
      %3074 = vmatprep.subr.bf16.mxu0 0
      %3075 = vmatpush1.bf16.msra.mxu0 0
      %3076 = vmatprep.mubr.bf16.mxu0 0
      %3077 = vmatmul.mubr.bf16.gmra.mrb[0].mxu0 %v2916
      %v3078 = vpop.f32.mrb[0].mxu0
      %v3079 = vadd.f32 0.0, %v3078
      %v3080 = vpop.f32.mrb[0].mxu0
      %v3081 = vpop.f32.mrb[0].mxu0
      %v3082 = vadd.f32 0.0, %v3081
      %v3083 = vpop.f32.mrb[0].mxu0
      %3084 = vmatprep.mubr.bf16.mxu0 0
      %3085 = vmatmul.mubr.bf16.gmra.mrb[0].mxu0 %v2917
      %v3086 = vpop.f32.mrb[0].mxu0
      %v3087 = vadd.f32 0.0, %v3086
      %v3088 = vpop.f32.mrb[0].mxu0
      %v3089 = vpop.f32.mrb[0].mxu0
      %v3090 = vadd.f32 0.0, %v3089
      %v3091 = vpop.f32.mrb[0].mxu0
      %3092 = vmatprep.mubr.bf16.mxu0 0
      %3093 = vmatmul.mubr.bf16.gmra.mrb[0].mxu0 %v2918
      %v3094 = vpop.f32.mrb[0].mxu0
      %v3095 = vadd.f32 0.0, %v3094
      %v3096 = vpop.f32.mrb[0].mxu0
      %v3097 = vpop.f32.mrb[0].mxu0
      %v3098 = vadd.f32 0.0, %v3097
      %v3099 = vpop.f32.mrb[0].mxu0
      %3100 = vmatprep.mubr.bf16.mxu0 0
      %3101 = vmatmul.mubr.bf16.gmra.mrb[0].mxu0 %v2919
      %v3102 = vpop.f32.mrb[0].mxu0
      %v3103 = vadd.f32 0.0, %v3102
      %v3104 = vpop.f32.mrb[0].mxu0
      %v3105 = vpop.f32.mrb[0].mxu0
      %v3106 = vadd.f32 0.0, %v3105
      %v3107 = vpop.f32.mrb[0].mxu0
      %3108 = vmatprep.mubr.bf16.mxu0 0
      %3109 = vmatmul.mubr.bf16.gmra.mrb[0].mxu0 %v2920
      %v3110 = vpop.f32.mrb[0].mxu0
      %v3111 = vadd.f32 0.0, %v3110
      %v3112 = vpop.f32.mrb[0].mxu0
      %v3113 = vpop.f32.mrb[0].mxu0
      %v3114 = vadd.f32 0.0, %v3113
      %v3115 = vpop.f32.mrb[0].mxu0
      %3116 = vmatprep.mubr.bf16.mxu0 0
      %3117 = vmatmul.mubr.bf16.gmra.mrb[0].mxu0 %v2921
      %v3118 = vpop.f32.mrb[0].mxu0
      %v3119 = vadd.f32 0.0, %v3118
      %v3120 = vpop.f32.mrb[0].mxu0
      %v3121 = vpop.f32.mrb[0].mxu0
      %v3122 = vadd.f32 0.0, %v3121
      %v3123 = vpop.f32.mrb[0].mxu0
      %3124 = vmatprep.mubr.bf16.mxu0 0
      %3125 = vmatmul.mubr.bf16.gmra.mrb[0].mxu0 %v2922
      %v3126 = vpop.f32.mrb[0].mxu0
      %v3127 = vadd.f32 0.0, %v3126
      %v3128 = vpop.f32.mrb[0].mxu0
      %v3129 = vpop.f32.mrb[0].mxu0
      %v3130 = vadd.f32 0.0, %v3129
      %v3131 = vpop.f32.mrb[0].mxu0
      %3132 = vmatprep.mubr.bf16.mxu0 0
      %3133 = vmatmul.mubr.bf16.gmra.mrb[0].mxu0 %v2923
      %v3134 = vpop.f32.mrb[0].mxu0
      %v3135 = vadd.f32 0.0, %v3134
      %v3136 = vpop.f32.mrb[0].mxu0
      %v3137 = vpop.f32.mrb[0].mxu0
      %v3138 = vadd.f32 0.0, %v3137
      %v3139 = vpop.f32.mrb[0].mxu0
      %3140 = vmatprep.mubr.bf16.mxu0 0
      %3141 = vmatmul.mubr.bf16.gmra.mrb[0].mxu0 %v2924
      %v3142 = vpop.f32.mrb[0].mxu0
      %v3143 = vadd.f32 0.0, %v3142
      %v3144 = vpop.f32.mrb[0].mxu0
      %v3145 = vpop.f32.mrb[0].mxu0
      %v3146 = vadd.f32 0.0, %v3145
      %v3147 = vpop.f32.mrb[0].mxu0
      %3148 = vmatprep.mubr.bf16.mxu0 0
      %3149 = vmatmul.mubr.bf16.gmra.mrb[0].mxu0 %v2925
      %v3150 = vpop.f32.mrb[0].mxu0
      %v3151 = vadd.f32 0.0, %v3150
      %v3152 = vpop.f32.mrb[0].mxu0
      %v3153 = vpop.f32.mrb[0].mxu0
      %v3154 = vadd.f32 0.0, %v3153
      %v3155 = vpop.f32.mrb[0].mxu0
      %3156 = vmatprep.mubr.bf16.mxu0 0
      %3157 = vmatmul.mubr.bf16.gmra.mrb[0].mxu0 %v2926
      %v3158 = vpop.f32.mrb[0].mxu0
      %v3159 = vadd.f32 0.0, %v3158
      %v3160 = vpop.f32.mrb[0].mxu0
      %v3161 = vpop.f32.mrb[0].mxu0
      %v3162 = vadd.f32 0.0, %v3161
      %v3163 = vpop.f32.mrb[0].mxu0
      %3164 = vmatprep.mubr.bf16.mxu0 0
      %3165 = vmatmul.mubr.bf16.gmra.mrb[0].mxu0 %v2927
      %v3166 = vpop.f32.mrb[0].mxu0
      %v3167 = vadd.f32 0.0, %v3166
      %v3168 = vpop.f32.mrb[0].mxu0
      %v3169 = vpop.f32.mrb[0].mxu0
      %v3170 = vadd.f32 0.0, %v3169
      %v3171 = vpop.f32.mrb[0].mxu0
      %3172 = vmatprep.mubr.bf16.mxu0 0
      %3173 = vmatmul.mubr.bf16.gmra.mrb[0].mxu0 %v2928
      %v3174 = vpop.f32.mrb[0].mxu0
      %v3175 = vadd.f32 0.0, %v3174
      %v3176 = vpop.f32.mrb[0].mxu0
      %v3177 = vpop.f32.mrb[0].mxu0
      %v3178 = vadd.f32 0.0, %v3177
      %v3179 = vpop.f32.mrb[0].mxu0
      %3180 = vmatprep.mubr.bf16.mxu0 0
      %3181 = vmatmul.mubr.bf16.gmra.mrb[0].mxu0 %v2929
      %v3182 = vpop.f32.mrb[0].mxu0
      %v3183 = vadd.f32 0.0, %v3182
      %v3184 = vpop.f32.mrb[0].mxu0
      %v3185 = vpop.f32.mrb[0].mxu0
      %v3186 = vadd.f32 0.0, %v3185
      %v3187 = vpop.f32.mrb[0].mxu0
      %3188 = vmatprep.mubr.bf16.mxu0 0
      %3189 = vmatmul.mubr.bf16.gmra.mrb[0].mxu0 %v2930
      %v3190 = vpop.f32.mrb[0].mxu0
      %v3191 = vadd.f32 0.0, %v3190
      %v3192 = vpop.f32.mrb[0].mxu0
      %v3193 = vpop.f32.mrb[0].mxu0
      %v3194 = vadd.f32 0.0, %v3193
      %v3195 = vpop.f32.mrb[0].mxu0
      %3196 = vmatprep.mubr.bf16.mxu0 0
      %3197 = vmatmul.mubr.bf16.gmra.mrb[0].mxu0 %v2931
      %v3198 = vpop.f32.mrb[0].mxu0
      %v3199 = vadd.f32 0.0, %v3198
      %v3200 = vpop.f32.mrb[0].mxu0
      %v3201 = vpop.f32.mrb[0].mxu0
      %v3202 = vadd.f32 0.0, %v3201
      %v3203 = vpop.f32.mrb[0].mxu0
      %3204 = vmatprep.mubr.bf16.mxu0 0
      %3205 = vmatmul.mubr.bf16.gmra.mrb[0].mxu0 %v2932
      %v3206 = vpop.f32.mrb[0].mxu0
      %v3207 = vadd.f32 0.0, %v3206
      %v3208 = vpop.f32.mrb[0].mxu0
      %v3209 = vpop.f32.mrb[0].mxu0
      %v3210 = vadd.f32 0.0, %v3209
      %v3211 = vpop.f32.mrb[0].mxu0
      %3212 = vmatprep.mubr.bf16.mxu0 0
      %3213 = vmatmul.mubr.bf16.gmra.mrb[0].mxu0 %v2933
      %v3214 = vpop.f32.mrb[0].mxu0
      %v3215 = vadd.f32 0.0, %v3214
      %v3216 = vpop.f32.mrb[0].mxu0
      %v3217 = vpop.f32.mrb[0].mxu0
      %v3218 = vadd.f32 0.0, %v3217
      %v3219 = vpop.f32.mrb[0].mxu0
      %3220 = vmatprep.mubr.bf16.mxu0 0
      %3221 = vmatmul.mubr.bf16.gmra.mrb[0].mxu0 %v2934
      %v3222 = vpop.f32.mrb[0].mxu0
      %v3223 = vadd.f32 0.0, %v3222
      %v3224 = vpop.f32.mrb[0].mxu0
      %v3225 = vpop.f32.mrb[0].mxu0
      %v3226 = vadd.f32 0.0, %v3225
      %v3227 = vpop.f32.mrb[0].mxu0
      %3228 = vmatprep.mubr.bf16.mxu0 0
      %3229 = vmatmul.mubr.bf16.gmra.mrb[0].mxu0 %v2935
      %v3230 = vpop.f32.mrb[0].mxu0
      %v3231 = vadd.f32 0.0, %v3230
      %v3232 = vpop.f32.mrb[0].mxu0
      %v3233 = vpop.f32.mrb[0].mxu0
      %v3234 = vadd.f32 0.0, %v3233
      %v3235 = vpop.f32.mrb[0].mxu0
      %3236 = vmatprep.mubr.bf16.mxu0 0
      %3237 = vmatmul.mubr.bf16.gmra.mrb[0].mxu0 %v2936
      %v3238 = vpop.f32.mrb[0].mxu0
      %v3239 = vadd.f32 0.0, %v3238
      %v3240 = vpop.f32.mrb[0].mxu0
      %v3241 = vpop.f32.mrb[0].mxu0
      %v3242 = vadd.f32 0.0, %v3241
      %v3243 = vpop.f32.mrb[0].mxu0
      %3244 = vmatprep.mubr.bf16.mxu0 0
      %3245 = vmatmul.mubr.bf16.gmra.mrb[0].mxu0 %v2937
      %v3246 = vpop.f32.mrb[0].mxu0
      %v3247 = vadd.f32 0.0, %v3246
      %v3248 = vpop.f32.mrb[0].mxu0
      %v3249 = vpop.f32.mrb[0].mxu0
      %v3250 = vadd.f32 0.0, %v3249
      %v3251 = vpop.f32.mrb[0].mxu0
      %3252 = vmatprep.mubr.bf16.mxu0 0
      %3253 = vmatmul.mubr.bf16.gmra.mrb[0].mxu0 %v2938
      %v3254 = vpop.f32.mrb[0].mxu0
      %v3255 = vadd.f32 0.0, %v3254
      %v3256 = vpop.f32.mrb[0].mxu0
      %v3257 = vpop.f32.mrb[0].mxu0
      %v3258 = vadd.f32 0.0, %v3257
      %v3259 = vpop.f32.mrb[0].mxu0
      %3260 = vmatprep.mubr.bf16.mxu0 0
      %3261 = vmatmul.mubr.bf16.gmra.mrb[0].mxu0 %v2939
      %v3262 = vpop.f32.mrb[0].mxu0
      %v3263 = vadd.f32 0.0, %v3262
      %v3264 = vpop.f32.mrb[0].mxu0
      %v3265 = vpop.f32.mrb[0].mxu0
      %v3266 = vadd.f32 0.0, %v3265
      %v3267 = vpop.f32.mrb[0].mxu0
      %3268 = vmatprep.mubr.bf16.mxu0 0
      %3269 = vmatmul.mubr.bf16.gmra.mrb[0].mxu0 %v2940
      %v3270 = vpop.f32.mrb[0].mxu0
      %v3271 = vadd.f32 0.0, %v3270
      %v3272 = vpop.f32.mrb[0].mxu0
      %v3273 = vpop.f32.mrb[0].mxu0
      %v3274 = vadd.f32 0.0, %v3273
      %v3275 = vpop.f32.mrb[0].mxu0
      %3276 = vmatprep.mubr.bf16.mxu0 0
      %3277 = vmatmul.mubr.bf16.gmra.mrb[0].mxu0 %v2941
      %v3278 = vpop.f32.mrb[0].mxu0
      %v3279 = vadd.f32 0.0, %v3278
      %v3280 = vpop.f32.mrb[0].mxu0
      %v3281 = vpop.f32.mrb[0].mxu0
      %v3282 = vadd.f32 0.0, %v3281
      %v3283 = vpop.f32.mrb[0].mxu0
      %3284 = vmatprep.mubr.bf16.mxu0 0
      %3285 = vmatmul.mubr.bf16.gmra.mrb[0].mxu0 %v2942
      %v3286 = vpop.f32.mrb[0].mxu0
      %v3287 = vadd.f32 0.0, %v3286
      %v3288 = vpop.f32.mrb[0].mxu0
      %v3289 = vpop.f32.mrb[0].mxu0
      %v3290 = vadd.f32 0.0, %v3289
      %v3291 = vpop.f32.mrb[0].mxu0
      %3292 = vmatprep.mubr.bf16.mxu0 0
      %3293 = vmatmul.mubr.bf16.gmra.mrb[0].mxu0 %v2943
      %v3294 = vpop.f32.mrb[0].mxu0
      %v3295 = vadd.f32 0.0, %v3294
      %v3296 = vpop.f32.mrb[0].mxu0
      %v3297 = vpop.f32.mrb[0].mxu0
      %v3298 = vadd.f32 0.0, %v3297
      %v3299 = vpop.f32.mrb[0].mxu0
      %3300 = vmatprep.mubr.bf16.mxu0 0
      %3301 = vmatmul.mubr.bf16.gmra.mrb[0].mxu0 %v2944
      %v3302 = vpop.f32.mrb[0].mxu0
      %v3303 = vadd.f32 0.0, %v3302
      %v3304 = vpop.f32.mrb[0].mxu0
      %v3305 = vpop.f32.mrb[0].mxu0
      %v3306 = vadd.f32 0.0, %v3305
      %v3307 = vpop.f32.mrb[0].mxu0
      %3308 = vmatprep.mubr.bf16.mxu0 0
      %3309 = vmatmul.mubr.bf16.gmra.mrb[0].mxu0 %v2945
      %v3310 = vpop.f32.mrb[0].mxu0
      %v3311 = vadd.f32 0.0, %v3310
      %v3312 = vpop.f32.mrb[0].mxu0
      %v3313 = vpop.f32.mrb[0].mxu0
      %v3314 = vadd.f32 0.0, %v3313
      %v3315 = vpop.f32.mrb[0].mxu0
      %3316 = vmatprep.mubr.bf16.mxu0 0
      %3317 = vmatmul.mubr.bf16.gmra.mrb[0].mxu0 %v2946
      %v3318 = vpop.f32.mrb[0].mxu0
      %v3319 = vadd.f32 0.0, %v3318
      %v3320 = vpop.f32.mrb[0].mxu0
      %v3321 = vpop.f32.mrb[0].mxu0
      %v3322 = vadd.f32 0.0, %v3321
      %v3323 = vpop.f32.mrb[0].mxu0
      %3324 = vmatprep.mubr.bf16.mxu0 0
      %3325 = vmatmul.mubr.bf16.gmra.mrb[0].mxu0 %v2947
      %v3326 = vpop.f32.mrb[0].mxu0
      %v3327 = vadd.f32 0.0, %v3326
      %v3328 = vpop.f32.mrb[0].mxu0
      %v3329 = vpop.f32.mrb[0].mxu0
      %v3330 = vadd.f32 0.0, %v3329
      %v3331 = vpop.f32.mrb[0].mxu0
      %3332 = vmatprep.mubr.bf16.mxu0 0
      %3333 = vmatmul.mubr.bf16.gmra.mrb[0].mxu0 %v2948
      %v3334 = vpop.f32.mrb[0].mxu0
      %v3335 = vadd.f32 0.0, %v3334
      %v3336 = vpop.f32.mrb[0].mxu0
      %v3337 = vpop.f32.mrb[0].mxu0
      %v3338 = vadd.f32 0.0, %v3337
      %v3339 = vpop.f32.mrb[0].mxu0
      %3340 = vmatprep.mubr.bf16.mxu0 0
      %3341 = vmatmul.mubr.bf16.gmra.mrb[0].mxu0 %v2949
      %v3342 = vpop.f32.mrb[0].mxu0
      %v3343 = vadd.f32 0.0, %v3342
      %v3344 = vpop.f32.mrb[0].mxu0
      %v3345 = vpop.f32.mrb[0].mxu0
      %v3346 = vadd.f32 0.0, %v3345
      %v3347 = vpop.f32.mrb[0].mxu0
      %3348 = vmatprep.mubr.bf16.mxu0 0
      %3349 = vmatmul.mubr.bf16.gmra.mrb[0].mxu0 %v2950
      %v3350 = vpop.f32.mrb[0].mxu0
      %v3351 = vadd.f32 0.0, %v3350
      %v3352 = vpop.f32.mrb[0].mxu0
      %v3353 = vpop.f32.mrb[0].mxu0
      %v3354 = vadd.f32 0.0, %v3353
      %v3355 = vpop.f32.mrb[0].mxu0
      %3356 = vmatprep.mubr.bf16.mxu0 0
      %3357 = vmatmul.mubr.bf16.gmra.mrb[0].mxu0 %v2951
      %v3358 = vpop.f32.mrb[0].mxu0
      %v3359 = vadd.f32 0.0, %v3358
      %v3360 = vpop.f32.mrb[0].mxu0
      %v3361 = vpop.f32.mrb[0].mxu0
      %v3362 = vadd.f32 0.0, %v3361
      %v3363 = vpop.f32.mrb[0].mxu0
      %3364 = vmatprep.mubr.bf16.mxu0 0
      %3365 = vmatmul.mubr.bf16.gmra.mrb[0].mxu0 %v2952
      %v3366 = vpop.f32.mrb[0].mxu0
      %v3367 = vadd.f32 0.0, %v3366
      %v3368 = vpop.f32.mrb[0].mxu0
      %v3369 = vpop.f32.mrb[0].mxu0
      %v3370 = vadd.f32 0.0, %v3369
      %v3371 = vpop.f32.mrb[0].mxu0
      %3372 = vmatprep.mubr.bf16.mxu0 0
      %3373 = vmatmul.mubr.bf16.gmra.mrb[0].mxu0 %v2953
      %v3374 = vpop.f32.mrb[0].mxu0
      %v3375 = vadd.f32 0.0, %v3374
      %v3376 = vpop.f32.mrb[0].mxu0
      %v3377 = vpop.f32.mrb[0].mxu0
      %v3378 = vadd.f32 0.0, %v3377
      %v3379 = vpop.f32.mrb[0].mxu0
      %3380 = vmatprep.mubr.bf16.mxu0 0
      %3381 = vmatmul.mubr.bf16.gmra.mrb[0].mxu0 %v2954
      %v3382 = vpop.f32.mrb[0].mxu0
      %v3383 = vadd.f32 0.0, %v3382
      %v3384 = vpop.f32.mrb[0].mxu0
      %v3385 = vpop.f32.mrb[0].mxu0
      %v3386 = vadd.f32 0.0, %v3385
      %v3387 = vpop.f32.mrb[0].mxu0
      %3388 = vmatprep.mubr.bf16.mxu0 0
      %3389 = vmatmul.mubr.bf16.gmra.mrb[0].mxu0 %v2955
      %v3390 = vpop.f32.mrb[0].mxu0
      %v3391 = vadd.f32 0.0, %v3390
      %v3392 = vpop.f32.mrb[0].mxu0
      %v3393 = vpop.f32.mrb[0].mxu0
      %v3394 = vadd.f32 0.0, %v3393
      %v3395 = vpop.f32.mrb[0].mxu0
      %3396 = vmatprep.mubr.bf16.mxu0 0
      %3397 = vmatmul.mubr.bf16.gmra.mrb[0].mxu0 %v2956
      %v3398 = vpop.f32.mrb[0].mxu0
      %v3399 = vadd.f32 0.0, %v3398
      %v3400 = vpop.f32.mrb[0].mxu0
      %v3401 = vpop.f32.mrb[0].mxu0
      %v3402 = vadd.f32 0.0, %v3401
      %v3403 = vpop.f32.mrb[0].mxu0
      %3404 = vmatprep.mubr.bf16.mxu0 0
      %3405 = vmatmul.mubr.bf16.gmra.mrb[0].mxu0 %v2957
      %v3406 = vpop.f32.mrb[0].mxu0
      %v3407 = vadd.f32 0.0, %v3406
      %v3408 = vpop.f32.mrb[0].mxu0
      %v3409 = vpop.f32.mrb[0].mxu0
      %v3410 = vadd.f32 0.0, %v3409
      %v3411 = vpop.f32.mrb[0].mxu0
      %3412 = vmatprep.mubr.bf16.mxu0 0
      %3413 = vmatmul.mubr.bf16.gmra.mrb[0].mxu0 %v2958
      %v3414 = vpop.f32.mrb[0].mxu0
      %v3415 = vadd.f32 0.0, %v3414
      %v3416 = vpop.f32.mrb[0].mxu0
      %v3417 = vpop.f32.mrb[0].mxu0
      %v3418 = vadd.f32 0.0, %v3417
      %v3419 = vpop.f32.mrb[0].mxu0
      %3420 = vmatprep.mubr.bf16.mxu0 0
      %3421 = vmatmul.mubr.bf16.gmra.mrb[0].mxu0 %v2959
      %v3422 = vpop.f32.mrb[0].mxu0
      %v3423 = vadd.f32 0.0, %v3422
      %v3424 = vpop.f32.mrb[0].mxu0
      %v3425 = vpop.f32.mrb[0].mxu0
      %v3426 = vadd.f32 0.0, %v3425
      %v3427 = vpop.f32.mrb[0].mxu0
      %3428 = vmatprep.mubr.bf16.mxu0 0
      %3429 = vmatmul.mubr.bf16.gmra.mrb[0].mxu0 %v2960
      %v3430 = vpop.f32.mrb[0].mxu0
      %v3431 = vadd.f32 0.0, %v3430
      %v3432 = vpop.f32.mrb[0].mxu0
      %v3433 = vpop.f32.mrb[0].mxu0
      %v3434 = vadd.f32 0.0, %v3433
      %v3435 = vpop.f32.mrb[0].mxu0
      %3436 = vmatprep.mubr.bf16.mxu0 0
      %3437 = vmatmul.mubr.bf16.gmra.mrb[0].mxu0 %v2961
      %v3438 = vpop.f32.mrb[0].mxu0
      %v3439 = vadd.f32 0.0, %v3438
      %v3440 = vpop.f32.mrb[0].mxu0
      %v3441 = vpop.f32.mrb[0].mxu0
      %v3442 = vadd.f32 0.0, %v3441
      %v3443 = vpop.f32.mrb[0].mxu0
      %3444 = vmatprep.mubr.bf16.mxu0 0
      %3445 = vmatmul.mubr.bf16.gmra.mrb[0].mxu0 %v2962
      %v3446 = vpop.f32.mrb[0].mxu0
      %v3447 = vadd.f32 0.0, %v3446
      %v3448 = vpop.f32.mrb[0].mxu0
      %v3449 = vpop.f32.mrb[0].mxu0
      %v3450 = vadd.f32 0.0, %v3449
      %v3451 = vpop.f32.mrb[0].mxu0
      %3452 = vmatprep.mubr.bf16.mxu0 0
      %3453 = vmatmul.mubr.bf16.gmra.mrb[0].mxu0 %v2963
      %v3454 = vpop.f32.mrb[0].mxu0
      %v3455 = vadd.f32 0.0, %v3454
      %v3456 = vpop.f32.mrb[0].mxu0
      %v3457 = vpop.f32.mrb[0].mxu0
      %v3458 = vadd.f32 0.0, %v3457
      %v3459 = vpop.f32.mrb[0].mxu0
      %3460 = vmatprep.mubr.bf16.mxu0 0
      %3461 = vmatmul.mubr.bf16.gmra.mrb[0].mxu0 %v2964
      %v3462 = vpop.f32.mrb[0].mxu0
      %v3463 = vadd.f32 0.0, %v3462
      %v3464 = vpop.f32.mrb[0].mxu0
      %v3465 = vpop.f32.mrb[0].mxu0
      %v3466 = vadd.f32 0.0, %v3465
      %v3467 = vpop.f32.mrb[0].mxu0
      %3468 = vmatprep.mubr.bf16.mxu0 0
      %3469 = vmatmul.mubr.bf16.gmra.mrb[0].mxu0 %v2965
      %v3470 = vpop.f32.mrb[0].mxu0
      %v3471 = vadd.f32 0.0, %v3470
      %v3472 = vpop.f32.mrb[0].mxu0
      %v3473 = vpop.f32.mrb[0].mxu0
      %v3474 = vadd.f32 0.0, %v3473
      %v3475 = vpop.f32.mrb[0].mxu0
      %3476 = vmatprep.mubr.bf16.mxu0 0
      %3477 = vmatmul.mubr.bf16.gmra.mrb[0].mxu0 %v2966
      %v3478 = vpop.f32.mrb[0].mxu0
      %v3479 = vadd.f32 0.0, %v3478
      %v3480 = vpop.f32.mrb[0].mxu0
      %v3481 = vpop.f32.mrb[0].mxu0
      %v3482 = vadd.f32 0.0, %v3481
      %v3483 = vpop.f32.mrb[0].mxu0
      %3484 = vmatprep.mubr.bf16.mxu0 0
      %3485 = vmatmul.mubr.bf16.gmra.mrb[0].mxu0 %v2967
      %v3486 = vpop.f32.mrb[0].mxu0
      %v3487 = vadd.f32 0.0, %v3486
      %v3488 = vpop.f32.mrb[0].mxu0
      %v3489 = vpop.f32.mrb[0].mxu0
      %v3490 = vadd.f32 0.0, %v3489
      %v3491 = vpop.f32.mrb[0].mxu0
      %3492 = vmatprep.mubr.bf16.mxu0 0
      %3493 = vmatmul.mubr.bf16.gmra.mrb[0].mxu0 %v2968
      %v3494 = vpop.f32.mrb[0].mxu0
      %v3495 = vadd.f32 0.0, %v3494
      %v3496 = vpop.f32.mrb[0].mxu0
      %v3497 = vpop.f32.mrb[0].mxu0
      %v3498 = vadd.f32 0.0, %v3497
      %v3499 = vpop.f32.mrb[0].mxu0
      %3500 = vmatprep.mubr.bf16.mxu0 0
      %3501 = vmatmul.mubr.bf16.gmra.mrb[0].mxu0 %v2969
      %v3502 = vpop.f32.mrb[0].mxu0
      %v3503 = vadd.f32 0.0, %v3502
      %v3504 = vpop.f32.mrb[0].mxu0
      %v3505 = vpop.f32.mrb[0].mxu0
      %v3506 = vadd.f32 0.0, %v3505
      %v3507 = vpop.f32.mrb[0].mxu0
      %3508 = vmatprep.mubr.bf16.mxu0 0
      %3509 = vmatmul.mubr.bf16.gmra.mrb[0].mxu0 %v2970
      %v3510 = vpop.f32.mrb[0].mxu0
      %v3511 = vadd.f32 0.0, %v3510
      %v3512 = vpop.f32.mrb[0].mxu0
      %v3513 = vpop.f32.mrb[0].mxu0
      %v3514 = vadd.f32 0.0, %v3513
      %v3515 = vpop.f32.mrb[0].mxu0
      %3516 = vmatprep.mubr.bf16.mxu0 0
      %3517 = vmatmul.mubr.bf16.gmra.mrb[0].mxu0 %v2971
      %v3518 = vpop.f32.mrb[0].mxu0
      %v3519 = vadd.f32 0.0, %v3518
      %v3520 = vpop.f32.mrb[0].mxu0
      %v3521 = vpop.f32.mrb[0].mxu0
      %v3522 = vadd.f32 0.0, %v3521
      %v3523 = vpop.f32.mrb[0].mxu0
      %3524 = vmatprep.mubr.bf16.mxu0 0
      %3525 = vmatmul.mubr.bf16.gmra.mrb[0].mxu0 %v2972
      %v3526 = vpop.f32.mrb[0].mxu0
      %v3527 = vadd.f32 0.0, %v3526
      %v3528 = vpop.f32.mrb[0].mxu0
      %v3529 = vpop.f32.mrb[0].mxu0
      %v3530 = vadd.f32 0.0, %v3529
      %v3531 = vpop.f32.mrb[0].mxu0
      %3532 = vmatprep.mubr.bf16.mxu0 0
      %3533 = vmatmul.mubr.bf16.gmra.mrb[0].mxu0 %v2973
      %v3534 = vpop.f32.mrb[0].mxu0
      %v3535 = vadd.f32 0.0, %v3534
      %v3536 = vpop.f32.mrb[0].mxu0
      %v3537 = vpop.f32.mrb[0].mxu0
      %v3538 = vadd.f32 0.0, %v3537
      %v3539 = vpop.f32.mrb[0].mxu0
      %3540 = vmatprep.mubr.bf16.mxu0 0
      %3541 = vmatmul.mubr.bf16.gmra.mrb[0].mxu0 %v2974
      %v3542 = vpop.f32.mrb[0].mxu0
      %v3543 = vadd.f32 0.0, %v3542
      %v3544 = vpop.f32.mrb[0].mxu0
      %v3545 = vpop.f32.mrb[0].mxu0
      %v3546 = vadd.f32 0.0, %v3545
      %v3547 = vpop.f32.mrb[0].mxu0
      %3548 = vmatprep.mubr.bf16.mxu0 0
      %3549 = vmatmul.mubr.bf16.gmra.mrb[0].mxu0 %v2975
      %v3550 = vpop.f32.mrb[0].mxu0
      %v3551 = vadd.f32 0.0, %v3550
      %v3552 = vpop.f32.mrb[0].mxu0
      %v3553 = vpop.f32.mrb[0].mxu0
      %v3554 = vadd.f32 0.0, %v3553
      %v3555 = vpop.f32.mrb[0].mxu0
      %3556 = vmatprep.mubr.bf16.mxu0 0
      %3557 = vmatmul.mubr.bf16.gmra.mrb[0].mxu0 %v2976
      %v3558 = vpop.f32.mrb[0].mxu0
      %v3559 = vadd.f32 0.0, %v3558
      %v3560 = vpop.f32.mrb[0].mxu0
      %v3561 = vpop.f32.mrb[0].mxu0
      %v3562 = vadd.f32 0.0, %v3561
      %v3563 = vpop.f32.mrb[0].mxu0
      %3564 = vmatprep.mubr.bf16.mxu0 0
      %3565 = vmatmul.mubr.bf16.gmra.mrb[0].mxu0 %v2977
      %v3566 = vpop.f32.mrb[0].mxu0
      %v3567 = vadd.f32 0.0, %v3566
      %v3568 = vpop.f32.mrb[0].mxu0
      %v3569 = vpop.f32.mrb[0].mxu0
      %v3570 = vadd.f32 0.0, %v3569
      %v3571 = vpop.f32.mrb[0].mxu0
      %3572 = vmatprep.mubr.bf16.mxu0 0
      %3573 = vmatmul.mubr.bf16.gmra.mrb[0].mxu0 %v2978
      %v3574 = vpop.f32.mrb[0].mxu0
      %v3575 = vadd.f32 0.0, %v3574
      %v3576 = vpop.f32.mrb[0].mxu0
      %v3577 = vpop.f32.mrb[0].mxu0
      %v3578 = vadd.f32 0.0, %v3577
      %v3579 = vpop.f32.mrb[0].mxu0
      %3580 = vmatprep.mubr.bf16.mxu0 0
      %3581 = vmatmul.mubr.bf16.gmra.mrb[0].mxu0 %v2979
      %v3582 = vpop.f32.mrb[0].mxu0
      %v3583 = vadd.f32 0.0, %v3582
      %v3584 = vpop.f32.mrb[0].mxu0
      %v3585 = vpop.f32.mrb[0].mxu0
      %v3586 = vadd.f32 0.0, %v3585
      %v3587 = vpop.f32.mrb[0].mxu0
      %3588 = vdwg.mxu0
      %v3589 = vadd.f32 %v2788, %v3079
      %v3590 = vadd.f32 %v2789, %v3082
      %v3591 = vadd.f32 %v2790, %v3087
      %v3592 = vadd.f32 %v2791, %v3090
      %v3593 = vadd.f32 %v2792, %v3095
      %v3594 = vadd.f32 %v2793, %v3098
      %v3595 = vadd.f32 %v2794, %v3103
      %v3596 = vadd.f32 %v2795, %v3106
      %v3597 = vadd.f32 %v2796, %v3111
      %v3598 = vadd.f32 %v2797, %v3114
      %v3599 = vadd.f32 %v2798, %v3119
      %v3600 = vadd.f32 %v2799, %v3122
      %v3601 = vadd.f32 %v2800, %v3127
      %v3602 = vadd.f32 %v2801, %v3130
      %v3603 = vadd.f32 %v2802, %v3135
      %v3604 = vadd.f32 %v2803, %v3138
      %v3605 = vadd.f32 %v2804, %v3143
      %v3606 = vadd.f32 %v2805, %v3146
      %v3607 = vadd.f32 %v2806, %v3151
      %v3608 = vadd.f32 %v2807, %v3154
      %v3609 = vadd.f32 %v2808, %v3159
      %v3610 = vadd.f32 %v2809, %v3162
      %v3611 = vadd.f32 %v2810, %v3167
      %v3612 = vadd.f32 %v2811, %v3170
      %v3613 = vadd.f32 %v2812, %v3175
      %v3614 = vadd.f32 %v2813, %v3178
      %v3615 = vadd.f32 %v2814, %v3183
      %v3616 = vadd.f32 %v2815, %v3186
      %v3617 = vadd.f32 %v2816, %v3191
      %v3618 = vadd.f32 %v2817, %v3194
      %v3619 = vadd.f32 %v2818, %v3199
      %v3620 = vadd.f32 %v2819, %v3202
      %v3621 = vadd.f32 %v2820, %v3207
      %v3622 = vadd.f32 %v2821, %v3210
      %v3623 = vadd.f32 %v2822, %v3215
      %v3624 = vadd.f32 %v2823, %v3218
      %v3625 = vadd.f32 %v2824, %v3223
      %v3626 = vadd.f32 %v2825, %v3226
      %v3627 = vadd.f32 %v2826, %v3231
      %v3628 = vadd.f32 %v2827, %v3234
      %v3629 = vadd.f32 %v2828, %v3239
      %v3630 = vadd.f32 %v2829, %v3242
      %v3631 = vadd.f32 %v2830, %v3247
      %v3632 = vadd.f32 %v2831, %v3250
      %v3633 = vadd.f32 %v2832, %v3255
      %v3634 = vadd.f32 %v2833, %v3258
      %v3635 = vadd.f32 %v2834, %v3263
      %v3636 = vadd.f32 %v2835, %v3266
      %v3637 = vadd.f32 %v2836, %v3271
      %v3638 = vadd.f32 %v2837, %v3274
      %v3639 = vadd.f32 %v2838, %v3279
      %v3640 = vadd.f32 %v2839, %v3282
      %v3641 = vadd.f32 %v2840, %v3287
      %v3642 = vadd.f32 %v2841, %v3290
      %v3643 = vadd.f32 %v2842, %v3295
      %v3644 = vadd.f32 %v2843, %v3298
      %v3645 = vadd.f32 %v2844, %v3303
      %v3646 = vadd.f32 %v2845, %v3306
      %v3647 = vadd.f32 %v2846, %v3311
      %v3648 = vadd.f32 %v2847, %v3314
      %v3649 = vadd.f32 %v2848, %v3319
      %v3650 = vadd.f32 %v2849, %v3322
      %v3651 = vadd.f32 %v2850, %v3327
      %v3652 = vadd.f32 %v2851, %v3330
      %v3653 = vadd.f32 %v2852, %v3335
      %v3654 = vadd.f32 %v2853, %v3338
      %v3655 = vadd.f32 %v2854, %v3343
      %v3656 = vadd.f32 %v2855, %v3346
      %v3657 = vadd.f32 %v2856, %v3351
      %v3658 = vadd.f32 %v2857, %v3354
      %v3659 = vadd.f32 %v2858, %v3359
      %v3660 = vadd.f32 %v2859, %v3362
      %v3661 = vadd.f32 %v2860, %v3367
      %v3662 = vadd.f32 %v2861, %v3370
      %v3663 = vadd.f32 %v2862, %v3375
      %v3664 = vadd.f32 %v2863, %v3378
      %v3665 = vadd.f32 %v2864, %v3383
      %v3666 = vadd.f32 %v2865, %v3386
      %v3667 = vadd.f32 %v2866, %v3391
      %v3668 = vadd.f32 %v2867, %v3394
      %v3669 = vadd.f32 %v2868, %v3399
      %v3670 = vadd.f32 %v2869, %v3402
      %v3671 = vadd.f32 %v2870, %v3407
      %v3672 = vadd.f32 %v2871, %v3410
      %v3673 = vadd.f32 %v2872, %v3415
      %v3674 = vadd.f32 %v2873, %v3418
      %v3675 = vadd.f32 %v2874, %v3423
      %v3676 = vadd.f32 %v2875, %v3426
      %v3677 = vadd.f32 %v2876, %v3431
      %v3678 = vadd.f32 %v2877, %v3434
      %v3679 = vadd.f32 %v2878, %v3439
      %v3680 = vadd.f32 %v2879, %v3442
      %v3681 = vadd.f32 %v2880, %v3447
      %v3682 = vadd.f32 %v2881, %v3450
      %v3683 = vadd.f32 %v2882, %v3455
      %v3684 = vadd.f32 %v2883, %v3458
      %v3685 = vadd.f32 %v2884, %v3463
      %v3686 = vadd.f32 %v2885, %v3466
      %v3687 = vadd.f32 %v2886, %v3471
      %v3688 = vadd.f32 %v2887, %v3474
      %v3689 = vadd.f32 %v2888, %v3479
      %v3690 = vadd.f32 %v2889, %v3482
      %v3691 = vadd.f32 %v2890, %v3487
      %v3692 = vadd.f32 %v2891, %v3490
      %v3693 = vadd.f32 %v2892, %v3495
      %v3694 = vadd.f32 %v2893, %v3498
      %v3695 = vadd.f32 %v2894, %v3503
      %v3696 = vadd.f32 %v2895, %v3506
      %v3697 = vadd.f32 %v2896, %v3511
      %v3698 = vadd.f32 %v2897, %v3514
      %v3699 = vadd.f32 %v2898, %v3519
      %v3700 = vadd.f32 %v2899, %v3522
      %v3701 = vadd.f32 %v2900, %v3527
      %v3702 = vadd.f32 %v2901, %v3530
      %v3703 = vadd.f32 %v2902, %v3535
      %v3704 = vadd.f32 %v2903, %v3538
      %v3705 = vadd.f32 %v2904, %v3543
      %v3706 = vadd.f32 %v2905, %v3546
      %v3707 = vadd.f32 %v2906, %v3551
      %v3708 = vadd.f32 %v2907, %v3554
      %v3709 = vadd.f32 %v2908, %v3559
      %v3710 = vadd.f32 %v2909, %v3562
      %v3711 = vadd.f32 %v2910, %v3567
      %v3712 = vadd.f32 %v2911, %v3570
      %v3713 = vadd.f32 %v2912, %v3575
      %v3714 = vadd.f32 %v2913, %v3578
      %v3715 = vadd.f32 %v2914, %v3583
      %v3716 = vadd.f32 %v2915, %v3586
      %3717 = vst.msk [vmem:[#allocation2] sm:$0xff] %vm898, %v3589
      %3718 = vst.msk [vmem:[#allocation2 + $0x8] sm:$0xff] %vm898, %v3590
      %3719 = vst.msk [vmem:[#allocation2 + $0x10] sm:$0xff] %vm898, %v3591
      %3720 = vst.msk [vmem:[#allocation2 + $0x18] sm:$0xff] %vm898, %v3592
      %3721 = vst.msk [vmem:[#allocation2 + $0x20] sm:$0xff] %vm898, %v3593
      %3722 = vst.msk [vmem:[#allocation2 + $0x28] sm:$0xff] %vm898, %v3594
      %3723 = vst.msk [vmem:[#allocation2 + $0x30] sm:$0xff] %vm898, %v3595
      %3724 = vst.msk [vmem:[#allocation2 + $0x38] sm:$0xff] %vm898, %v3596
      %3725 = vst.msk [vmem:[#allocation2 + $0x40] sm:$0xff] %vm898, %v3597
      %3726 = vst.msk [vmem:[#allocation2 + $0x48] sm:$0xff] %vm898, %v3598
      %3727 = vst.msk [vmem:[#allocation2 + $0x50] sm:$0xff] %vm898, %v3599
      %3728 = vst.msk [vmem:[#allocation2 + $0x58] sm:$0xff] %vm898, %v3600
      %3729 = vst.msk [vmem:[#allocation2 + $0x60] sm:$0xff] %vm898, %v3601
      %3730 = vst.msk [vmem:[#allocation2 + $0x68] sm:$0xff] %vm898, %v3602
      %3731 = vst.msk [vmem:[#allocation2 + $0x70] sm:$0xff] %vm898, %v3603
      %3732 = vst.msk [vmem:[#allocation2 + $0x78] sm:$0xff] %vm898, %v3604
      %3733 = vst.msk [vmem:[#allocation2 + $0x80] sm:$0xff] %vm898, %v3605
      %3734 = vst.msk [vmem:[#allocation2 + $0x88] sm:$0xff] %vm898, %v3606
      %3735 = vst.msk [vmem:[#allocation2 + $0x90] sm:$0xff] %vm898, %v3607
      %3736 = vst.msk [vmem:[#allocation2 + $0x98] sm:$0xff] %vm898, %v3608
      %3737 = vst.msk [vmem:[#allocation2 + $0xa0] sm:$0xff] %vm898, %v3609
      %3738 = vst.msk [vmem:[#allocation2 + $0xa8] sm:$0xff] %vm898, %v3610
      %3739 = vst.msk [vmem:[#allocation2 + $0xb0] sm:$0xff] %vm898, %v3611
      %3740 = vst.msk [vmem:[#allocation2 + $0xb8] sm:$0xff] %vm898, %v3612
      %3741 = vst.msk [vmem:[#allocation2 + $0xc0] sm:$0xff] %vm898, %v3613
      %3742 = vst.msk [vmem:[#allocation2 + $0xc8] sm:$0xff] %vm898, %v3614
      %3743 = vst.msk [vmem:[#allocation2 + $0xd0] sm:$0xff] %vm898, %v3615
      %3744 = vst.msk [vmem:[#allocation2 + $0xd8] sm:$0xff] %vm898, %v3616
      %3745 = vst.msk [vmem:[#allocation2 + $0xe0] sm:$0xff] %vm898, %v3617
      %3746 = vst.msk [vmem:[#allocation2 + $0xe8] sm:$0xff] %vm898, %v3618
      %3747 = vst.msk [vmem:[#allocation2 + $0xf0] sm:$0xff] %vm898, %v3619
      %3748 = vst.msk [vmem:[#allocation2 + $0xf8] sm:$0xff] %vm898, %v3620
      %3749 = vst.msk [vmem:[#allocation2 + $0x100] sm:$0xff] %vm898, %v3621
      %3750 = vst.msk [vmem:[#allocation2 + $0x108] sm:$0xff] %vm898, %v3622
      %3751 = vst.msk [vmem:[#allocation2 + $0x110] sm:$0xff] %vm898, %v3623
      %3752 = vst.msk [vmem:[#allocation2 + $0x118] sm:$0xff] %vm898, %v3624
      %3753 = vst.msk [vmem:[#allocation2 + $0x120] sm:$0xff] %vm898, %v3625
      %3754 = vst.msk [vmem:[#allocation2 + $0x128] sm:$0xff] %vm898, %v3626
      %3755 = vst.msk [vmem:[#allocation2 + $0x130] sm:$0xff] %vm898, %v3627
      %3756 = vst.msk [vmem:[#allocation2 + $0x138] sm:$0xff] %vm898, %v3628
      %3757 = vst.msk [vmem:[#allocation2 + $0x140] sm:$0xff] %vm898, %v3629
      %3758 = vst.msk [vmem:[#allocation2 + $0x148] sm:$0xff] %vm898, %v3630
      %3759 = vst.msk [vmem:[#allocation2 + $0x150] sm:$0xff] %vm898, %v3631
      %3760 = vst.msk [vmem:[#allocation2 + $0x158] sm:$0xff] %vm898, %v3632
      %3761 = vst.msk [vmem:[#allocation2 + $0x160] sm:$0xff] %vm898, %v3633
      %3762 = vst.msk [vmem:[#allocation2 + $0x168] sm:$0xff] %vm898, %v3634
      %3763 = vst.msk [vmem:[#allocation2 + $0x170] sm:$0xff] %vm898, %v3635
      %3764 = vst.msk [vmem:[#allocation2 + $0x178] sm:$0xff] %vm898, %v3636
      %3765 = vst.msk [vmem:[#allocation2 + $0x180] sm:$0xff] %vm898, %v3637
      %3766 = vst.msk [vmem:[#allocation2 + $0x188] sm:$0xff] %vm898, %v3638
      %3767 = vst.msk [vmem:[#allocation2 + $0x190] sm:$0xff] %vm898, %v3639
      %3768 = vst.msk [vmem:[#allocation2 + $0x198] sm:$0xff] %vm898, %v3640
      %3769 = vst.msk [vmem:[#allocation2 + $0x1a0] sm:$0xff] %vm898, %v3641
      %3770 = vst.msk [vmem:[#allocation2 + $0x1a8] sm:$0xff] %vm898, %v3642
      %3771 = vst.msk [vmem:[#allocation2 + $0x1b0] sm:$0xff] %vm898, %v3643
      %3772 = vst.msk [vmem:[#allocation2 + $0x1b8] sm:$0xff] %vm898, %v3644
      %3773 = vst.msk [vmem:[#allocation2 + $0x1c0] sm:$0xff] %vm898, %v3645
      %3774 = vst.msk [vmem:[#allocation2 + $0x1c8] sm:$0xff] %vm898, %v3646
      %3775 = vst.msk [vmem:[#allocation2 + $0x1d0] sm:$0xff] %vm898, %v3647
      %3776 = vst.msk [vmem:[#allocation2 + $0x1d8] sm:$0xff] %vm898, %v3648
      %3777 = vst.msk [vmem:[#allocation2 + $0x1e0] sm:$0xff] %vm898, %v3649
      %3778 = vst.msk [vmem:[#allocation2 + $0x1e8] sm:$0xff] %vm898, %v3650
      %3779 = vst.msk [vmem:[#allocation2 + $0x1f0] sm:$0xff] %vm898, %v3651
      %3780 = vst.msk [vmem:[#allocation2 + $0x1f8] sm:$0xff] %vm898, %v3652
      %3781 = vst.msk [vmem:[#allocation2 + $0x200] sm:$0xff] %vm898, %v3653
      %3782 = vst.msk [vmem:[#allocation2 + $0x208] sm:$0xff] %vm898, %v3654
      %3783 = vst.msk [vmem:[#allocation2 + $0x210] sm:$0xff] %vm898, %v3655
      %3784 = vst.msk [vmem:[#allocation2 + $0x218] sm:$0xff] %vm898, %v3656
      %3785 = vst.msk [vmem:[#allocation2 + $0x220] sm:$0xff] %vm898, %v3657
      %3786 = vst.msk [vmem:[#allocation2 + $0x228] sm:$0xff] %vm898, %v3658
      %3787 = vst.msk [vmem:[#allocation2 + $0x230] sm:$0xff] %vm898, %v3659
      %3788 = vst.msk [vmem:[#allocation2 + $0x238] sm:$0xff] %vm898, %v3660
      %3789 = vst.msk [vmem:[#allocation2 + $0x240] sm:$0xff] %vm898, %v3661
      %3790 = vst.msk [vmem:[#allocation2 + $0x248] sm:$0xff] %vm898, %v3662
      %3791 = vst.msk [vmem:[#allocation2 + $0x250] sm:$0xff] %vm898, %v3663
      %3792 = vst.msk [vmem:[#allocation2 + $0x258] sm:$0xff] %vm898, %v3664
      %3793 = vst.msk [vmem:[#allocation2 + $0x260] sm:$0xff] %vm898, %v3665
      %3794 = vst.msk [vmem:[#allocation2 + $0x268] sm:$0xff] %vm898, %v3666
      %3795 = vst.msk [vmem:[#allocation2 + $0x270] sm:$0xff] %vm898, %v3667
      %3796 = vst.msk [vmem:[#allocation2 + $0x278] sm:$0xff] %vm898, %v3668
      %3797 = vst.msk [vmem:[#allocation2 + $0x280] sm:$0xff] %vm898, %v3669
      %3798 = vst.msk [vmem:[#allocation2 + $0x288] sm:$0xff] %vm898, %v3670
      %3799 = vst.msk [vmem:[#allocation2 + $0x290] sm:$0xff] %vm898, %v3671
      %3800 = vst.msk [vmem:[#allocation2 + $0x298] sm:$0xff] %vm898, %v3672
      %3801 = vst.msk [vmem:[#allocation2 + $0x2a0] sm:$0xff] %vm898, %v3673
      %3802 = vst.msk [vmem:[#allocation2 + $0x2a8] sm:$0xff] %vm898, %v3674
      %3803 = vst.msk [vmem:[#allocation2 + $0x2b0] sm:$0xff] %vm898, %v3675
      %3804 = vst.msk [vmem:[#allocation2 + $0x2b8] sm:$0xff] %vm898, %v3676
      %3805 = vst.msk [vmem:[#allocation2 + $0x2c0] sm:$0xff] %vm898, %v3677
      %3806 = vst.msk [vmem:[#allocation2 + $0x2c8] sm:$0xff] %vm898, %v3678
      %3807 = vst.msk [vmem:[#allocation2 + $0x2d0] sm:$0xff] %vm898, %v3679
      %3808 = vst.msk [vmem:[#allocation2 + $0x2d8] sm:$0xff] %vm898, %v3680
      %3809 = vst.msk [vmem:[#allocation2 + $0x2e0] sm:$0xff] %vm898, %v3681
      %3810 = vst.msk [vmem:[#allocation2 + $0x2e8] sm:$0xff] %vm898, %v3682
      %3811 = vst.msk [vmem:[#allocation2 + $0x2f0] sm:$0xff] %vm898, %v3683
      %3812 = vst.msk [vmem:[#allocation2 + $0x2f8] sm:$0xff] %vm898, %v3684
      %3813 = vst.msk [vmem:[#allocation2 + $0x300] sm:$0xff] %vm898, %v3685
      %3814 = vst.msk [vmem:[#allocation2 + $0x308] sm:$0xff] %vm898, %v3686
      %3815 = vst.msk [vmem:[#allocation2 + $0x310] sm:$0xff] %vm898, %v3687
      %3816 = vst.msk [vmem:[#allocation2 + $0x318] sm:$0xff] %vm898, %v3688
      %3817 = vst.msk [vmem:[#allocation2 + $0x320] sm:$0xff] %vm898, %v3689
      %3818 = vst.msk [vmem:[#allocation2 + $0x328] sm:$0xff] %vm898, %v3690
      %3819 = vst.msk [vmem:[#allocation2 + $0x330] sm:$0xff] %vm898, %v3691
      %3820 = vst.msk [vmem:[#allocation2 + $0x338] sm:$0xff] %vm898, %v3692
      %3821 = vst.msk [vmem:[#allocation2 + $0x340] sm:$0xff] %vm898, %v3693
      %3822 = vst.msk [vmem:[#allocation2 + $0x348] sm:$0xff] %vm898, %v3694
      %3823 = vst.msk [vmem:[#allocation2 + $0x350] sm:$0xff] %vm898, %v3695
      %3824 = vst.msk [vmem:[#allocation2 + $0x358] sm:$0xff] %vm898, %v3696
      %3825 = vst.msk [vmem:[#allocation2 + $0x360] sm:$0xff] %vm898, %v3697
      %3826 = vst.msk [vmem:[#allocation2 + $0x368] sm:$0xff] %vm898, %v3698
      %3827 = vst.msk [vmem:[#allocation2 + $0x370] sm:$0xff] %vm898, %v3699
      %3828 = vst.msk [vmem:[#allocation2 + $0x378] sm:$0xff] %vm898, %v3700
      %3829 = vst.msk [vmem:[#allocation2 + $0x380] sm:$0xff] %vm898, %v3701
      %3830 = vst.msk [vmem:[#allocation2 + $0x388] sm:$0xff] %vm898, %v3702
      %3831 = vst.msk [vmem:[#allocation2 + $0x390] sm:$0xff] %vm898, %v3703
      %3832 = vst.msk [vmem:[#allocation2 + $0x398] sm:$0xff] %vm898, %v3704
      %3833 = vst.msk [vmem:[#allocation2 + $0x3a0] sm:$0xff] %vm898, %v3705
      %3834 = vst.msk [vmem:[#allocation2 + $0x3a8] sm:$0xff] %vm898, %v3706
      %3835 = vst.msk [vmem:[#allocation2 + $0x3b0] sm:$0xff] %vm898, %v3707
      %3836 = vst.msk [vmem:[#allocation2 + $0x3b8] sm:$0xff] %vm898, %v3708
      %3837 = vst.msk [vmem:[#allocation2 + $0x3c0] sm:$0xff] %vm898, %v3709
      %3838 = vst.msk [vmem:[#allocation2 + $0x3c8] sm:$0xff] %vm898, %v3710
      %3839 = vst.msk [vmem:[#allocation2 + $0x3d0] sm:$0xff] %vm898, %v3711
      %3840 = vst.msk [vmem:[#allocation2 + $0x3d8] sm:$0xff] %vm898, %v3712
      %3841 = vst.msk [vmem:[#allocation2 + $0x3e0] sm:$0xff] %vm898, %v3713
      %3842 = vst.msk [vmem:[#allocation2 + $0x3e8] sm:$0xff] %vm898, %v3714
      %3843 = vst.msk [vmem:[#allocation2 + $0x3f0] sm:$0xff] %vm898, %v3715
      %3844 = vst.msk [vmem:[#allocation2 + $0x3f8] sm:$0xff] %vm898, %v3716
      // Predicated region
      $region45: #{mlp_forward.1} parent=39 // pred_check
        %p3845 = pneg %p294
      $region46: #{mlp_forward.1} parent=39 // pred_check_branch
        %3847 = sbr.rel (%p3845) target = $region48
      $region47: #{mlp_forward.1} parent=39 // pred_region
        %v3848 = vld [vmem:[#allocation2] sm:$0xff]
        %v3849 = vld [vmem:[#allocation2 + $0x8] sm:$0xff]
        %v3850 = vld [vmem:[#allocation2 + $0x10] sm:$0xff]
        %v3851 = vld [vmem:[#allocation2 + $0x18] sm:$0xff]
        %v3852 = vld [vmem:[#allocation2 + $0x20] sm:$0xff]
        %v3853 = vld [vmem:[#allocation2 + $0x28] sm:$0xff]
        %v3854 = vld [vmem:[#allocation2 + $0x30] sm:$0xff]
        %v3855 = vld [vmem:[#allocation2 + $0x38] sm:$0xff]
        %v3856 = vld [vmem:[#allocation2 + $0x40] sm:$0xff]
        %v3857 = vld [vmem:[#allocation2 + $0x48] sm:$0xff]
        %v3858 = vld [vmem:[#allocation2 + $0x50] sm:$0xff]
        %v3859 = vld [vmem:[#allocation2 + $0x58] sm:$0xff]
        %v3860 = vld [vmem:[#allocation2 + $0x60] sm:$0xff]
        %v3861 = vld [vmem:[#allocation2 + $0x68] sm:$0xff]
        %v3862 = vld [vmem:[#allocation2 + $0x70] sm:$0xff]
        %v3863 = vld [vmem:[#allocation2 + $0x78] sm:$0xff]
        %v3864 = vld [vmem:[#allocation2 + $0x80] sm:$0xff]
        %v3865 = vld [vmem:[#allocation2 + $0x88] sm:$0xff]
        %v3866 = vld [vmem:[#allocation2 + $0x90] sm:$0xff]
        %v3867 = vld [vmem:[#allocation2 + $0x98] sm:$0xff]
        %v3868 = vld [vmem:[#allocation2 + $0xa0] sm:$0xff]
        %v3869 = vld [vmem:[#allocation2 + $0xa8] sm:$0xff]
        %v3870 = vld [vmem:[#allocation2 + $0xb0] sm:$0xff]
        %v3871 = vld [vmem:[#allocation2 + $0xb8] sm:$0xff]
        %v3872 = vld [vmem:[#allocation2 + $0xc0] sm:$0xff]
        %v3873 = vld [vmem:[#allocation2 + $0xc8] sm:$0xff]
        %v3874 = vld [vmem:[#allocation2 + $0xd0] sm:$0xff]
        %v3875 = vld [vmem:[#allocation2 + $0xd8] sm:$0xff]
        %v3876 = vld [vmem:[#allocation2 + $0xe0] sm:$0xff]
        %v3877 = vld [vmem:[#allocation2 + $0xe8] sm:$0xff]
        %v3878 = vld [vmem:[#allocation2 + $0xf0] sm:$0xff]
        %v3879 = vld [vmem:[#allocation2 + $0xf8] sm:$0xff]
        %v3880 = vld [vmem:[#allocation2 + $0x100] sm:$0xff]
        %v3881 = vld [vmem:[#allocation2 + $0x108] sm:$0xff]
        %v3882 = vld [vmem:[#allocation2 + $0x110] sm:$0xff]
        %v3883 = vld [vmem:[#allocation2 + $0x118] sm:$0xff]
        %v3884 = vld [vmem:[#allocation2 + $0x120] sm:$0xff]
        %v3885 = vld [vmem:[#allocation2 + $0x128] sm:$0xff]
        %v3886 = vld [vmem:[#allocation2 + $0x130] sm:$0xff]
        %v3887 = vld [vmem:[#allocation2 + $0x138] sm:$0xff]
        %v3888 = vld [vmem:[#allocation2 + $0x140] sm:$0xff]
        %v3889 = vld [vmem:[#allocation2 + $0x148] sm:$0xff]
        %v3890 = vld [vmem:[#allocation2 + $0x150] sm:$0xff]
        %v3891 = vld [vmem:[#allocation2 + $0x158] sm:$0xff]
        %v3892 = vld [vmem:[#allocation2 + $0x160] sm:$0xff]
        %v3893 = vld [vmem:[#allocation2 + $0x168] sm:$0xff]
        %v3894 = vld [vmem:[#allocation2 + $0x170] sm:$0xff]
        %v3895 = vld [vmem:[#allocation2 + $0x178] sm:$0xff]
        %v3896 = vld [vmem:[#allocation2 + $0x180] sm:$0xff]
        %v3897 = vld [vmem:[#allocation2 + $0x188] sm:$0xff]
        %v3898 = vld [vmem:[#allocation2 + $0x190] sm:$0xff]
        %v3899 = vld [vmem:[#allocation2 + $0x198] sm:$0xff]
        %v3900 = vld [vmem:[#allocation2 + $0x1a0] sm:$0xff]
        %v3901 = vld [vmem:[#allocation2 + $0x1a8] sm:$0xff]
        %v3902 = vld [vmem:[#allocation2 + $0x1b0] sm:$0xff]
        %v3903 = vld [vmem:[#allocation2 + $0x1b8] sm:$0xff]
        %v3904 = vld [vmem:[#allocation2 + $0x1c0] sm:$0xff]
        %v3905 = vld [vmem:[#allocation2 + $0x1c8] sm:$0xff]
        %v3906 = vld [vmem:[#allocation2 + $0x1d0] sm:$0xff]
        %v3907 = vld [vmem:[#allocation2 + $0x1d8] sm:$0xff]
        %v3908 = vld [vmem:[#allocation2 + $0x1e0] sm:$0xff]
        %v3909 = vld [vmem:[#allocation2 + $0x1e8] sm:$0xff]
        %v3910 = vld [vmem:[#allocation2 + $0x1f0] sm:$0xff]
        %v3911 = vld [vmem:[#allocation2 + $0x1f8] sm:$0xff]
        %v3912 = vld [vmem:[#allocation2 + $0x200] sm:$0xff]
        %v3913 = vld [vmem:[#allocation2 + $0x208] sm:$0xff]
        %v3914 = vld [vmem:[#allocation2 + $0x210] sm:$0xff]
        %v3915 = vld [vmem:[#allocation2 + $0x218] sm:$0xff]
        %v3916 = vld [vmem:[#allocation2 + $0x220] sm:$0xff]
        %v3917 = vld [vmem:[#allocation2 + $0x228] sm:$0xff]
        %v3918 = vld [vmem:[#allocation2 + $0x230] sm:$0xff]
        %v3919 = vld [vmem:[#allocation2 + $0x238] sm:$0xff]
        %v3920 = vld [vmem:[#allocation2 + $0x240] sm:$0xff]
        %v3921 = vld [vmem:[#allocation2 + $0x248] sm:$0xff]
        %v3922 = vld [vmem:[#allocation2 + $0x250] sm:$0xff]
        %v3923 = vld [vmem:[#allocation2 + $0x258] sm:$0xff]
        %v3924 = vld [vmem:[#allocation2 + $0x260] sm:$0xff]
        %v3925 = vld [vmem:[#allocation2 + $0x268] sm:$0xff]
        %v3926 = vld [vmem:[#allocation2 + $0x270] sm:$0xff]
        %v3927 = vld [vmem:[#allocation2 + $0x278] sm:$0xff]
        %v3928 = vld [vmem:[#allocation2 + $0x280] sm:$0xff]
        %v3929 = vld [vmem:[#allocation2 + $0x288] sm:$0xff]
        %v3930 = vld [vmem:[#allocation2 + $0x290] sm:$0xff]
        %v3931 = vld [vmem:[#allocation2 + $0x298] sm:$0xff]
        %v3932 = vld [vmem:[#allocation2 + $0x2a0] sm:$0xff]
        %v3933 = vld [vmem:[#allocation2 + $0x2a8] sm:$0xff]
        %v3934 = vld [vmem:[#allocation2 + $0x2b0] sm:$0xff]
        %v3935 = vld [vmem:[#allocation2 + $0x2b8] sm:$0xff]
        %v3936 = vld [vmem:[#allocation2 + $0x2c0] sm:$0xff]
        %v3937 = vld [vmem:[#allocation2 + $0x2c8] sm:$0xff]
        %v3938 = vld [vmem:[#allocation2 + $0x2d0] sm:$0xff]
        %v3939 = vld [vmem:[#allocation2 + $0x2d8] sm:$0xff]
        %v3940 = vld [vmem:[#allocation2 + $0x2e0] sm:$0xff]
        %v3941 = vld [vmem:[#allocation2 + $0x2e8] sm:$0xff]
        %v3942 = vld [vmem:[#allocation2 + $0x2f0] sm:$0xff]
        %v3943 = vld [vmem:[#allocation2 + $0x2f8] sm:$0xff]
        %v3944 = vld [vmem:[#allocation2 + $0x300] sm:$0xff]
        %v3945 = vld [vmem:[#allocation2 + $0x308] sm:$0xff]
        %v3946 = vld [vmem:[#allocation2 + $0x310] sm:$0xff]
        %v3947 = vld [vmem:[#allocation2 + $0x318] sm:$0xff]
        %v3948 = vld [vmem:[#allocation2 + $0x320] sm:$0xff]
        %v3949 = vld [vmem:[#allocation2 + $0x328] sm:$0xff]
        %v3950 = vld [vmem:[#allocation2 + $0x330] sm:$0xff]
        %v3951 = vld [vmem:[#allocation2 + $0x338] sm:$0xff]
        %v3952 = vld [vmem:[#allocation2 + $0x340] sm:$0xff]
        %v3953 = vld [vmem:[#allocation2 + $0x348] sm:$0xff]
        %v3954 = vld [vmem:[#allocation2 + $0x350] sm:$0xff]
        %v3955 = vld [vmem:[#allocation2 + $0x358] sm:$0xff]
        %v3956 = vld [vmem:[#allocation2 + $0x360] sm:$0xff]
        %v3957 = vld [vmem:[#allocation2 + $0x368] sm:$0xff]
        %v3958 = vld [vmem:[#allocation2 + $0x370] sm:$0xff]
        %v3959 = vld [vmem:[#allocation2 + $0x378] sm:$0xff]
        %v3960 = vld [vmem:[#allocation2 + $0x380] sm:$0xff]
        %v3961 = vld [vmem:[#allocation2 + $0x388] sm:$0xff]
        %v3962 = vld [vmem:[#allocation2 + $0x390] sm:$0xff]
        %v3963 = vld [vmem:[#allocation2 + $0x398] sm:$0xff]
        %v3964 = vld [vmem:[#allocation2 + $0x3a0] sm:$0xff]
        %v3965 = vld [vmem:[#allocation2 + $0x3a8] sm:$0xff]
        %v3966 = vld [vmem:[#allocation2 + $0x3b0] sm:$0xff]
        %v3967 = vld [vmem:[#allocation2 + $0x3b8] sm:$0xff]
        %v3968 = vld [vmem:[#allocation2 + $0x3c0] sm:$0xff]
        %v3969 = vld [vmem:[#allocation2 + $0x3c8] sm:$0xff]
        %v3970 = vld [vmem:[#allocation2 + $0x3d0] sm:$0xff]
        %v3971 = vld [vmem:[#allocation2 + $0x3d8] sm:$0xff]
        %v3972 = vld [vmem:[#allocation2 + $0x3e0] sm:$0xff]
        %v3973 = vld [vmem:[#allocation2 + $0x3e8] sm:$0xff]
        %v3974 = vld [vmem:[#allocation2 + $0x3f0] sm:$0xff]
        %v3975 = vld [vmem:[#allocation2 + $0x3f8] sm:$0xff]
        %v3976 = vld [vmem:[%s4] sm:$0x1]
        %v3978 = vlaneseq
        %v3979 = vshrl.u32 %v3978, 7
        %v3980 = vsub.s32 0, %v3979
        %v3981 = vrot.slane %v3976, %v3980
        %v3983 = vadd.f32 %v3848, %v3981
        %v3984 = vadd.f32 %v3849, %v3981
        %v3985 = vadd.f32 %v3850, %v3981
        %v3986 = vadd.f32 %v3851, %v3981
        %v3987 = vadd.f32 %v3852, %v3981
        %v3988 = vadd.f32 %v3853, %v3981
        %v3989 = vadd.f32 %v3854, %v3981
        %v3990 = vadd.f32 %v3855, %v3981
        %v3991 = vadd.f32 %v3856, %v3981
        %v3992 = vadd.f32 %v3857, %v3981
        %v3993 = vadd.f32 %v3858, %v3981
        %v3994 = vadd.f32 %v3859, %v3981
        %v3995 = vadd.f32 %v3860, %v3981
        %v3996 = vadd.f32 %v3861, %v3981
        %v3997 = vadd.f32 %v3862, %v3981
        %v3998 = vadd.f32 %v3863, %v3981
        %v3999 = vadd.f32 %v3864, %v3981
        %v4000 = vadd.f32 %v3865, %v3981
        %v4001 = vadd.f32 %v3866, %v3981
        %v4002 = vadd.f32 %v3867, %v3981
        %v4003 = vadd.f32 %v3868, %v3981
        %v4004 = vadd.f32 %v3869, %v3981
        %v4005 = vadd.f32 %v3870, %v3981
        %v4006 = vadd.f32 %v3871, %v3981
        %v4007 = vadd.f32 %v3872, %v3981
        %v4008 = vadd.f32 %v3873, %v3981
        %v4009 = vadd.f32 %v3874, %v3981
        %v4010 = vadd.f32 %v3875, %v3981
        %v4011 = vadd.f32 %v3876, %v3981
        %v4012 = vadd.f32 %v3877, %v3981
        %v4013 = vadd.f32 %v3878, %v3981
        %v4014 = vadd.f32 %v3879, %v3981
        %v4015 = vadd.f32 %v3880, %v3981
        %v4016 = vadd.f32 %v3881, %v3981
        %v4017 = vadd.f32 %v3882, %v3981
        %v4018 = vadd.f32 %v3883, %v3981
        %v4019 = vadd.f32 %v3884, %v3981
        %v4020 = vadd.f32 %v3885, %v3981
        %v4021 = vadd.f32 %v3886, %v3981
        %v4022 = vadd.f32 %v3887, %v3981
        %v4023 = vadd.f32 %v3888, %v3981
        %v4024 = vadd.f32 %v3889, %v3981
        %v4025 = vadd.f32 %v3890, %v3981
        %v4026 = vadd.f32 %v3891, %v3981
        %v4027 = vadd.f32 %v3892, %v3981
        %v4028 = vadd.f32 %v3893, %v3981
        %v4029 = vadd.f32 %v3894, %v3981
        %v4030 = vadd.f32 %v3895, %v3981
        %v4031 = vadd.f32 %v3896, %v3981
        %v4032 = vadd.f32 %v3897, %v3981
        %v4033 = vadd.f32 %v3898, %v3981
        %v4034 = vadd.f32 %v3899, %v3981
        %v4035 = vadd.f32 %v3900, %v3981
        %v4036 = vadd.f32 %v3901, %v3981
        %v4037 = vadd.f32 %v3902, %v3981
        %v4038 = vadd.f32 %v3903, %v3981
        %v4039 = vadd.f32 %v3904, %v3981
        %v4040 = vadd.f32 %v3905, %v3981
        %v4041 = vadd.f32 %v3906, %v3981
        %v4042 = vadd.f32 %v3907, %v3981
        %v4043 = vadd.f32 %v3908, %v3981
        %v4044 = vadd.f32 %v3909, %v3981
        %v4045 = vadd.f32 %v3910, %v3981
        %v4046 = vadd.f32 %v3911, %v3981
        %v4047 = vadd.f32 %v3912, %v3981
        %v4048 = vadd.f32 %v3913, %v3981
        %v4049 = vadd.f32 %v3914, %v3981
        %v4050 = vadd.f32 %v3915, %v3981
        %v4051 = vadd.f32 %v3916, %v3981
        %v4052 = vadd.f32 %v3917, %v3981
        %v4053 = vadd.f32 %v3918, %v3981
        %v4054 = vadd.f32 %v3919, %v3981
        %v4055 = vadd.f32 %v3920, %v3981
        %v4056 = vadd.f32 %v3921, %v3981
        %v4057 = vadd.f32 %v3922, %v3981
        %v4058 = vadd.f32 %v3923, %v3981
        %v4059 = vadd.f32 %v3924, %v3981
        %v4060 = vadd.f32 %v3925, %v3981
        %v4061 = vadd.f32 %v3926, %v3981
        %v4062 = vadd.f32 %v3927, %v3981
        %v4063 = vadd.f32 %v3928, %v3981
        %v4064 = vadd.f32 %v3929, %v3981
        %v4065 = vadd.f32 %v3930, %v3981
        %v4066 = vadd.f32 %v3931, %v3981
        %v4067 = vadd.f32 %v3932, %v3981
        %v4068 = vadd.f32 %v3933, %v3981
        %v4069 = vadd.f32 %v3934, %v3981
        %v4070 = vadd.f32 %v3935, %v3981
        %v4071 = vadd.f32 %v3936, %v3981
        %v4072 = vadd.f32 %v3937, %v3981
        %v4073 = vadd.f32 %v3938, %v3981
        %v4074 = vadd.f32 %v3939, %v3981
        %v4075 = vadd.f32 %v3940, %v3981
        %v4076 = vadd.f32 %v3941, %v3981
        %v4077 = vadd.f32 %v3942, %v3981
        %v4078 = vadd.f32 %v3943, %v3981
        %v4079 = vadd.f32 %v3944, %v3981
        %v4080 = vadd.f32 %v3945, %v3981
        %v4081 = vadd.f32 %v3946, %v3981
        %v4082 = vadd.f32 %v3947, %v3981
        %v4083 = vadd.f32 %v3948, %v3981
        %v4084 = vadd.f32 %v3949, %v3981
        %v4085 = vadd.f32 %v3950, %v3981
        %v4086 = vadd.f32 %v3951, %v3981
        %v4087 = vadd.f32 %v3952, %v3981
        %v4088 = vadd.f32 %v3953, %v3981
        %v4089 = vadd.f32 %v3954, %v3981
        %v4090 = vadd.f32 %v3955, %v3981
        %v4091 = vadd.f32 %v3956, %v3981
        %v4092 = vadd.f32 %v3957, %v3981
        %v4093 = vadd.f32 %v3958, %v3981
        %v4094 = vadd.f32 %v3959, %v3981
        %v4095 = vadd.f32 %v3960, %v3981
        %v4096 = vadd.f32 %v3961, %v3981
        %v4097 = vadd.f32 %v3962, %v3981
        %v4098 = vadd.f32 %v3963, %v3981
        %v4099 = vadd.f32 %v3964, %v3981
        %v4100 = vadd.f32 %v3965, %v3981
        %v4101 = vadd.f32 %v3966, %v3981
        %v4102 = vadd.f32 %v3967, %v3981
        %v4103 = vadd.f32 %v3968, %v3981
        %v4104 = vadd.f32 %v3969, %v3981
        %v4105 = vadd.f32 %v3970, %v3981
        %v4106 = vadd.f32 %v3971, %v3981
        %v4107 = vadd.f32 %v3972, %v3981
        %v4108 = vadd.f32 %v3973, %v3981
        %v4109 = vadd.f32 %v3974, %v3981
        %v4110 = vadd.f32 %v3975, %v3981
        %4111 = vst.msk [vmem:[%s291] sm:$0xff] %vm898, %v3983
        %4112 = vst.msk [vmem:[%s291 + $0x8] sm:$0xff] %vm898, %v3984
        %4113 = vst.msk [vmem:[%s291 + $0x10] sm:$0xff] %vm898, %v3985
        %4114 = vst.msk [vmem:[%s291 + $0x18] sm:$0xff] %vm898, %v3986
        %4115 = vst.msk [vmem:[%s291 + $0x20] sm:$0xff] %vm898, %v3987
        %4116 = vst.msk [vmem:[%s291 + $0x28] sm:$0xff] %vm898, %v3988
        %4117 = vst.msk [vmem:[%s291 + $0x30] sm:$0xff] %vm898, %v3989
        %4118 = vst.msk [vmem:[%s291 + $0x38] sm:$0xff] %vm898, %v3990
        %4119 = vst.msk [vmem:[%s291 + $0x40] sm:$0xff] %vm898, %v3991
        %4120 = vst.msk [vmem:[%s291 + $0x48] sm:$0xff] %vm898, %v3992
        %4121 = vst.msk [vmem:[%s291 + $0x50] sm:$0xff] %vm898, %v3993
        %4122 = vst.msk [vmem:[%s291 + $0x58] sm:$0xff] %vm898, %v3994
        %4123 = vst.msk [vmem:[%s291 + $0x60] sm:$0xff] %vm898, %v3995
        %4124 = vst.msk [vmem:[%s291 + $0x68] sm:$0xff] %vm898, %v3996
        %4125 = vst.msk [vmem:[%s291 + $0x70] sm:$0xff] %vm898, %v3997
        %4126 = vst.msk [vmem:[%s291 + $0x78] sm:$0xff] %vm898, %v3998
        %4127 = vst.msk [vmem:[%s291 + $0x80] sm:$0xff] %vm898, %v3999
        %4128 = vst.msk [vmem:[%s291 + $0x88] sm:$0xff] %vm898, %v4000
        %4129 = vst.msk [vmem:[%s291 + $0x90] sm:$0xff] %vm898, %v4001
        %4130 = vst.msk [vmem:[%s291 + $0x98] sm:$0xff] %vm898, %v4002
        %4131 = vst.msk [vmem:[%s291 + $0xa0] sm:$0xff] %vm898, %v4003
        %4132 = vst.msk [vmem:[%s291 + $0xa8] sm:$0xff] %vm898, %v4004
        %4133 = vst.msk [vmem:[%s291 + $0xb0] sm:$0xff] %vm898, %v4005
        %4134 = vst.msk [vmem:[%s291 + $0xb8] sm:$0xff] %vm898, %v4006
        %4135 = vst.msk [vmem:[%s291 + $0xc0] sm:$0xff] %vm898, %v4007
        %4136 = vst.msk [vmem:[%s291 + $0xc8] sm:$0xff] %vm898, %v4008
        %4137 = vst.msk [vmem:[%s291 + $0xd0] sm:$0xff] %vm898, %v4009
        %4138 = vst.msk [vmem:[%s291 + $0xd8] sm:$0xff] %vm898, %v4010
        %4139 = vst.msk [vmem:[%s291 + $0xe0] sm:$0xff] %vm898, %v4011
        %4140 = vst.msk [vmem:[%s291 + $0xe8] sm:$0xff] %vm898, %v4012
        %4141 = vst.msk [vmem:[%s291 + $0xf0] sm:$0xff] %vm898, %v4013
        %4142 = vst.msk [vmem:[%s291 + $0xf8] sm:$0xff] %vm898, %v4014
        %4143 = vst.msk [vmem:[%s291 + $0x100] sm:$0xff] %vm898, %v4015
        %4144 = vst.msk [vmem:[%s291 + $0x108] sm:$0xff] %vm898, %v4016
        %4145 = vst.msk [vmem:[%s291 + $0x110] sm:$0xff] %vm898, %v4017
        %4146 = vst.msk [vmem:[%s291 + $0x118] sm:$0xff] %vm898, %v4018
        %4147 = vst.msk [vmem:[%s291 + $0x120] sm:$0xff] %vm898, %v4019
        %4148 = vst.msk [vmem:[%s291 + $0x128] sm:$0xff] %vm898, %v4020
        %4149 = vst.msk [vmem:[%s291 + $0x130] sm:$0xff] %vm898, %v4021
        %4150 = vst.msk [vmem:[%s291 + $0x138] sm:$0xff] %vm898, %v4022
        %4151 = vst.msk [vmem:[%s291 + $0x140] sm:$0xff] %vm898, %v4023
        %4152 = vst.msk [vmem:[%s291 + $0x148] sm:$0xff] %vm898, %v4024
        %4153 = vst.msk [vmem:[%s291 + $0x150] sm:$0xff] %vm898, %v4025
        %4154 = vst.msk [vmem:[%s291 + $0x158] sm:$0xff] %vm898, %v4026
        %4155 = vst.msk [vmem:[%s291 + $0x160] sm:$0xff] %vm898, %v4027
        %4156 = vst.msk [vmem:[%s291 + $0x168] sm:$0xff] %vm898, %v4028
        %4157 = vst.msk [vmem:[%s291 + $0x170] sm:$0xff] %vm898, %v4029
        %4158 = vst.msk [vmem:[%s291 + $0x178] sm:$0xff] %vm898, %v4030
        %4159 = vst.msk [vmem:[%s291 + $0x180] sm:$0xff] %vm898, %v4031
        %4160 = vst.msk [vmem:[%s291 + $0x188] sm:$0xff] %vm898, %v4032
        %4161 = vst.msk [vmem:[%s291 + $0x190] sm:$0xff] %vm898, %v4033
        %4162 = vst.msk [vmem:[%s291 + $0x198] sm:$0xff] %vm898, %v4034
        %4163 = vst.msk [vmem:[%s291 + $0x1a0] sm:$0xff] %vm898, %v4035
        %4164 = vst.msk [vmem:[%s291 + $0x1a8] sm:$0xff] %vm898, %v4036
        %4165 = vst.msk [vmem:[%s291 + $0x1b0] sm:$0xff] %vm898, %v4037
        %4166 = vst.msk [vmem:[%s291 + $0x1b8] sm:$0xff] %vm898, %v4038
        %4167 = vst.msk [vmem:[%s291 + $0x1c0] sm:$0xff] %vm898, %v4039
        %4168 = vst.msk [vmem:[%s291 + $0x1c8] sm:$0xff] %vm898, %v4040
        %4169 = vst.msk [vmem:[%s291 + $0x1d0] sm:$0xff] %vm898, %v4041
        %4170 = vst.msk [vmem:[%s291 + $0x1d8] sm:$0xff] %vm898, %v4042
        %4171 = vst.msk [vmem:[%s291 + $0x1e0] sm:$0xff] %vm898, %v4043
        %4172 = vst.msk [vmem:[%s291 + $0x1e8] sm:$0xff] %vm898, %v4044
        %4173 = vst.msk [vmem:[%s291 + $0x1f0] sm:$0xff] %vm898, %v4045
        %4174 = vst.msk [vmem:[%s291 + $0x1f8] sm:$0xff] %vm898, %v4046
        %4175 = vst.msk [vmem:[%s291 + $0x200] sm:$0xff] %vm898, %v4047
        %4176 = vst.msk [vmem:[%s291 + $0x208] sm:$0xff] %vm898, %v4048
        %4177 = vst.msk [vmem:[%s291 + $0x210] sm:$0xff] %vm898, %v4049
        %4178 = vst.msk [vmem:[%s291 + $0x218] sm:$0xff] %vm898, %v4050
        %4179 = vst.msk [vmem:[%s291 + $0x220] sm:$0xff] %vm898, %v4051
        %4180 = vst.msk [vmem:[%s291 + $0x228] sm:$0xff] %vm898, %v4052
        %4181 = vst.msk [vmem:[%s291 + $0x230] sm:$0xff] %vm898, %v4053
        %4182 = vst.msk [vmem:[%s291 + $0x238] sm:$0xff] %vm898, %v4054
        %4183 = vst.msk [vmem:[%s291 + $0x240] sm:$0xff] %vm898, %v4055
        %4184 = vst.msk [vmem:[%s291 + $0x248] sm:$0xff] %vm898, %v4056
        %4185 = vst.msk [vmem:[%s291 + $0x250] sm:$0xff] %vm898, %v4057
        %4186 = vst.msk [vmem:[%s291 + $0x258] sm:$0xff] %vm898, %v4058
        %4187 = vst.msk [vmem:[%s291 + $0x260] sm:$0xff] %vm898, %v4059
        %4188 = vst.msk [vmem:[%s291 + $0x268] sm:$0xff] %vm898, %v4060
        %4189 = vst.msk [vmem:[%s291 + $0x270] sm:$0xff] %vm898, %v4061
        %4190 = vst.msk [vmem:[%s291 + $0x278] sm:$0xff] %vm898, %v4062
        %4191 = vst.msk [vmem:[%s291 + $0x280] sm:$0xff] %vm898, %v4063
        %4192 = vst.msk [vmem:[%s291 + $0x288] sm:$0xff] %vm898, %v4064
        %4193 = vst.msk [vmem:[%s291 + $0x290] sm:$0xff] %vm898, %v4065
        %4194 = vst.msk [vmem:[%s291 + $0x298] sm:$0xff] %vm898, %v4066
        %4195 = vst.msk [vmem:[%s291 + $0x2a0] sm:$0xff] %vm898, %v4067
        %4196 = vst.msk [vmem:[%s291 + $0x2a8] sm:$0xff] %vm898, %v4068
        %4197 = vst.msk [vmem:[%s291 + $0x2b0] sm:$0xff] %vm898, %v4069
        %4198 = vst.msk [vmem:[%s291 + $0x2b8] sm:$0xff] %vm898, %v4070
        %4199 = vst.msk [vmem:[%s291 + $0x2c0] sm:$0xff] %vm898, %v4071
        %4200 = vst.msk [vmem:[%s291 + $0x2c8] sm:$0xff] %vm898, %v4072
        %4201 = vst.msk [vmem:[%s291 + $0x2d0] sm:$0xff] %vm898, %v4073
        %4202 = vst.msk [vmem:[%s291 + $0x2d8] sm:$0xff] %vm898, %v4074
        %4203 = vst.msk [vmem:[%s291 + $0x2e0] sm:$0xff] %vm898, %v4075
        %4204 = vst.msk [vmem:[%s291 + $0x2e8] sm:$0xff] %vm898, %v4076
        %4205 = vst.msk [vmem:[%s291 + $0x2f0] sm:$0xff] %vm898, %v4077
        %4206 = vst.msk [vmem:[%s291 + $0x2f8] sm:$0xff] %vm898, %v4078
        %4207 = vst.msk [vmem:[%s291 + $0x300] sm:$0xff] %vm898, %v4079
        %4208 = vst.msk [vmem:[%s291 + $0x308] sm:$0xff] %vm898, %v4080
        %4209 = vst.msk [vmem:[%s291 + $0x310] sm:$0xff] %vm898, %v4081
        %4210 = vst.msk [vmem:[%s291 + $0x318] sm:$0xff] %vm898, %v4082
        %4211 = vst.msk [vmem:[%s291 + $0x320] sm:$0xff] %vm898, %v4083
        %4212 = vst.msk [vmem:[%s291 + $0x328] sm:$0xff] %vm898, %v4084
        %4213 = vst.msk [vmem:[%s291 + $0x330] sm:$0xff] %vm898, %v4085
        %4214 = vst.msk [vmem:[%s291 + $0x338] sm:$0xff] %vm898, %v4086
        %4215 = vst.msk [vmem:[%s291 + $0x340] sm:$0xff] %vm898, %v4087
        %4216 = vst.msk [vmem:[%s291 + $0x348] sm:$0xff] %vm898, %v4088
        %4217 = vst.msk [vmem:[%s291 + $0x350] sm:$0xff] %vm898, %v4089
        %4218 = vst.msk [vmem:[%s291 + $0x358] sm:$0xff] %vm898, %v4090
        %4219 = vst.msk [vmem:[%s291 + $0x360] sm:$0xff] %vm898, %v4091
        %4220 = vst.msk [vmem:[%s291 + $0x368] sm:$0xff] %vm898, %v4092
        %4221 = vst.msk [vmem:[%s291 + $0x370] sm:$0xff] %vm898, %v4093
        %4222 = vst.msk [vmem:[%s291 + $0x378] sm:$0xff] %vm898, %v4094
        %4223 = vst.msk [vmem:[%s291 + $0x380] sm:$0xff] %vm898, %v4095
        %4224 = vst.msk [vmem:[%s291 + $0x388] sm:$0xff] %vm898, %v4096
        %4225 = vst.msk [vmem:[%s291 + $0x390] sm:$0xff] %vm898, %v4097
        %4226 = vst.msk [vmem:[%s291 + $0x398] sm:$0xff] %vm898, %v4098
        %4227 = vst.msk [vmem:[%s291 + $0x3a0] sm:$0xff] %vm898, %v4099
        %4228 = vst.msk [vmem:[%s291 + $0x3a8] sm:$0xff] %vm898, %v4100
        %4229 = vst.msk [vmem:[%s291 + $0x3b0] sm:$0xff] %vm898, %v4101
        %4230 = vst.msk [vmem:[%s291 + $0x3b8] sm:$0xff] %vm898, %v4102
        %4231 = vst.msk [vmem:[%s291 + $0x3c0] sm:$0xff] %vm898, %v4103
        %4232 = vst.msk [vmem:[%s291 + $0x3c8] sm:$0xff] %vm898, %v4104
        %4233 = vst.msk [vmem:[%s291 + $0x3d0] sm:$0xff] %vm898, %v4105
        %4234 = vst.msk [vmem:[%s291 + $0x3d8] sm:$0xff] %vm898, %v4106
        %4235 = vst.msk [vmem:[%s291 + $0x3e0] sm:$0xff] %vm898, %v4107
        %4236 = vst.msk [vmem:[%s291 + $0x3e8] sm:$0xff] %vm898, %v4108
        %4237 = vst.msk [vmem:[%s291 + $0x3f0] sm:$0xff] %vm898, %v4109
        %4238 = vst.msk [vmem:[%s291 + $0x3f8] sm:$0xff] %vm898, %v4110
      $region48: #{mlp_forward.1} parent=39 // pred_fallthru
        _
      %s4239 = smul.u32 128, %s20
      %p4240 = scmp.lt.s32.totalorder %s4239, 255
      %s4241 = scalar_select %p4240, %s4239, 255
      %s4242 = smul.addr %s4241, 8
      %s4243 = scalar_lea.vmem %s5, %s4242
      // Predicated region
      $region49: #{mlp_forward.1} parent=39 // pred_check
        %p4244 = pneg %p171
      $region50: #{mlp_forward.1} parent=39 // pred_check_branch
        %4246 = sbr.rel (%p4244) target = $region52
      $region51: #{mlp_forward.1} parent=39 // pred_region
        %s4247 = smul.u32 128, %s20
      $region52: #{mlp_forward.1} parent=39 // pred_fallthru
        _
    $region40: #{mlp_forward.1} parent=5 // pred_fallthru
      _
    %p4248 = scmp.le.s32.totalorder 2, %s11
    // Predicated region
    $region53: #{mlp_forward.1} parent=5 // pred_check
      %p4249 = pneg %p4248
    $region54: #{mlp_forward.1} parent=5 // pred_check_branch
      %4251 = sbr.rel (%p4249) target = $region56
    $region55: #{mlp_forward.1} parent=5 // pred_region
      %s4252 = ssub.s32 %s11, 2
      // Predicated region
      $region57: #{mlp_forward.1} parent=55 // pred_check
        %p4253 = pneg %p177
      $region58: #{mlp_forward.1} parent=55 // pred_check_branch
        %4255 = sbr.rel (%p4253) target = $region60
      $region59: #{mlp_forward.1} parent=55 // pred_region
        %s4256 = smul.u32 128, %s22
        %p4257 = scmp.lt.s32.totalorder %s4256, 255
        %s4258 = scalar_select %p4257, %s4256, 255
        %s4259 = smul.addr %s4258, 8
        %s4260 = scalar_lea.vmem %s5, %s4259
      $region60: #{mlp_forward.1} parent=55 // pred_fallthru
        _
    $region56: #{mlp_forward.1} parent=5 // pred_fallthru
      _
  $region6: #{mlp_forward.1} parent=0 // loop_footer
    %s15 = sadd.s32 1, %s11
  $region7: #{mlp_forward.1} parent=0 // loop_footer_branch
    %10 = sbr.rel target = $region3
  $region8: #{mlp_forward.1} parent=0 // loop_exit
    _

</llo_original>
